<compile_context>
chip_gen: v7x
topology: tpu7x:2x2x1
jax: 0.10.0
libtpu: 0.0.40
codegen_flags: <defaults>
</compile_context>

<pallas_src>
import jax
import jax.numpy as jnp
from jax.experimental import pallas as pl
from jax.experimental.pallas import tpu as pltpu


def _cross_type_attn_kernel(target_ref, feats_ref, wt_ref, wf_ref, exp_ref,
                            b_ref, out_ref):
    f32 = jnp.float32
    hi = jax.lax.Precision.HIGHEST

    target = target_ref[...].astype(f32)     # (TBp, P*Dt)  P batch rows per vreg row
    feats = feats_ref[...].astype(f32)       # (N, TBp, 128) lane-dense packed feats
    wt_bd = wt_ref[...]                      # (P*Dt, P) block-diag target weights (resident)
    wf_bd = wf_ref[...]                      # (128,  P) block-diag per-type weights (resident)
    expand = exp_ref[...]                    # (P, 128)  0/1 score -> lane-segment expander
    bias = b_ref[0, 0]                       # scalar, SMEM

    n_types = feats.shape[0]                 # small static constant -> unrolled loops

    # Segmented per-batch-row dot products via block-diagonal matmuls.
    # K is tiny, MXU is otherwise idle; HIGHEST precision is effectively free.
    t_logit = jnp.dot(target, wt_bd, precision=hi,
                      preferred_element_type=f32)                       # (TBp, P)

    logits = []
    for i in range(n_types):
        f_logit = jnp.dot(feats[i], wf_bd, precision=hi,
                          preferred_element_type=f32)                   # (TBp, P)
        logits.append(f_logit + t_logit + bias)

    # Numerically stable softmax over the type axis (exact reciprocal).
    m = logits[0]
    for i in range(1, n_types):
        m = jnp.maximum(m, logits[i])
    exps = [jnp.exp(l - m) for l in logits]
    denom = exps[0]
    for i in range(1, n_types):
        denom = denom + exps[i]
    inv_denom = 1.0 / denom                                             # (TBp, P)

    # Expand each per-batch-row score across its D-lane segment; weighted sum.
    acc = jnp.zeros(out_ref.shape, f32)                                 # (TBp, 128)
    for i in range(n_types):
        s_wide = jnp.dot(exps[i] * inv_denom, expand, precision=hi,
                         preferred_element_type=f32)                    # (TBp, 128)
        acc = acc + s_wide * feats[i]
    out_ref[...] = acc.astype(out_ref.dtype)                            # lane-dense store


def _sublane_multiple(*dtypes):
    # f32 -> 8 rows per sublane group, bf16 -> 16, int8/fp8 -> 32.
    return max(max(8, 32 // jnp.dtype(t).itemsize) for t in dtypes)


def cross_type_attention(target_feat, feats, weight, bias, *, block_b=4096):
    """target_feat: (B, Dt), feats: (N, B, D) (stacked feats_list),
    weight: (1, Dt+D), bias: (1,).  block_b = batch rows per grid step."""
    n, b, d = feats.shape
    dt = target_feat.shape[-1]
    assert weight.shape == (1, dt + d)
    # TODO(synk): the lane-packed path assumes D divides 128; add an unpacked
    # fallback if a model ever uses an irregular feature dim.
    assert 128 % d == 0
    p = 128 // d                                  # batch rows packed per 128-lane row

    # ---- lane packing (free, contiguous reshapes) ---------------------------
    b_pad = pl.cdiv(b, p) * p
    if b_pad != b:
        # TODO(synk): padding costs an extra HBM pass; align B upstream to avoid it.
        feats_p = jnp.pad(feats, ((0, 0), (0, b_pad - b), (0, 0)))
        target_p = jnp.pad(target_feat, ((0, b_pad - b), (0, 0)))
    else:
        feats_p, target_p = feats, target_feat
    bp = b_pad // p
    feats_p = feats_p.reshape(n, bp, p * d)       # (N, B/P, 128)  lane-dense
    target_p = target_p.reshape(bp, p * dt)       # (B/P, P*Dt)

    # ---- tiny weight prep (plain JAX) ---------------------------------------
    w = weight.astype(jnp.float32)
    eye = jnp.eye(p, dtype=jnp.float32)
    wt_bd = jnp.kron(eye, w[0, :dt].reshape(dt, 1))            # (P*Dt, P)
    wf_bd = jnp.kron(eye, w[0, dt:].reshape(d, 1))             # (128,  P)
    expand = jnp.kron(eye, jnp.ones((1, d), jnp.float32))      # (P, 128)
    bias2 = bias.reshape(1, 1).astype(jnp.float32)

    # ---- batch tile: as big as useful (mem-bound), but grid >= 2 for v7x ----
    sub = _sublane_multiple(feats.dtype, target_feat.dtype)
    if bp <= sub:
        tbp = bp                                   # single full-extent block
    else:
        tbp = min(max(block_b // p, sub), bp)
        tbp = min(tbp, pl.cdiv(bp, 2))             # >=2 grid steps -> both TCs on v7x
        tbp = max(sub, (tbp // sub) * sub)
    grid = (pl.cdiv(bp, tbp),)

    # VMEM note: packed f32 blocks at tbp=1024 are ~1.5 MiB (feats) + 0.5 MiB
    # (out) + 0.25 MiB (target), double-buffered -> well under the scoped VMEM
    # default on v5e/v6e/v7x, so vmem_limit_bytes is left alone.
    out_packed = pl.pallas_call(
        _cross_type_attn_kernel,
        out_shape=jax.ShapeDtypeStruct((bp, p * d), feats.dtype),
        grid=grid,
        in_specs=[
            pl.BlockSpec((tbp, p * dt), lambda i: (i, 0)),        # packed target tile
            # TODO(synk): if xprof shows exposed feats DMA on short grids, add
            # pipeline_mode=pl.Buffered(3) to this spec.
            pl.BlockSpec((n, tbp, p * d), lambda i: (0, i, 0)),   # packed feats tile
            pl.BlockSpec((p * dt, p), lambda i: (0, 0)),          # wt block-diag (resident)
            pl.BlockSpec((p * d, p), lambda i: (0, 0)),           # wf block-diag (resident)
            pl.BlockSpec((p, p * d), lambda i: (0, 0)),           # score expander (resident)
            pl.BlockSpec((1, 1), lambda i: (0, 0),
                         memory_space=pltpu.MemorySpace.SMEM),    # bias scalar
        ],
        out_specs=pl.BlockSpec((tbp, p * d), lambda i: (i, 0)),   # lane-dense store
        compiler_params=pltpu.CompilerParams(
            dimension_semantics=("parallel",)),
    )(target_p, feats_p, wt_bd, wf_bd, expand, bias2)

    out = out_packed.reshape(b_pad, d)
    return out if b_pad == b else out[:b]


def _reference(target_feat, feats, weight, bias):
    """Pure-JAX f32 reference of the intended forward (elementwise, no MXU)."""
    n = feats.shape[0]
    tgt = jnp.broadcast_to(target_feat[None].astype(jnp.float32),
                           (n,) + target_feat.shape)
    combined = jnp.concatenate([tgt, feats.astype(jnp.float32)], axis=-1)
    logits = jnp.sum(combined * weight[0].astype(jnp.float32),
                     axis=-1, keepdims=True) + bias.astype(jnp.float32)
    scores = jax.nn.softmax(logits, axis=0)
    return jnp.sum(scores * feats.astype(jnp.float32), axis=0)


if __name__ == "__main__":
    key = jax.random.PRNGKey(0)
    k1, k2, k3, k4 = jax.random.split(key, 4)

    # feat_dims = (Dt, D) -> nn.Linear(sum(feat_dims) = 48, 1); N stacked feat types.
    N, B, Dt, D = 3, 64, 16, 32
    target_feat = jax.random.normal(k1, (B, Dt), dtype=jnp.float32)
    feats = jax.random.normal(k2, (N, B, D), dtype=jnp.float32)   # stacked feats_list

    fan_in = Dt + D
    bound = 1.0 / float(fan_in) ** 0.5
    weight = jax.random.uniform(k3, (1, fan_in), minval=-bound, maxval=bound,
                                dtype=jnp.float32)
    bias = jax.random.uniform(k4, (1,), minval=-bound, maxval=bound,
                              dtype=jnp.float32)

    # B=64, D=32 -> packed rows Bp=16, tile TBp=8 -> a 2-step pipelined grid.
    out = jax.block_until_ready(
        cross_type_attention(target_feat, feats, weight, bias))
    ref = _reference(target_feat, feats, weight, bias)

    assert out.shape == (B, D)
    assert bool(jnp.allclose(out, ref, rtol=1e-3, atol=1e-3)), \
        float(jnp.max(jnp.abs(out - ref)))
    print("KERNEL_OK")
</pallas_src>

<mosaic_0001>
module attributes {stable_mosaic.version = 11 : i64} {
  func.func @_cross_type_attn_kernel(%arg0: i32, %arg1: memref<8x64xf32, #tpu.memory_space<vmem>>, %arg2: memref<3x8x128xf32, #tpu.memory_space<vmem>>, %arg3: memref<64x4xf32, #tpu.memory_space<vmem>>, %arg4: memref<128x4xf32, #tpu.memory_space<vmem>>, %arg5: memref<4x128xf32, #tpu.memory_space<vmem>>, %arg6: memref<1x1xf32, #tpu.memory_space<smem>>, %arg7: memref<8x128xf32, #tpu.memory_space<vmem>>) attributes {dimension_semantics = [#tpu.dimension_semantics<parallel>], iteration_bounds = array<i64: 2>, scalar_prefetch = 0 : i64, scratch_operands = 0 : i64, tpu.core_type = #tpu.core_type<tc>, window_params = [{transform_indices = @transform_0, window_bounds = array<i64: 8, 64>}, {transform_indices = @transform_1, window_bounds = array<i64: 3, 8, 128>}, {pipeline_mode = #tpu.pipeline_mode<synchronous>, transform_indices = @transform_2, window_bounds = array<i64: 64, 4>}, {pipeline_mode = #tpu.pipeline_mode<synchronous>, transform_indices = @transform_3, window_bounds = array<i64: 128, 4>}, {pipeline_mode = #tpu.pipeline_mode<synchronous>, transform_indices = @transform_4, window_bounds = array<i64: 4, 128>}, {transform_indices = @transform_5, window_bounds = array<i64: 1, 1>}, {transform_indices = @transform_6, window_bounds = array<i64: 8, 128>}]} {
    %c0 = arith.constant 0 : index
    %c0_0 = arith.constant 0 : index
    %0 = vector.load %arg1[%c0, %c0_0] : memref<8x64xf32, #tpu.memory_space<vmem>>, vector<8x64xf32>
    %c0_1 = arith.constant 0 : index
    %c0_2 = arith.constant 0 : index
    %c0_3 = arith.constant 0 : index
    %1 = vector.load %arg2[%c0_1, %c0_2, %c0_3] : memref<3x8x128xf32, #tpu.memory_space<vmem>>, vector<3x8x128xf32>
    %c0_4 = arith.constant 0 : index
    %c0_5 = arith.constant 0 : index
    %2 = vector.load %arg3[%c0_4, %c0_5] : memref<64x4xf32, #tpu.memory_space<vmem>>, vector<64x4xf32>
    %c0_6 = arith.constant 0 : index
    %c0_7 = arith.constant 0 : index
    %3 = vector.load %arg4[%c0_6, %c0_7] : memref<128x4xf32, #tpu.memory_space<vmem>>, vector<128x4xf32>
    %c0_8 = arith.constant 0 : index
    %c0_9 = arith.constant 0 : index
    %4 = vector.load %arg5[%c0_8, %c0_9] : memref<4x128xf32, #tpu.memory_space<vmem>>, vector<4x128xf32>
    %c0_10 = arith.constant 0 : index
    %c0_11 = arith.constant 0 : index
    %5 = memref.load %arg6[%c0_10, %c0_11] : memref<1x1xf32, #tpu.memory_space<smem>>
    %cst = arith.constant dense<0.000000e+00> : vector<8x4xf32>
    %6 = tpu.matmul %0, %2, %cst {dimension_numbers = #tpu.dot_dimension_numbers<[1], [0], [0], [1], [0, 0, 1, 1], [], []>, precision = #tpu.contract_precision<fp32>} : vector<8x64xf32>, vector<64x4xf32>, vector<8x4xf32> -> vector<8x4xf32>
    %7 = vector.extract_strided_slice %1 {offsets = [0, 0, 0], sizes = [1, 8, 128], strides = [1, 1, 1]} : vector<3x8x128xf32> to vector<1x8x128xf32>
    %8 = vector.shape_cast %7 : vector<1x8x128xf32> to vector<8x128xf32>
    %cst_12 = arith.constant dense<0.000000e+00> : vector<8x4xf32>
    %9 = tpu.matmul %8, %3, %cst_12 {dimension_numbers = #tpu.dot_dimension_numbers<[1], [0], [0], [1], [0, 0, 1, 1], [], []>, precision = #tpu.contract_precision<fp32>} : vector<8x128xf32>, vector<128x4xf32>, vector<8x4xf32> -> vector<8x4xf32>
    %10 = arith.addf %9, %6 : vector<8x4xf32>
    %11 = vector.broadcast %5 : f32 to vector<8x4xf32>
    %12 = arith.addf %10, %11 : vector<8x4xf32>
    %13 = vector.extract_strided_slice %1 {offsets = [1, 0, 0], sizes = [1, 8, 128], strides = [1, 1, 1]} : vector<3x8x128xf32> to vector<1x8x128xf32>
    %14 = vector.shape_cast %13 : vector<1x8x128xf32> to vector<8x128xf32>
    %cst_13 = arith.constant dense<0.000000e+00> : vector<8x4xf32>
    %15 = tpu.matmul %14, %3, %cst_13 {dimension_numbers = #tpu.dot_dimension_numbers<[1], [0], [0], [1], [0, 0, 1, 1], [], []>, precision = #tpu.contract_precision<fp32>} : vector<8x128xf32>, vector<128x4xf32>, vector<8x4xf32> -> vector<8x4xf32>
    %16 = arith.addf %15, %6 : vector<8x4xf32>
    %17 = vector.broadcast %5 : f32 to vector<8x4xf32>
    %18 = arith.addf %16, %17 : vector<8x4xf32>
    %19 = vector.extract_strided_slice %1 {offsets = [2, 0, 0], sizes = [1, 8, 128], strides = [1, 1, 1]} : vector<3x8x128xf32> to vector<1x8x128xf32>
    %20 = vector.shape_cast %19 : vector<1x8x128xf32> to vector<8x128xf32>
    %cst_14 = arith.constant dense<0.000000e+00> : vector<8x4xf32>
    %21 = tpu.matmul %20, %3, %cst_14 {dimension_numbers = #tpu.dot_dimension_numbers<[1], [0], [0], [1], [0, 0, 1, 1], [], []>, precision = #tpu.contract_precision<fp32>} : vector<8x128xf32>, vector<128x4xf32>, vector<8x4xf32> -> vector<8x4xf32>
    %22 = arith.addf %21, %6 : vector<8x4xf32>
    %23 = vector.broadcast %5 : f32 to vector<8x4xf32>
    %24 = arith.addf %22, %23 : vector<8x4xf32>
    %25 = arith.maximumf %12, %18 : vector<8x4xf32>
    %26 = arith.maximumf %25, %24 : vector<8x4xf32>
    %27 = arith.subf %12, %26 : vector<8x4xf32>
    %28 = math.exp %27 : vector<8x4xf32>
    %29 = arith.subf %18, %26 : vector<8x4xf32>
    %30 = math.exp %29 : vector<8x4xf32>
    %31 = arith.subf %24, %26 : vector<8x4xf32>
    %32 = math.exp %31 : vector<8x4xf32>
    %33 = arith.addf %28, %30 : vector<8x4xf32>
    %34 = arith.addf %33, %32 : vector<8x4xf32>
    %cst_15 = arith.constant 1.000000e+00 : f32
    %35 = vector.broadcast %cst_15 : f32 to vector<8x4xf32>
    %36 = arith.divf %35, %34 : vector<8x4xf32>
    %cst_16 = arith.constant 0.000000e+00 : f32
    %37 = vector.broadcast %cst_16 : f32 to vector<8x128xf32>
    %38 = arith.mulf %28, %36 : vector<8x4xf32>
    %cst_17 = arith.constant dense<0.000000e+00> : vector<8x128xf32>
    %39 = tpu.matmul %38, %4, %cst_17 {dimension_numbers = #tpu.dot_dimension_numbers<[1], [0], [0], [1], [0, 0, 1, 1], [], []>, precision = #tpu.contract_precision<fp32>} : vector<8x4xf32>, vector<4x128xf32>, vector<8x128xf32> -> vector<8x128xf32>
    %40 = vector.extract_strided_slice %1 {offsets = [0, 0, 0], sizes = [1, 8, 128], strides = [1, 1, 1]} : vector<3x8x128xf32> to vector<1x8x128xf32>
    %41 = vector.shape_cast %40 : vector<1x8x128xf32> to vector<8x128xf32>
    %42 = arith.mulf %39, %41 : vector<8x128xf32>
    %43 = arith.addf %37, %42 : vector<8x128xf32>
    %44 = arith.mulf %30, %36 : vector<8x4xf32>
    %cst_18 = arith.constant dense<0.000000e+00> : vector<8x128xf32>
    %45 = tpu.matmul %44, %4, %cst_18 {dimension_numbers = #tpu.dot_dimension_numbers<[1], [0], [0], [1], [0, 0, 1, 1], [], []>, precision = #tpu.contract_precision<fp32>} : vector<8x4xf32>, vector<4x128xf32>, vector<8x128xf32> -> vector<8x128xf32>
    %46 = vector.extract_strided_slice %1 {offsets = [1, 0, 0], sizes = [1, 8, 128], strides = [1, 1, 1]} : vector<3x8x128xf32> to vector<1x8x128xf32>
    %47 = vector.shape_cast %46 : vector<1x8x128xf32> to vector<8x128xf32>
    %48 = arith.mulf %45, %47 : vector<8x128xf32>
    %49 = arith.addf %43, %48 : vector<8x128xf32>
    %50 = arith.mulf %32, %36 : vector<8x4xf32>
    %cst_19 = arith.constant dense<0.000000e+00> : vector<8x128xf32>
    %51 = tpu.matmul %50, %4, %cst_19 {dimension_numbers = #tpu.dot_dimension_numbers<[1], [0], [0], [1], [0, 0, 1, 1], [], []>, precision = #tpu.contract_precision<fp32>} : vector<8x4xf32>, vector<4x128xf32>, vector<8x128xf32> -> vector<8x128xf32>
    %52 = vector.extract_strided_slice %1 {offsets = [2, 0, 0], sizes = [1, 8, 128], strides = [1, 1, 1]} : vector<3x8x128xf32> to vector<1x8x128xf32>
    %53 = vector.shape_cast %52 : vector<1x8x128xf32> to vector<8x128xf32>
    %54 = arith.mulf %51, %53 : vector<8x128xf32>
    %55 = arith.addf %49, %54 : vector<8x128xf32>
    %c0_20 = arith.constant 0 : index
    %c0_21 = arith.constant 0 : index
    %56 = vector.load %arg7[%c0_20, %c0_21] : memref<8x128xf32, #tpu.memory_space<vmem>>, vector<8x128xf32>
    tpu.vector_store %arg7[%c0_20, %c0_21], %55 {strides = array<i32>} : memref<8x128xf32, #tpu.memory_space<vmem>>, vector<8x128xf32>,
    return
  }
  func.func @transform_0(%arg0: i32) -> (i32, i32) {
    %c0_i32 = arith.constant 0 : i32
    %c0_i32_0 = arith.constant 0 : i32
    return %arg0, %c0_i32 : i32, i32
  }
  func.func @transform_1(%arg0: i32) -> (i32, i32, i32) {
    %c0_i32 = arith.constant 0 : i32
    %c0_i32_0 = arith.constant 0 : i32
    %c0_i32_1 = arith.constant 0 : i32
    return %c0_i32, %arg0, %c0_i32_0 : i32, i32, i32
  }
  func.func @transform_2(%arg0: i32) -> (i32, i32) {
    %c0_i32 = arith.constant 0 : i32
    %c0_i32_0 = arith.constant 0 : i32
    %c0_i32_1 = arith.constant 0 : i32
    return %c0_i32, %c0_i32_0 : i32, i32
  }
  func.func @transform_3(%arg0: i32) -> (i32, i32) {
    %c0_i32 = arith.constant 0 : i32
    %c0_i32_0 = arith.constant 0 : i32
    %c0_i32_1 = arith.constant 0 : i32
    return %c0_i32, %c0_i32_0 : i32, i32
  }
  func.func @transform_4(%arg0: i32) -> (i32, i32) {
    %c0_i32 = arith.constant 0 : i32
    %c0_i32_0 = arith.constant 0 : i32
    %c0_i32_1 = arith.constant 0 : i32
    return %c0_i32, %c0_i32_0 : i32, i32
  }
  func.func @transform_5(%arg0: i32) -> (i32, i32) {
    %c0_i32 = arith.constant 0 : i32
    %c0_i32_0 = arith.constant 0 : i32
    %c0_i32_1 = arith.constant 0 : i32
    return %c0_i32, %c0_i32_0 : i32, i32
  }
  func.func @transform_6(%arg0: i32) -> (i32, i32) {
    %c0_i32 = arith.constant 0 : i32
    %c0_i32_0 = arith.constant 0 : i32
    return %arg0, %c0_i32 : i32, i32
  }
}

</mosaic_0001>

<llo_original>
// kernel: tpu_custom_call.1
$region0: #{tpu_custom_call.1}
  #allocation0 [shape = 'u32[]', space=smem, size = 0x4, offset = 0x4, fixed_abs, tag = 'smem constant byte address 0x4 - core index']
  #allocation1 [shape = 'u32[144,128]{1,0:T(1,128)}', space=vmem, size = 0x12000, scoped, tag = 'internal scratch']
  #allocation2 [shape = 'f32[1,1]{1,0:T(1,128)S(6)}', space=smem, size = 0x200, scoped, tag = 'scoped memory for tpu_custom_call.1']
  %s0 = inlined_call_operand.vmem [shape: f32[16,64], index: 0, kind: input, shape index: {}]
  %s1 = inlined_call_operand.vmem [shape: f32[3,16,128], index: 1, kind: input, shape index: {}]
  %s2 = inlined_call_operand.vmem [shape: f32[64,4], index: 2, kind: input, shape index: {}]
  %s3 = inlined_call_operand.vmem [shape: f32[128,4], index: 3, kind: input, shape index: {}]
  %s4 = inlined_call_operand.vmem [shape: f32[4,128], index: 4, kind: input, shape index: {}]
  %s5 = inlined_call_operand.<no memory space> [shape: f32[1,1], index: 5, kind: input, shape index: {}]
  %s6 = inlined_call_operand.hbm [shape: f32[16,128], index: 6, kind: output, shape index: {}]
  %s7 = sld [smem:[#allocation0]]
  $region95: #{tpu_custom_call.1} parent=0
    _
  %s9 = ssub.s32 1, %s7
  %s10 = scalar_select 0, %s9, %s7
  %11 = sst [smem:[#allocation2]] %s5
  $region1: #{tpu_custom_call.1} parent=0
    #allocation3 [shape = 'u8[24576]{0}', space=vmem, size = 0x6000, scoped, tag = 'input window, operand 1']
    #allocation4 [shape = 'u8[8192]{0}', space=vmem, size = 0x2000, scoped, tag = 'output window, operand 0']
    #allocation5 [shape = 's32[2]{0}', space=sflag, size = 0x8, scoped, tag = 'scoped memory for tpu_custom_call.1']
    %12 = vsyncpa [#allocation5], 0
    %s13 = scalar_lea.sflag [#allocation5], 1
    %14 = vsyncpa %s13, 0
    loop: start=0, step=1, limit=4
    $region2: #{tpu_custom_call.1} parent=1 // loop_pre_header
      _
    $region3: #{tpu_custom_call.1} parent=1 // loop_header
      %s16 = sphi 0, %s20
      %p17 = scmp.ge.s32.totalorder %s16, 4
      %s26 = sphi 0, %s28
      %s29 = sphi 0, %s26
      %s30 = sphi 0, %s29
      %s46 = sphi 0, %s30
      %s52 = sphi 0, %s54
      %s55 = sphi 0, %s52
      %s56 = sphi 0, %s55
      %s72 = sphi 0, %s56
      %s76 = sphi 0, %s76
      %s78 = sphi 0, %s76
      %s79 = sphi 0, %s78
      %s93 = sphi 0, %s79
      %s97 = sphi 0, %s97
      %s99 = sphi 0, %s97
      %s100 = sphi 0, %s99
      %s114 = sphi 0, %s100
      %s118 = sphi 0, %s118
      %s120 = sphi 0, %s118
      %s121 = sphi 0, %s120
      %s135 = sphi 0, %s121
      %s139 = sphi 0, %s139
      %s141 = sphi 0, %s139
      %s142 = sphi 0, %s141
      %s156 = sphi 0, %s142
      %s162 = sphi 0, %s164
      %s165 = sphi 0, %s162
      %s166 = sphi 0, %s165
      %s182 = sphi 0, %s166
    $region4: #{tpu_custom_call.1} parent=1 // loop_header_branch
      %19 = sbr.rel (%p17) target = $region8
    $region5: #{tpu_custom_call.1} parent=1 // loop_body
      %s21 = ssub.s32 %s16, 1
      %s22 = ssub.s32 %s16, 2
      %s23 = sadd.s32 %s16, 1
      %s24 = ssub.s32 %s16, %s23
      %p25 = scmp.eq.s32.totalorder %s24, 0
      %s27 = sadd.s32 %s26, 1
      %s28 = scalar_select %p25, %s26, %s27
      %p31 = pneg %p25
      %p32 = scmp.eq.s32.totalorder %s16, 1
      %p33 = por %p31, %p32
      %p34 = scmp.ne.s32.totalorder %s26, %s29
      %p35 = scmp.eq.s32.totalorder %s16, 0
      %p36 = por %p34, %p35
      %p37 = scmp.ne.s32.totalorder %s26, %s29
      %p38 = scmp.eq.s32.totalorder %s21, 1
      %p39 = por %p37, %p38
      %p40 = scmp.ne.s32.totalorder %s29, %s30
      %p41 = scmp.eq.s32.totalorder %s21, 0
      %p42 = por %p40, %p41
      %p43 = scmp.ne.s32.totalorder %s29, %s30
      %p44 = scmp.eq.s32.totalorder %s22, 1
      %p45 = por %p43, %p44
      %p47 = scmp.ne.s32.totalorder %s30, %s46
      %p48 = scmp.eq.s32.totalorder %s22, 0
      %p49 = por %p47, %p48
      %s50 = ssub.s32 %s16, %s23
      %p51 = scmp.eq.s32.totalorder %s50, 0
      %s53 = sadd.s32 %s52, 1
      %s54 = scalar_select %p51, %s52, %s53
      %p57 = pneg %p51
      %p58 = scmp.eq.s32.totalorder %s16, 1
      %p59 = por %p57, %p58
      %p60 = scmp.ne.s32.totalorder %s52, %s55
      %p61 = scmp.eq.s32.totalorder %s16, 0
      %p62 = por %p60, %p61
      %p63 = scmp.ne.s32.totalorder %s52, %s55
      %p64 = scmp.eq.s32.totalorder %s21, 1
      %p65 = por %p63, %p64
      %p66 = scmp.ne.s32.totalorder %s55, %s56
      %p67 = scmp.eq.s32.totalorder %s21, 0
      %p68 = por %p66, %p67
      %p69 = scmp.ne.s32.totalorder %s55, %s56
      %p70 = scmp.eq.s32.totalorder %s22, 1
      %p71 = por %p69, %p70
      %p73 = scmp.ne.s32.totalorder %s56, %s72
      %p74 = scmp.eq.s32.totalorder %s22, 0
      %p75 = por %p73, %p74
      %s77 = sadd.s32 %s76, 1
      %p80 = scmp.eq.s32.totalorder %s16, 1
      %p81 = scmp.ne.s32.totalorder %s76, %s78
      %p82 = scmp.eq.s32.totalorder %s16, 0
      %p83 = por %p81, %p82
      %p84 = scmp.ne.s32.totalorder %s76, %s78
      %p85 = scmp.eq.s32.totalorder %s21, 1
      %p86 = por %p84, %p85
      %p87 = scmp.ne.s32.totalorder %s78, %s79
      %p88 = scmp.eq.s32.totalorder %s21, 0
      %p89 = por %p87, %p88
      %p90 = scmp.ne.s32.totalorder %s78, %s79
      %p91 = scmp.eq.s32.totalorder %s22, 1
      %p92 = por %p90, %p91
      %p94 = scmp.ne.s32.totalorder %s79, %s93
      %p95 = scmp.eq.s32.totalorder %s22, 0
      %p96 = por %p94, %p95
      %s98 = sadd.s32 %s97, 1
      %p101 = scmp.eq.s32.totalorder %s16, 1
      %p102 = scmp.ne.s32.totalorder %s97, %s99
      %p103 = scmp.eq.s32.totalorder %s16, 0
      %p104 = por %p102, %p103
      %p105 = scmp.ne.s32.totalorder %s97, %s99
      %p106 = scmp.eq.s32.totalorder %s21, 1
      %p107 = por %p105, %p106
      %p108 = scmp.ne.s32.totalorder %s99, %s100
      %p109 = scmp.eq.s32.totalorder %s21, 0
      %p110 = por %p108, %p109
      %p111 = scmp.ne.s32.totalorder %s99, %s100
      %p112 = scmp.eq.s32.totalorder %s22, 1
      %p113 = por %p111, %p112
      %p115 = scmp.ne.s32.totalorder %s100, %s114
      %p116 = scmp.eq.s32.totalorder %s22, 0
      %p117 = por %p115, %p116
      %s119 = sadd.s32 %s118, 1
      %p122 = scmp.eq.s32.totalorder %s16, 1
      %p123 = scmp.ne.s32.totalorder %s118, %s120
      %p124 = scmp.eq.s32.totalorder %s16, 0
      %p125 = por %p123, %p124
      %p126 = scmp.ne.s32.totalorder %s118, %s120
      %p127 = scmp.eq.s32.totalorder %s21, 1
      %p128 = por %p126, %p127
      %p129 = scmp.ne.s32.totalorder %s120, %s121
      %p130 = scmp.eq.s32.totalorder %s21, 0
      %p131 = por %p129, %p130
      %p132 = scmp.ne.s32.totalorder %s120, %s121
      %p133 = scmp.eq.s32.totalorder %s22, 1
      %p134 = por %p132, %p133
      %p136 = scmp.ne.s32.totalorder %s121, %s135
      %p137 = scmp.eq.s32.totalorder %s22, 0
      %p138 = por %p136, %p137
      %s140 = sadd.s32 %s139, 1
      %p143 = scmp.eq.s32.totalorder %s16, 1
      %p144 = scmp.ne.s32.totalorder %s139, %s141
      %p145 = scmp.eq.s32.totalorder %s16, 0
      %p146 = por %p144, %p145
      %p147 = scmp.ne.s32.totalorder %s139, %s141
      %p148 = scmp.eq.s32.totalorder %s21, 1
      %p149 = por %p147, %p148
      %p150 = scmp.ne.s32.totalorder %s141, %s142
      %p151 = scmp.eq.s32.totalorder %s21, 0
      %p152 = por %p150, %p151
      %p153 = scmp.ne.s32.totalorder %s141, %s142
      %p154 = scmp.eq.s32.totalorder %s22, 1
      %p155 = por %p153, %p154
      %p157 = scmp.ne.s32.totalorder %s142, %s156
      %p158 = scmp.eq.s32.totalorder %s22, 0
      %p159 = por %p157, %p158
      %s160 = ssub.s32 %s16, %s23
      %p161 = scmp.eq.s32.totalorder %s160, 0
      %s163 = sadd.s32 %s162, 1
      %s164 = scalar_select %p161, %s162, %s163
      %p167 = pneg %p161
      %p168 = scmp.eq.s32.totalorder %s16, 1
      %p169 = por %p167, %p168
      %p170 = scmp.ne.s32.totalorder %s162, %s165
      %p171 = scmp.eq.s32.totalorder %s16, 0
      %p172 = por %p170, %p171
      %p173 = scmp.ne.s32.totalorder %s162, %s165
      %p174 = scmp.eq.s32.totalorder %s21, 1
      %p175 = por %p173, %p174
      %p176 = scmp.ne.s32.totalorder %s165, %s166
      %p177 = scmp.eq.s32.totalorder %s21, 0
      %p178 = por %p176, %p177
      %p179 = scmp.ne.s32.totalorder %s165, %s166
      %p180 = scmp.eq.s32.totalorder %s22, 1
      %p181 = por %p179, %p180
      %p183 = scmp.ne.s32.totalorder %s166, %s182
      %p184 = scmp.eq.s32.totalorder %s22, 0
      %p185 = por %p183, %p184
      %p186 = scmp.le.s32.totalorder 1, %s16
      %p187 = scmp.lt.s32.totalorder %s16, 3
      %p188 = pnand %p186, %p187
      %p189 = pneg %p188
      // Predicated region
      $region9: #{tpu_custom_call.1} parent=5 // pred_check
        _
      $region10: #{tpu_custom_call.1} parent=5 // pred_check_branch
        %191 = sbr.rel (%p188) target = $region12
      $region11: #{tpu_custom_call.1} parent=5 // pred_region
        %s192 = ssub.s32 %s16, 1
        // Predicated region
        $region13: #{tpu_custom_call.1} parent=11 // pred_check
          %p193 = pneg %p89
        $region14: #{tpu_custom_call.1} parent=11 // pred_check_branch
          %195 = sbr.rel (%p193) target = $region16
        $region15: #{tpu_custom_call.1} parent=11 // pred_region
          _
        $region16: #{tpu_custom_call.1} parent=11 // pred_fallthru
          _
        // Predicated region
        $region17: #{tpu_custom_call.1} parent=11 // pred_check
          %p196 = pneg %p110
        $region18: #{tpu_custom_call.1} parent=11 // pred_check_branch
          %198 = sbr.rel (%p196) target = $region20
        $region19: #{tpu_custom_call.1} parent=11 // pred_region
          _
        $region20: #{tpu_custom_call.1} parent=11 // pred_fallthru
          _
        // Predicated region
        $region21: #{tpu_custom_call.1} parent=11 // pred_check
          %p199 = pneg %p131
        $region22: #{tpu_custom_call.1} parent=11 // pred_check_branch
          %201 = sbr.rel (%p199) target = $region24
        $region23: #{tpu_custom_call.1} parent=11 // pred_region
          _
        $region24: #{tpu_custom_call.1} parent=11 // pred_fallthru
          _
        // Predicated region
        $region25: #{tpu_custom_call.1} parent=11 // pred_check
          %p202 = pneg %p152
        $region26: #{tpu_custom_call.1} parent=11 // pred_check_branch
          %204 = sbr.rel (%p202) target = $region28
        $region27: #{tpu_custom_call.1} parent=11 // pred_region
          _
        $region28: #{tpu_custom_call.1} parent=11 // pred_fallthru
          _
      $region12: #{tpu_custom_call.1} parent=5 // pred_fallthru
        _
      %p205 = scmp.lt.s32.totalorder %s16, 2
      // Predicated region
      $region29: #{tpu_custom_call.1} parent=5 // pred_check
        %p206 = pneg %p205
      $region30: #{tpu_custom_call.1} parent=5 // pred_check_branch
        %208 = sbr.rel (%p206) target = $region32
      $region31: #{tpu_custom_call.1} parent=5 // pred_region
        // Predicated region
        $region33: #{tpu_custom_call.1} parent=31 // pred_check
          %p209 = pneg %p36
        $region34: #{tpu_custom_call.1} parent=31 // pred_check_branch
          %211 = sbr.rel (%p209) target = $region36
        $region35: #{tpu_custom_call.1} parent=31 // pred_region
          %p212 = scmp.lt.s32.totalorder %s16, 1
          %s213 = scalar_select %p212, %s16, 1
          %s214 = smul.addr %s213, 8
          %s215 = scalar_lea.vmem %s0, %s214
        $region36: #{tpu_custom_call.1} parent=31 // pred_fallthru
          _
        // Predicated region
        $region37: #{tpu_custom_call.1} parent=31 // pred_check
          %p216 = pneg %p62
        $region38: #{tpu_custom_call.1} parent=31 // pred_check_branch
          %218 = sbr.rel (%p216) target = $region40
        $region39: #{tpu_custom_call.1} parent=31 // pred_region
          %s219 = sand.u32 %s52, 1
          %s220 = sand.u32 %s52, 1
          %s221 = smul.addr %s220, 24
          %s222 = scalar_lea.vmem [#allocation3], %s221
          %s223 = smul.addr %s16, 8
          %s224 = scalar_lea.vmem %s1, %s223
          // Predicated region
          $region41: #{tpu_custom_call.1} parent=39 // pred_check
            _
          $region42: #{tpu_custom_call.1} parent=39 // pred_check_branch
            %226 = sbr.rel (0) target = $region44
          $region43: #{tpu_custom_call.1} parent=39 // pred_region
            // Predicated region
            $region45: #{tpu_custom_call.1} parent=43 // pred_check
              _
            $region46: #{tpu_custom_call.1} parent=43 // pred_check_branch
              %228 = sbr.rel (0) target = $region48
            $region47: #{tpu_custom_call.1} parent=43 // pred_region
              // Predicated region
              $region60: #{tpu_custom_call.1} parent=47 // pred_check
                _
              $region61: #{tpu_custom_call.1} parent=47 // pred_check_branch
                %247 = sbr.rel (0) target = $region63
              $region62: #{tpu_custom_call.1} parent=47 // pred_region
                loop: start=0, step=1, limit=1
                $region64: #{tpu_custom_call.1} parent=62 // loop_pre_header
                  _
                $region65: #{tpu_custom_call.1} parent=62 // loop_header
                  %s249 = sphi 0, %s253
                  %p250 = scmp.ge.s32.totalorder %s249, 1
                  %s254 = sphi %s224, %s224
                  %s255 = sphi %s222, %s222
                $region66: #{tpu_custom_call.1} parent=62 // loop_header_branch
                  %252 = sbr.rel (%p250) target = $region70
                $region67: #{tpu_custom_call.1} parent=62 // loop_body
                  %v256 = vld [vmem:[%s254] sm:$0xff]
                  %257 = vst [vmem:[%s255] sm:$0xff] %v256
                  %v258 = vld [vmem:[%s254 + $0x10] sm:$0xff]
                  %259 = vst [vmem:[%s255 + $0x8] sm:$0xff] %v258
                  %v260 = vld [vmem:[%s254 + $0x20] sm:$0xff]
                  %261 = vst [vmem:[%s255 + $0x10] sm:$0xff] %v260
                $region68: #{tpu_custom_call.1} parent=62 // loop_footer
                  %s253 = sadd.s32 1, %s249
                $region69: #{tpu_custom_call.1} parent=62 // loop_footer_branch
                  %248 = sbr.rel target = $region65
                $region70: #{tpu_custom_call.1} parent=62 // loop_exit
                  _
              $region63: #{tpu_custom_call.1} parent=47 // pred_fallthru
                _
              // Predicated region
              $region71: #{tpu_custom_call.1} parent=47 // pred_check
                _
              $region72: #{tpu_custom_call.1} parent=47 // pred_check_branch
                %263 = sbr.rel target = $region74
              $region73: #{tpu_custom_call.1} parent=47 // pred_region
                _
              $region74: #{tpu_custom_call.1} parent=47 // pred_fallthru
                _
            $region48: #{tpu_custom_call.1} parent=43 // pred_fallthru
              _
            // Predicated region
            $region49: #{tpu_custom_call.1} parent=43 // pred_check
              _
            $region50: #{tpu_custom_call.1} parent=43 // pred_check_branch
              %230 = sbr.rel target = $region52
            $region51: #{tpu_custom_call.1} parent=43 // pred_region
              loop: start=0, step=1, limit=1
              $region53: #{tpu_custom_call.1} parent=51 // loop_pre_header
                _
              $region54: #{tpu_custom_call.1} parent=51 // loop_header
                %s233 = sphi 0, %s237
                %p234 = scmp.ge.s32.totalorder %s233, 1
                %s238 = sphi %s224, %s224
                %s239 = sphi %s222, %s222
              $region55: #{tpu_custom_call.1} parent=51 // loop_header_branch
                %236 = sbr.rel (%p234) target = $region59
              $region56: #{tpu_custom_call.1} parent=51 // loop_body
                %v240 = vld [vmem:[%s238] sm:$0xff]
                %241 = vst [vmem:[%s239] sm:$0xff] %v240
                %v242 = vld [vmem:[%s238 + $0x10] sm:$0xff]
                %243 = vst [vmem:[%s239 + $0x8] sm:$0xff] %v242
                %v244 = vld [vmem:[%s238 + $0x20] sm:$0xff]
                %245 = vst [vmem:[%s239 + $0x10] sm:$0xff] %v244
              $region57: #{tpu_custom_call.1} parent=51 // loop_footer
                %s237 = sadd.s32 1, %s233
              $region58: #{tpu_custom_call.1} parent=51 // loop_footer_branch
                %232 = sbr.rel target = $region54
              $region59: #{tpu_custom_call.1} parent=51 // loop_exit
                _
            $region52: #{tpu_custom_call.1} parent=43 // pred_fallthru
              _
          $region44: #{tpu_custom_call.1} parent=39 // pred_fallthru
            _
          %264 = vnop
        $region40: #{tpu_custom_call.1} parent=31 // pred_fallthru
          _
      $region32: #{tpu_custom_call.1} parent=5 // pred_fallthru
        _
      %p265 = scmp.le.s32.totalorder 1, %s16
      %p266 = scmp.lt.s32.totalorder %s16, 3
      %p267 = pnand %p265, %p266
      %p268 = pneg %p267
      // Predicated region
      $region75: #{tpu_custom_call.1} parent=5 // pred_check
        _
      $region76: #{tpu_custom_call.1} parent=5 // pred_check_branch
        %270 = sbr.rel (%p267) target = $region78
      $region77: #{tpu_custom_call.1} parent=5 // pred_region
        %s271 = ssub.s32 %s16, 1
        %s272 = sand.u32 %s55, 1
        %s273 = sand.u32 %s55, 1
        %s274 = smul.addr %s273, 24
        %s275 = scalar_lea.vmem [#allocation3], %s274
        // Predicated region
        $region79: #{tpu_custom_call.1} parent=77 // pred_check
          %p276 = pneg %p68
        $region80: #{tpu_custom_call.1} parent=77 // pred_check_branch
          %278 = sbr.rel (%p276) target = $region82
        $region81: #{tpu_custom_call.1} parent=77 // pred_region
          _
        $region82: #{tpu_custom_call.1} parent=77 // pred_fallthru
          _
        %p279 = scmp.lt.s32.totalorder %s21, 1
        %s280 = scalar_select %p279, %s21, 1
        %s281 = smul.addr %s280, 8
        %s282 = scalar_lea.vmem %s0, %s281
        %p283 = pneg %p42
        %p284 = pneg %p39
        %s285 = sand.u32 %s55, 1
        %s286 = sand.u32 %s55, 1
        %s287 = smul.addr %s286, 24
        %s288 = scalar_lea.vmem [#allocation3], %s287
        %p289 = pneg %p68
        %p290 = pneg %p65
        %p291 = pneg %p89
        %p292 = pneg %p86
        %p293 = pneg %p110
        %p294 = pneg %p107
        %p295 = pneg %p131
        %p296 = pneg %p128
        %p297 = pneg %p152
        %p298 = pneg %p149
        %p299 = pneg %p178
        %p300 = pneg %p175
        %s301 = sand.u32 %s165, 1
        %s302 = scalar_lea.sflag [#allocation5], %s301
        %s303 = sand.u32 %s165, 1
        %s304 = smul.addr %s303, 8
        %s305 = scalar_lea.vmem [#allocation4], %s304
        %p306 = scmp.lt.s32.totalorder %s21, 1
        %s307 = scalar_select %p306, %s21, 1
        %s308 = smul.addr %s307, 8
        %s309 = scalar_lea.vmem %s0, %s308
        %v310 = vld [vmem:[%s309] sm:$0xff]
        %v311 = vld [vmem:[%s275] sm:$0xff]
        %v312 = vld [vmem:[%s275 + $0x8] sm:$0xff]
        %v313 = vld [vmem:[%s275 + $0x10] sm:$0xff]
        %v314 = vld [vmem:[%s2] sm:$0xff]
        %v315 = vld [vmem:[%s2 + $0x8] sm:$0xff]
        %v316 = vld [vmem:[%s2 + $0x10] sm:$0xff]
        %v317 = vld [vmem:[%s2 + $0x18] sm:$0xff]
        %v318 = vld [vmem:[%s2 + $0x20] sm:$0xff]
        %v319 = vld [vmem:[%s2 + $0x28] sm:$0xff]
        %v320 = vld [vmem:[%s2 + $0x30] sm:$0xff]
        %v321 = vld [vmem:[%s2 + $0x38] sm:$0xff]
        %v322 = vld [vmem:[%s3] sm:$0xff]
        %v323 = vld [vmem:[%s3 + $0x8] sm:$0xff]
        %v324 = vld [vmem:[%s3 + $0x10] sm:$0xff]
        %v325 = vld [vmem:[%s3 + $0x18] sm:$0xff]
        %v326 = vld [vmem:[%s3 + $0x20] sm:$0xff]
        %v327 = vld [vmem:[%s3 + $0x28] sm:$0xff]
        %v328 = vld [vmem:[%s3 + $0x30] sm:$0xff]
        %v329 = vld [vmem:[%s3 + $0x38] sm:$0xff]
        %v330 = vld [vmem:[%s3 + $0x40] sm:$0xff]
        %v331 = vld [vmem:[%s3 + $0x48] sm:$0xff]
        %v332 = vld [vmem:[%s3 + $0x50] sm:$0xff]
        %v333 = vld [vmem:[%s3 + $0x58] sm:$0xff]
        %v334 = vld [vmem:[%s3 + $0x60] sm:$0xff]
        %v335 = vld [vmem:[%s3 + $0x68] sm:$0xff]
        %v336 = vld [vmem:[%s3 + $0x70] sm:$0xff]
        %v337 = vld [vmem:[%s3 + $0x78] sm:$0xff]
        %v338 = vld [vmem:[%s4] sm:$0xf]
        %s339 = sld [smem:[#allocation2]]
        %vm340 = vcmask 523264
        %v342 = vsel %vm340, %v310, 0
        %344 = vmatprep.subr.mxu0 0.0
        %v345 = vand.u32 %v314, 4294901760
        %346 = vmatpush1.msra.mxu0 %v345
        %347 = vmatprep.subr.mxu0 0.0
        %v348 = vand.u32 %v315, 4294901760
        %349 = vmatpush1.msra.mxu0 %v348
        %350 = vmatprep.subr.mxu0 0.0
        %v351 = vand.u32 %v316, 4294901760
        %352 = vmatpush1.msra.mxu0 %v351
        %353 = vmatprep.subr.mxu0 0.0
        %v354 = vand.u32 %v317, 4294901760
        %355 = vmatpush1.msra.mxu0 %v354
        %356 = vmatprep.subr.mxu0 0.0
        %v357 = vand.u32 %v318, 4294901760
        %358 = vmatpush1.msra.mxu0 %v357
        %359 = vmatprep.subr.mxu0 0.0
        %v360 = vand.u32 %v319, 4294901760
        %361 = vmatpush1.msra.mxu0 %v360
        %362 = vmatprep.subr.mxu0 0.0
        %v363 = vand.u32 %v320, 4294901760
        %364 = vmatpush1.msra.mxu0 %v363
        %365 = vmatprep.subr.mxu0 0.0
        %v366 = vand.u32 %v321, 4294901760
        %367 = vmatpush1.msra.mxu0 %v366
        %368 = vmatprep.subr.mxu0 0.0
        %369 = vmatpush1.msra.mxu0 0.0
        %370 = vmatprep.subr.mxu0 0.0
        %371 = vmatpush1.msra.mxu0 0.0
        %372 = vmatprep.subr.mxu0 0.0
        %373 = vmatpush1.msra.mxu0 0.0
        %374 = vmatprep.subr.mxu0 0.0
        %375 = vmatpush1.msra.mxu0 0.0
        %376 = vmatprep.subr.mxu0 0.0
        %377 = vmatpush1.msra.mxu0 0.0
        %378 = vmatprep.subr.mxu0 0.0
        %379 = vmatpush1.msra.mxu0 0.0
        %380 = vmatprep.subr.mxu0 0.0
        %381 = vmatpush1.msra.mxu0 0.0
        %382 = vmatprep.subr.mxu0 0.0
        %383 = vmatpush1.msra.mxu0 0.0
        %384 = vmatprep.subr.mxu0 0.0
        %385 = vmatpush1.msra.mxu0 0.0
        %386 = vmatprep.subr.mxu0 0.0
        %387 = vmatpush1.msra.mxu0 0.0
        %388 = vmatprep.subr.mxu0 0.0
        %389 = vmatpush1.msra.mxu0 0.0
        %390 = vmatprep.subr.mxu0 0.0
        %391 = vmatpush1.msra.mxu0 0.0
        %392 = vmatprep.subr.mxu0 0.0
        %393 = vmatpush1.msra.mxu0 0.0
        %394 = vmatprep.subr.mxu0 0.0
        %395 = vmatpush1.msra.mxu0 0.0
        %396 = vmatprep.subr.mxu0 0.0
        %397 = vmatpush1.msra.mxu0 0.0
        %398 = vmatprep.subr.mxu0 0.0
        %399 = vmatpush1.msra.mxu0 0.0
        %400 = vmatprep.subr.mxu0 0.0
        %401 = vmatpush1.msra.mxu0 0.0
        %402 = vmatprep.subr.mxu0 0.0
        %403 = vmatpush1.msra.mxu0 0.0
        %404 = vmatprep.subr.mxu0 0.0
        %405 = vmatpush1.msra.mxu0 0.0
        %406 = vmatprep.subr.mxu0 0.0
        %407 = vmatpush1.msra.mxu0 0.0
        %408 = vmatprep.subr.mxu0 0.0
        %409 = vmatpush1.msra.mxu0 0.0
        %410 = vmatprep.subr.mxu0 0.0
        %411 = vmatpush1.msra.mxu0 0.0
        %412 = vmatprep.subr.mxu0 0.0
        %413 = vmatpush1.msra.mxu0 0.0
        %414 = vmatprep.subr.mxu0 0.0
        %415 = vmatpush1.msra.mxu0 0.0
        %416 = vmatprep.mubr.f32.mxu0 0.0
        %v417 = vand.u32 %v342, 4294901760
        %v418 = vsub.f32 %v342, %v417
        %v419 = vand.u32 %v418, 4294901760
        %v420 = vsub.f32 %v418, %v419
        %v421 = vand.u32 %v420, 4294901760
        %422 = vmatmul.mubr.f32.gmra.mrb[0].mxu0 %v421
        %v423 = vpop.f32.mrb[0].mxu0
        %v424 = vadd.f32 0.0, %v423
        %v425 = vpop.f32.mrb[0].mxu0
        %426 = vdwg.mxu0
        %427 = vmatprep.subr.mxu0 0.0
        %v428 = vand.u32 %v314, 4294901760
        %v429 = vsub.f32 %v314, %v428
        %v430 = vand.u32 %v429, 4294901760
        %v431 = vsub.f32 %v429, %v430
        %v432 = vand.u32 %v431, 4294901760
        %433 = vmatpush1.msra.mxu0 %v432
        %434 = vmatprep.subr.mxu0 0.0
        %v435 = vand.u32 %v315, 4294901760
        %v436 = vsub.f32 %v315, %v435
        %v437 = vand.u32 %v436, 4294901760
        %v438 = vsub.f32 %v436, %v437
        %v439 = vand.u32 %v438, 4294901760
        %440 = vmatpush1.msra.mxu0 %v439
        %441 = vmatprep.subr.mxu0 0.0
        %v442 = vand.u32 %v316, 4294901760
        %v443 = vsub.f32 %v316, %v442
        %v444 = vand.u32 %v443, 4294901760
        %v445 = vsub.f32 %v443, %v444
        %v446 = vand.u32 %v445, 4294901760
        %447 = vmatpush1.msra.mxu0 %v446
        %448 = vmatprep.subr.mxu0 0.0
        %v449 = vand.u32 %v317, 4294901760
        %v450 = vsub.f32 %v317, %v449
        %v451 = vand.u32 %v450, 4294901760
        %v452 = vsub.f32 %v450, %v451
        %v453 = vand.u32 %v452, 4294901760
        %454 = vmatpush1.msra.mxu0 %v453
        %455 = vmatprep.subr.mxu0 0.0
        %v456 = vand.u32 %v318, 4294901760
        %v457 = vsub.f32 %v318, %v456
        %v458 = vand.u32 %v457, 4294901760
        %v459 = vsub.f32 %v457, %v458
        %v460 = vand.u32 %v459, 4294901760
        %461 = vmatpush1.msra.mxu0 %v460
        %462 = vmatprep.subr.mxu0 0.0
        %v463 = vand.u32 %v319, 4294901760
        %v464 = vsub.f32 %v319, %v463
        %v465 = vand.u32 %v464, 4294901760
        %v466 = vsub.f32 %v464, %v465
        %v467 = vand.u32 %v466, 4294901760
        %468 = vmatpush1.msra.mxu0 %v467
        %469 = vmatprep.subr.mxu0 0.0
        %v470 = vand.u32 %v320, 4294901760
        %v471 = vsub.f32 %v320, %v470
        %v472 = vand.u32 %v471, 4294901760
        %v473 = vsub.f32 %v471, %v472
        %v474 = vand.u32 %v473, 4294901760
        %475 = vmatpush1.msra.mxu0 %v474
        %476 = vmatprep.subr.mxu0 0.0
        %v477 = vand.u32 %v321, 4294901760
        %v478 = vsub.f32 %v321, %v477
        %v479 = vand.u32 %v478, 4294901760
        %v480 = vsub.f32 %v478, %v479
        %v481 = vand.u32 %v480, 4294901760
        %482 = vmatpush1.msra.mxu0 %v481
        %483 = vmatprep.subr.mxu0 0.0
        %484 = vmatpush1.msra.mxu0 0.0
        %485 = vmatprep.subr.mxu0 0.0
        %486 = vmatpush1.msra.mxu0 0.0
        %487 = vmatprep.subr.mxu0 0.0
        %488 = vmatpush1.msra.mxu0 0.0
        %489 = vmatprep.subr.mxu0 0.0
        %490 = vmatpush1.msra.mxu0 0.0
        %491 = vmatprep.subr.mxu0 0.0
        %492 = vmatpush1.msra.mxu0 0.0
        %493 = vmatprep.subr.mxu0 0.0
        %494 = vmatpush1.msra.mxu0 0.0
        %495 = vmatprep.subr.mxu0 0.0
        %496 = vmatpush1.msra.mxu0 0.0
        %497 = vmatprep.subr.mxu0 0.0
        %498 = vmatpush1.msra.mxu0 0.0
        %499 = vmatprep.subr.mxu0 0.0
        %500 = vmatpush1.msra.mxu0 0.0
        %501 = vmatprep.subr.mxu0 0.0
        %502 = vmatpush1.msra.mxu0 0.0
        %503 = vmatprep.subr.mxu0 0.0
        %504 = vmatpush1.msra.mxu0 0.0
        %505 = vmatprep.subr.mxu0 0.0
        %506 = vmatpush1.msra.mxu0 0.0
        %507 = vmatprep.subr.mxu0 0.0
        %508 = vmatpush1.msra.mxu0 0.0
        %509 = vmatprep.subr.mxu0 0.0
        %510 = vmatpush1.msra.mxu0 0.0
        %511 = vmatprep.subr.mxu0 0.0
        %512 = vmatpush1.msra.mxu0 0.0
        %513 = vmatprep.subr.mxu0 0.0
        %514 = vmatpush1.msra.mxu0 0.0
        %515 = vmatprep.subr.mxu0 0.0
        %516 = vmatpush1.msra.mxu0 0.0
        %517 = vmatprep.subr.mxu0 0.0
        %518 = vmatpush1.msra.mxu0 0.0
        %519 = vmatprep.subr.mxu0 0.0
        %520 = vmatpush1.msra.mxu0 0.0
        %521 = vmatprep.subr.mxu0 0.0
        %522 = vmatpush1.msra.mxu0 0.0
        %523 = vmatprep.subr.mxu0 0.0
        %524 = vmatpush1.msra.mxu0 0.0
        %525 = vmatprep.subr.mxu0 0.0
        %526 = vmatpush1.msra.mxu0 0.0
        %527 = vmatprep.subr.mxu0 0.0
        %528 = vmatpush1.msra.mxu0 0.0
        %529 = vmatprep.subr.mxu0 0.0
        %530 = vmatpush1.msra.mxu0 0.0
        %531 = vmatprep.mubr.f32.mxu0 0.0
        %v532 = vand.u32 %v342, 4294901760
        %533 = vmatmul.mubr.f32.gmra.mrb[0].mxu0 %v532
        %v534 = vpop.f32.mrb[0].mxu0
        %v535 = vadd.f32 %v424, %v534
        %v536 = vpop.f32.mrb[0].mxu0
        %537 = vdwg.mxu0
        %538 = vmatprep.subr.mxu0 0.0
        %v539 = vand.u32 %v314, 4294901760
        %v540 = vsub.f32 %v314, %v539
        %541 = vmatpush1.msra.mxu0 %v540
        %542 = vmatprep.subr.mxu0 0.0
        %v543 = vand.u32 %v315, 4294901760
        %v544 = vsub.f32 %v315, %v543
        %545 = vmatpush1.msra.mxu0 %v544
        %546 = vmatprep.subr.mxu0 0.0
        %v547 = vand.u32 %v316, 4294901760
        %v548 = vsub.f32 %v316, %v547
        %549 = vmatpush1.msra.mxu0 %v548
        %550 = vmatprep.subr.mxu0 0.0
        %v551 = vand.u32 %v317, 4294901760
        %v552 = vsub.f32 %v317, %v551
        %553 = vmatpush1.msra.mxu0 %v552
        %554 = vmatprep.subr.mxu0 0.0
        %v555 = vand.u32 %v318, 4294901760
        %v556 = vsub.f32 %v318, %v555
        %557 = vmatpush1.msra.mxu0 %v556
        %558 = vmatprep.subr.mxu0 0.0
        %v559 = vand.u32 %v319, 4294901760
        %v560 = vsub.f32 %v319, %v559
        %561 = vmatpush1.msra.mxu0 %v560
        %562 = vmatprep.subr.mxu0 0.0
        %v563 = vand.u32 %v320, 4294901760
        %v564 = vsub.f32 %v320, %v563
        %565 = vmatpush1.msra.mxu0 %v564
        %566 = vmatprep.subr.mxu0 0.0
        %v567 = vand.u32 %v321, 4294901760
        %v568 = vsub.f32 %v321, %v567
        %569 = vmatpush1.msra.mxu0 %v568
        %570 = vmatprep.subr.mxu0 0.0
        %571 = vmatpush1.msra.mxu0 0.0
        %572 = vmatprep.subr.mxu0 0.0
        %573 = vmatpush1.msra.mxu0 0.0
        %574 = vmatprep.subr.mxu0 0.0
        %575 = vmatpush1.msra.mxu0 0.0
        %576 = vmatprep.subr.mxu0 0.0
        %577 = vmatpush1.msra.mxu0 0.0
        %578 = vmatprep.subr.mxu0 0.0
        %579 = vmatpush1.msra.mxu0 0.0
        %580 = vmatprep.subr.mxu0 0.0
        %581 = vmatpush1.msra.mxu0 0.0
        %582 = vmatprep.subr.mxu0 0.0
        %583 = vmatpush1.msra.mxu0 0.0
        %584 = vmatprep.subr.mxu0 0.0
        %585 = vmatpush1.msra.mxu0 0.0
        %586 = vmatprep.subr.mxu0 0.0
        %587 = vmatpush1.msra.mxu0 0.0
        %588 = vmatprep.subr.mxu0 0.0
        %589 = vmatpush1.msra.mxu0 0.0
        %590 = vmatprep.subr.mxu0 0.0
        %591 = vmatpush1.msra.mxu0 0.0
        %592 = vmatprep.subr.mxu0 0.0
        %593 = vmatpush1.msra.mxu0 0.0
        %594 = vmatprep.subr.mxu0 0.0
        %595 = vmatpush1.msra.mxu0 0.0
        %596 = vmatprep.subr.mxu0 0.0
        %597 = vmatpush1.msra.mxu0 0.0
        %598 = vmatprep.subr.mxu0 0.0
        %599 = vmatpush1.msra.mxu0 0.0
        %600 = vmatprep.subr.mxu0 0.0
        %601 = vmatpush1.msra.mxu0 0.0
        %602 = vmatprep.subr.mxu0 0.0
        %603 = vmatpush1.msra.mxu0 0.0
        %604 = vmatprep.subr.mxu0 0.0
        %605 = vmatpush1.msra.mxu0 0.0
        %606 = vmatprep.subr.mxu0 0.0
        %607 = vmatpush1.msra.mxu0 0.0
        %608 = vmatprep.subr.mxu0 0.0
        %609 = vmatpush1.msra.mxu0 0.0
        %610 = vmatprep.subr.mxu0 0.0
        %611 = vmatpush1.msra.mxu0 0.0
        %612 = vmatprep.subr.mxu0 0.0
        %613 = vmatpush1.msra.mxu0 0.0
        %614 = vmatprep.subr.mxu0 0.0
        %615 = vmatpush1.msra.mxu0 0.0
        %616 = vmatprep.subr.mxu0 0.0
        %617 = vmatpush1.msra.mxu0 0.0
        %618 = vmatprep.mubr.f32.mxu0 0.0
        %v619 = vand.u32 %v342, 4294901760
        %v620 = vsub.f32 %v342, %v619
        %621 = vmatmul.mubr.f32.gmra.mrb[0].mxu0 %v620
        %v622 = vpop.f32.mrb[0].mxu0
        %v623 = vadd.f32 %v535, %v622
        %v624 = vpop.f32.mrb[0].mxu0
        %625 = vdwg.mxu0
        %626 = vmatprep.subr.mxu0 0.0
        %v627 = vand.u32 %v314, 4294901760
        %628 = vmatpush1.msra.mxu0 %v627
        %629 = vmatprep.subr.mxu0 0.0
        %v630 = vand.u32 %v315, 4294901760
        %631 = vmatpush1.msra.mxu0 %v630
        %632 = vmatprep.subr.mxu0 0.0
        %v633 = vand.u32 %v316, 4294901760
        %634 = vmatpush1.msra.mxu0 %v633
        %635 = vmatprep.subr.mxu0 0.0
        %v636 = vand.u32 %v317, 4294901760
        %637 = vmatpush1.msra.mxu0 %v636
        %638 = vmatprep.subr.mxu0 0.0
        %v639 = vand.u32 %v318, 4294901760
        %640 = vmatpush1.msra.mxu0 %v639
        %641 = vmatprep.subr.mxu0 0.0
        %v642 = vand.u32 %v319, 4294901760
        %643 = vmatpush1.msra.mxu0 %v642
        %644 = vmatprep.subr.mxu0 0.0
        %v645 = vand.u32 %v320, 4294901760
        %646 = vmatpush1.msra.mxu0 %v645
        %647 = vmatprep.subr.mxu0 0.0
        %v648 = vand.u32 %v321, 4294901760
        %649 = vmatpush1.msra.mxu0 %v648
        %650 = vmatprep.subr.mxu0 0.0
        %651 = vmatpush1.msra.mxu0 0.0
        %652 = vmatprep.subr.mxu0 0.0
        %653 = vmatpush1.msra.mxu0 0.0
        %654 = vmatprep.subr.mxu0 0.0
        %655 = vmatpush1.msra.mxu0 0.0
        %656 = vmatprep.subr.mxu0 0.0
        %657 = vmatpush1.msra.mxu0 0.0
        %658 = vmatprep.subr.mxu0 0.0
        %659 = vmatpush1.msra.mxu0 0.0
        %660 = vmatprep.subr.mxu0 0.0
        %661 = vmatpush1.msra.mxu0 0.0
        %662 = vmatprep.subr.mxu0 0.0
        %663 = vmatpush1.msra.mxu0 0.0
        %664 = vmatprep.subr.mxu0 0.0
        %665 = vmatpush1.msra.mxu0 0.0
        %666 = vmatprep.subr.mxu0 0.0
        %667 = vmatpush1.msra.mxu0 0.0
        %668 = vmatprep.subr.mxu0 0.0
        %669 = vmatpush1.msra.mxu0 0.0
        %670 = vmatprep.subr.mxu0 0.0
        %671 = vmatpush1.msra.mxu0 0.0
        %672 = vmatprep.subr.mxu0 0.0
        %673 = vmatpush1.msra.mxu0 0.0
        %674 = vmatprep.subr.mxu0 0.0
        %675 = vmatpush1.msra.mxu0 0.0
        %676 = vmatprep.subr.mxu0 0.0
        %677 = vmatpush1.msra.mxu0 0.0
        %678 = vmatprep.subr.mxu0 0.0
        %679 = vmatpush1.msra.mxu0 0.0
        %680 = vmatprep.subr.mxu0 0.0
        %681 = vmatpush1.msra.mxu0 0.0
        %682 = vmatprep.subr.mxu0 0.0
        %683 = vmatpush1.msra.mxu0 0.0
        %684 = vmatprep.subr.mxu0 0.0
        %685 = vmatpush1.msra.mxu0 0.0
        %686 = vmatprep.subr.mxu0 0.0
        %687 = vmatpush1.msra.mxu0 0.0
        %688 = vmatprep.subr.mxu0 0.0
        %689 = vmatpush1.msra.mxu0 0.0
        %690 = vmatprep.subr.mxu0 0.0
        %691 = vmatpush1.msra.mxu0 0.0
        %692 = vmatprep.subr.mxu0 0.0
        %693 = vmatpush1.msra.mxu0 0.0
        %694 = vmatprep.subr.mxu0 0.0
        %695 = vmatpush1.msra.mxu0 0.0
        %696 = vmatprep.subr.mxu0 0.0
        %697 = vmatpush1.msra.mxu0 0.0
        %698 = vmatprep.mubr.f32.mxu0 0.0
        %v699 = vand.u32 %v342, 4294901760
        %v700 = vsub.f32 %v342, %v699
        %v701 = vand.u32 %v700, 4294901760
        %702 = vmatmul.mubr.f32.gmra.mrb[0].mxu0 %v701
        %v703 = vpop.f32.mrb[0].mxu0
        %v704 = vadd.f32 %v623, %v703
        %v705 = vpop.f32.mrb[0].mxu0
        %706 = vdwg.mxu0
        %707 = vmatprep.subr.mxu0 0.0
        %v708 = vand.u32 %v314, 4294901760
        %v709 = vsub.f32 %v314, %v708
        %v710 = vand.u32 %v709, 4294901760
        %711 = vmatpush1.msra.mxu0 %v710
        %712 = vmatprep.subr.mxu0 0.0
        %v713 = vand.u32 %v315, 4294901760
        %v714 = vsub.f32 %v315, %v713
        %v715 = vand.u32 %v714, 4294901760
        %716 = vmatpush1.msra.mxu0 %v715
        %717 = vmatprep.subr.mxu0 0.0
        %v718 = vand.u32 %v316, 4294901760
        %v719 = vsub.f32 %v316, %v718
        %v720 = vand.u32 %v719, 4294901760
        %721 = vmatpush1.msra.mxu0 %v720
        %722 = vmatprep.subr.mxu0 0.0
        %v723 = vand.u32 %v317, 4294901760
        %v724 = vsub.f32 %v317, %v723
        %v725 = vand.u32 %v724, 4294901760
        %726 = vmatpush1.msra.mxu0 %v725
        %727 = vmatprep.subr.mxu0 0.0
        %v728 = vand.u32 %v318, 4294901760
        %v729 = vsub.f32 %v318, %v728
        %v730 = vand.u32 %v729, 4294901760
        %731 = vmatpush1.msra.mxu0 %v730
        %732 = vmatprep.subr.mxu0 0.0
        %v733 = vand.u32 %v319, 4294901760
        %v734 = vsub.f32 %v319, %v733
        %v735 = vand.u32 %v734, 4294901760
        %736 = vmatpush1.msra.mxu0 %v735
        %737 = vmatprep.subr.mxu0 0.0
        %v738 = vand.u32 %v320, 4294901760
        %v739 = vsub.f32 %v320, %v738
        %v740 = vand.u32 %v739, 4294901760
        %741 = vmatpush1.msra.mxu0 %v740
        %742 = vmatprep.subr.mxu0 0.0
        %v743 = vand.u32 %v321, 4294901760
        %v744 = vsub.f32 %v321, %v743
        %v745 = vand.u32 %v744, 4294901760
        %746 = vmatpush1.msra.mxu0 %v745
        %747 = vmatprep.subr.mxu0 0.0
        %748 = vmatpush1.msra.mxu0 0.0
        %749 = vmatprep.subr.mxu0 0.0
        %750 = vmatpush1.msra.mxu0 0.0
        %751 = vmatprep.subr.mxu0 0.0
        %752 = vmatpush1.msra.mxu0 0.0
        %753 = vmatprep.subr.mxu0 0.0
        %754 = vmatpush1.msra.mxu0 0.0
        %755 = vmatprep.subr.mxu0 0.0
        %756 = vmatpush1.msra.mxu0 0.0
        %757 = vmatprep.subr.mxu0 0.0
        %758 = vmatpush1.msra.mxu0 0.0
        %759 = vmatprep.subr.mxu0 0.0
        %760 = vmatpush1.msra.mxu0 0.0
        %761 = vmatprep.subr.mxu0 0.0
        %762 = vmatpush1.msra.mxu0 0.0
        %763 = vmatprep.subr.mxu0 0.0
        %764 = vmatpush1.msra.mxu0 0.0
        %765 = vmatprep.subr.mxu0 0.0
        %766 = vmatpush1.msra.mxu0 0.0
        %767 = vmatprep.subr.mxu0 0.0
        %768 = vmatpush1.msra.mxu0 0.0
        %769 = vmatprep.subr.mxu0 0.0
        %770 = vmatpush1.msra.mxu0 0.0
        %771 = vmatprep.subr.mxu0 0.0
        %772 = vmatpush1.msra.mxu0 0.0
        %773 = vmatprep.subr.mxu0 0.0
        %774 = vmatpush1.msra.mxu0 0.0
        %775 = vmatprep.subr.mxu0 0.0
        %776 = vmatpush1.msra.mxu0 0.0
        %777 = vmatprep.subr.mxu0 0.0
        %778 = vmatpush1.msra.mxu0 0.0
        %779 = vmatprep.subr.mxu0 0.0
        %780 = vmatpush1.msra.mxu0 0.0
        %781 = vmatprep.subr.mxu0 0.0
        %782 = vmatpush1.msra.mxu0 0.0
        %783 = vmatprep.subr.mxu0 0.0
        %784 = vmatpush1.msra.mxu0 0.0
        %785 = vmatprep.subr.mxu0 0.0
        %786 = vmatpush1.msra.mxu0 0.0
        %787 = vmatprep.subr.mxu0 0.0
        %788 = vmatpush1.msra.mxu0 0.0
        %789 = vmatprep.subr.mxu0 0.0
        %790 = vmatpush1.msra.mxu0 0.0
        %791 = vmatprep.subr.mxu0 0.0
        %792 = vmatpush1.msra.mxu0 0.0
        %793 = vmatprep.subr.mxu0 0.0
        %794 = vmatpush1.msra.mxu0 0.0
        %795 = vmatprep.mubr.f32.mxu0 0.0
        %v796 = vand.u32 %v342, 4294901760
        %797 = vmatmul.mubr.f32.gmra.mrb[0].mxu0 %v796
        %v798 = vpop.f32.mrb[0].mxu0
        %v799 = vadd.f32 %v704, %v798
        %v800 = vpop.f32.mrb[0].mxu0
        %801 = vdwg.mxu0
        %802 = vmatprep.subr.mxu0 0.0
        %v803 = vand.u32 %v314, 4294901760
        %804 = vmatpush1.msra.mxu0 %v803
        %805 = vmatprep.subr.mxu0 0.0
        %v806 = vand.u32 %v315, 4294901760
        %807 = vmatpush1.msra.mxu0 %v806
        %808 = vmatprep.subr.mxu0 0.0
        %v809 = vand.u32 %v316, 4294901760
        %810 = vmatpush1.msra.mxu0 %v809
        %811 = vmatprep.subr.mxu0 0.0
        %v812 = vand.u32 %v317, 4294901760
        %813 = vmatpush1.msra.mxu0 %v812
        %814 = vmatprep.subr.mxu0 0.0
        %v815 = vand.u32 %v318, 4294901760
        %816 = vmatpush1.msra.mxu0 %v815
        %817 = vmatprep.subr.mxu0 0.0
        %v818 = vand.u32 %v319, 4294901760
        %819 = vmatpush1.msra.mxu0 %v818
        %820 = vmatprep.subr.mxu0 0.0
        %v821 = vand.u32 %v320, 4294901760
        %822 = vmatpush1.msra.mxu0 %v821
        %823 = vmatprep.subr.mxu0 0.0
        %v824 = vand.u32 %v321, 4294901760
        %825 = vmatpush1.msra.mxu0 %v824
        %826 = vmatprep.subr.mxu0 0.0
        %827 = vmatpush1.msra.mxu0 0.0
        %828 = vmatprep.subr.mxu0 0.0
        %829 = vmatpush1.msra.mxu0 0.0
        %830 = vmatprep.subr.mxu0 0.0
        %831 = vmatpush1.msra.mxu0 0.0
        %832 = vmatprep.subr.mxu0 0.0
        %833 = vmatpush1.msra.mxu0 0.0
        %834 = vmatprep.subr.mxu0 0.0
        %835 = vmatpush1.msra.mxu0 0.0
        %836 = vmatprep.subr.mxu0 0.0
        %837 = vmatpush1.msra.mxu0 0.0
        %838 = vmatprep.subr.mxu0 0.0
        %839 = vmatpush1.msra.mxu0 0.0
        %840 = vmatprep.subr.mxu0 0.0
        %841 = vmatpush1.msra.mxu0 0.0
        %842 = vmatprep.subr.mxu0 0.0
        %843 = vmatpush1.msra.mxu0 0.0
        %844 = vmatprep.subr.mxu0 0.0
        %845 = vmatpush1.msra.mxu0 0.0
        %846 = vmatprep.subr.mxu0 0.0
        %847 = vmatpush1.msra.mxu0 0.0
        %848 = vmatprep.subr.mxu0 0.0
        %849 = vmatpush1.msra.mxu0 0.0
        %850 = vmatprep.subr.mxu0 0.0
        %851 = vmatpush1.msra.mxu0 0.0
        %852 = vmatprep.subr.mxu0 0.0
        %853 = vmatpush1.msra.mxu0 0.0
        %854 = vmatprep.subr.mxu0 0.0
        %855 = vmatpush1.msra.mxu0 0.0
        %856 = vmatprep.subr.mxu0 0.0
        %857 = vmatpush1.msra.mxu0 0.0
        %858 = vmatprep.subr.mxu0 0.0
        %859 = vmatpush1.msra.mxu0 0.0
        %860 = vmatprep.subr.mxu0 0.0
        %861 = vmatpush1.msra.mxu0 0.0
        %862 = vmatprep.subr.mxu0 0.0
        %863 = vmatpush1.msra.mxu0 0.0
        %864 = vmatprep.subr.mxu0 0.0
        %865 = vmatpush1.msra.mxu0 0.0
        %866 = vmatprep.subr.mxu0 0.0
        %867 = vmatpush1.msra.mxu0 0.0
        %868 = vmatprep.subr.mxu0 0.0
        %869 = vmatpush1.msra.mxu0 0.0
        %870 = vmatprep.subr.mxu0 0.0
        %871 = vmatpush1.msra.mxu0 0.0
        %872 = vmatprep.subr.mxu0 0.0
        %873 = vmatpush1.msra.mxu0 0.0
        %874 = vmatprep.mubr.f32.mxu0 0.0
        %v875 = vand.u32 %v342, 4294901760
        %876 = vmatmul.mubr.f32.gmra.mrb[0].mxu0 %v875
        %v877 = vpop.f32.mrb[0].mxu0
        %v878 = vadd.f32 %v799, %v877
        %v879 = vpop.f32.mrb[0].mxu0
        %880 = vdwg.mxu0
        %881 = vmatprep.subr.mxu0 0.0
        %v882 = vand.u32 %v322, 4294901760
        %883 = vmatpush1.msra.mxu0 %v882
        %884 = vmatprep.subr.mxu0 0.0
        %v885 = vand.u32 %v323, 4294901760
        %886 = vmatpush1.msra.mxu0 %v885
        %887 = vmatprep.subr.mxu0 0.0
        %v888 = vand.u32 %v324, 4294901760
        %889 = vmatpush1.msra.mxu0 %v888
        %890 = vmatprep.subr.mxu0 0.0
        %v891 = vand.u32 %v325, 4294901760
        %892 = vmatpush1.msra.mxu0 %v891
        %893 = vmatprep.subr.mxu0 0.0
        %v894 = vand.u32 %v326, 4294901760
        %895 = vmatpush1.msra.mxu0 %v894
        %896 = vmatprep.subr.mxu0 0.0
        %v897 = vand.u32 %v327, 4294901760
        %898 = vmatpush1.msra.mxu0 %v897
        %899 = vmatprep.subr.mxu0 0.0
        %v900 = vand.u32 %v328, 4294901760
        %901 = vmatpush1.msra.mxu0 %v900
        %902 = vmatprep.subr.mxu0 0.0
        %v903 = vand.u32 %v329, 4294901760
        %904 = vmatpush1.msra.mxu0 %v903
        %905 = vmatprep.subr.mxu0 0.0
        %v906 = vand.u32 %v330, 4294901760
        %907 = vmatpush1.msra.mxu0 %v906
        %908 = vmatprep.subr.mxu0 0.0
        %v909 = vand.u32 %v331, 4294901760
        %910 = vmatpush1.msra.mxu0 %v909
        %911 = vmatprep.subr.mxu0 0.0
        %v912 = vand.u32 %v332, 4294901760
        %913 = vmatpush1.msra.mxu0 %v912
        %914 = vmatprep.subr.mxu0 0.0
        %v915 = vand.u32 %v333, 4294901760
        %916 = vmatpush1.msra.mxu0 %v915
        %917 = vmatprep.subr.mxu0 0.0
        %v918 = vand.u32 %v334, 4294901760
        %919 = vmatpush1.msra.mxu0 %v918
        %920 = vmatprep.subr.mxu0 0.0
        %v921 = vand.u32 %v335, 4294901760
        %922 = vmatpush1.msra.mxu0 %v921
        %923 = vmatprep.subr.mxu0 0.0
        %v924 = vand.u32 %v336, 4294901760
        %925 = vmatpush1.msra.mxu0 %v924
        %926 = vmatprep.subr.mxu0 0.0
        %v927 = vand.u32 %v337, 4294901760
        %928 = vmatpush1.msra.mxu0 %v927
        %929 = vmatprep.subr.mxu0 0.0
        %930 = vmatpush1.msra.mxu0 0.0
        %931 = vmatprep.subr.mxu0 0.0
        %932 = vmatpush1.msra.mxu0 0.0
        %933 = vmatprep.subr.mxu0 0.0
        %934 = vmatpush1.msra.mxu0 0.0
        %935 = vmatprep.subr.mxu0 0.0
        %936 = vmatpush1.msra.mxu0 0.0
        %937 = vmatprep.subr.mxu0 0.0
        %938 = vmatpush1.msra.mxu0 0.0
        %939 = vmatprep.subr.mxu0 0.0
        %940 = vmatpush1.msra.mxu0 0.0
        %941 = vmatprep.subr.mxu0 0.0
        %942 = vmatpush1.msra.mxu0 0.0
        %943 = vmatprep.subr.mxu0 0.0
        %944 = vmatpush1.msra.mxu0 0.0
        %945 = vmatprep.subr.mxu0 0.0
        %946 = vmatpush1.msra.mxu0 0.0
        %947 = vmatprep.subr.mxu0 0.0
        %948 = vmatpush1.msra.mxu0 0.0
        %949 = vmatprep.subr.mxu0 0.0
        %950 = vmatpush1.msra.mxu0 0.0
        %951 = vmatprep.subr.mxu0 0.0
        %952 = vmatpush1.msra.mxu0 0.0
        %953 = vmatprep.subr.mxu0 0.0
        %954 = vmatpush1.msra.mxu0 0.0
        %955 = vmatprep.subr.mxu0 0.0
        %956 = vmatpush1.msra.mxu0 0.0
        %957 = vmatprep.subr.mxu0 0.0
        %958 = vmatpush1.msra.mxu0 0.0
        %959 = vmatprep.subr.mxu0 0.0
        %960 = vmatpush1.msra.mxu0 0.0
        %961 = vmatprep.mubr.f32.mxu0 0.0
        %v962 = vand.u32 %v311, 4294901760
        %v963 = vsub.f32 %v311, %v962
        %v964 = vand.u32 %v963, 4294901760
        %v965 = vsub.f32 %v963, %v964
        %v966 = vand.u32 %v965, 4294901760
        %967 = vmatmul.mubr.f32.gmra.mrb[0].mxu0 %v966
        %v968 = vpop.f32.mrb[0].mxu0
        %v969 = vadd.f32 %v878, %v968
        %v970 = vpop.f32.mrb[0].mxu0
        %971 = vdwg.mxu0
        %972 = vmatprep.subr.mxu0 0.0
        %v973 = vand.u32 %v322, 4294901760
        %v974 = vsub.f32 %v322, %v973
        %v975 = vand.u32 %v974, 4294901760
        %v976 = vsub.f32 %v974, %v975
        %v977 = vand.u32 %v976, 4294901760
        %978 = vmatpush1.msra.mxu0 %v977
        %979 = vmatprep.subr.mxu0 0.0
        %v980 = vand.u32 %v323, 4294901760
        %v981 = vsub.f32 %v323, %v980
        %v982 = vand.u32 %v981, 4294901760
        %v983 = vsub.f32 %v981, %v982
        %v984 = vand.u32 %v983, 4294901760
        %985 = vmatpush1.msra.mxu0 %v984
        %986 = vmatprep.subr.mxu0 0.0
        %v987 = vand.u32 %v324, 4294901760
        %v988 = vsub.f32 %v324, %v987
        %v989 = vand.u32 %v988, 4294901760
        %v990 = vsub.f32 %v988, %v989
        %v991 = vand.u32 %v990, 4294901760
        %992 = vmatpush1.msra.mxu0 %v991
        %993 = vmatprep.subr.mxu0 0.0
        %v994 = vand.u32 %v325, 4294901760
        %v995 = vsub.f32 %v325, %v994
        %v996 = vand.u32 %v995, 4294901760
        %v997 = vsub.f32 %v995, %v996
        %v998 = vand.u32 %v997, 4294901760
        %999 = vmatpush1.msra.mxu0 %v998
        %1000 = vmatprep.subr.mxu0 0.0
        %v1001 = vand.u32 %v326, 4294901760
        %v1002 = vsub.f32 %v326, %v1001
        %v1003 = vand.u32 %v1002, 4294901760
        %v1004 = vsub.f32 %v1002, %v1003
        %v1005 = vand.u32 %v1004, 4294901760
        %1006 = vmatpush1.msra.mxu0 %v1005
        %1007 = vmatprep.subr.mxu0 0.0
        %v1008 = vand.u32 %v327, 4294901760
        %v1009 = vsub.f32 %v327, %v1008
        %v1010 = vand.u32 %v1009, 4294901760
        %v1011 = vsub.f32 %v1009, %v1010
        %v1012 = vand.u32 %v1011, 4294901760
        %1013 = vmatpush1.msra.mxu0 %v1012
        %1014 = vmatprep.subr.mxu0 0.0
        %v1015 = vand.u32 %v328, 4294901760
        %v1016 = vsub.f32 %v328, %v1015
        %v1017 = vand.u32 %v1016, 4294901760
        %v1018 = vsub.f32 %v1016, %v1017
        %v1019 = vand.u32 %v1018, 4294901760
        %1020 = vmatpush1.msra.mxu0 %v1019
        %1021 = vmatprep.subr.mxu0 0.0
        %v1022 = vand.u32 %v329, 4294901760
        %v1023 = vsub.f32 %v329, %v1022
        %v1024 = vand.u32 %v1023, 4294901760
        %v1025 = vsub.f32 %v1023, %v1024
        %v1026 = vand.u32 %v1025, 4294901760
        %1027 = vmatpush1.msra.mxu0 %v1026
        %1028 = vmatprep.subr.mxu0 0.0
        %v1029 = vand.u32 %v330, 4294901760
        %v1030 = vsub.f32 %v330, %v1029
        %v1031 = vand.u32 %v1030, 4294901760
        %v1032 = vsub.f32 %v1030, %v1031
        %v1033 = vand.u32 %v1032, 4294901760
        %1034 = vmatpush1.msra.mxu0 %v1033
        %1035 = vmatprep.subr.mxu0 0.0
        %v1036 = vand.u32 %v331, 4294901760
        %v1037 = vsub.f32 %v331, %v1036
        %v1038 = vand.u32 %v1037, 4294901760
        %v1039 = vsub.f32 %v1037, %v1038
        %v1040 = vand.u32 %v1039, 4294901760
        %1041 = vmatpush1.msra.mxu0 %v1040
        %1042 = vmatprep.subr.mxu0 0.0
        %v1043 = vand.u32 %v332, 4294901760
        %v1044 = vsub.f32 %v332, %v1043
        %v1045 = vand.u32 %v1044, 4294901760
        %v1046 = vsub.f32 %v1044, %v1045
        %v1047 = vand.u32 %v1046, 4294901760
        %1048 = vmatpush1.msra.mxu0 %v1047
        %1049 = vmatprep.subr.mxu0 0.0
        %v1050 = vand.u32 %v333, 4294901760
        %v1051 = vsub.f32 %v333, %v1050
        %v1052 = vand.u32 %v1051, 4294901760
        %v1053 = vsub.f32 %v1051, %v1052
        %v1054 = vand.u32 %v1053, 4294901760
        %1055 = vmatpush1.msra.mxu0 %v1054
        %1056 = vmatprep.subr.mxu0 0.0
        %v1057 = vand.u32 %v334, 4294901760
        %v1058 = vsub.f32 %v334, %v1057
        %v1059 = vand.u32 %v1058, 4294901760
        %v1060 = vsub.f32 %v1058, %v1059
        %v1061 = vand.u32 %v1060, 4294901760
        %1062 = vmatpush1.msra.mxu0 %v1061
        %1063 = vmatprep.subr.mxu0 0.0
        %v1064 = vand.u32 %v335, 4294901760
        %v1065 = vsub.f32 %v335, %v1064
        %v1066 = vand.u32 %v1065, 4294901760
        %v1067 = vsub.f32 %v1065, %v1066
        %v1068 = vand.u32 %v1067, 4294901760
        %1069 = vmatpush1.msra.mxu0 %v1068
        %1070 = vmatprep.subr.mxu0 0.0
        %v1071 = vand.u32 %v336, 4294901760
        %v1072 = vsub.f32 %v336, %v1071
        %v1073 = vand.u32 %v1072, 4294901760
        %v1074 = vsub.f32 %v1072, %v1073
        %v1075 = vand.u32 %v1074, 4294901760
        %1076 = vmatpush1.msra.mxu0 %v1075
        %1077 = vmatprep.subr.mxu0 0.0
        %v1078 = vand.u32 %v337, 4294901760
        %v1079 = vsub.f32 %v337, %v1078
        %v1080 = vand.u32 %v1079, 4294901760
        %v1081 = vsub.f32 %v1079, %v1080
        %v1082 = vand.u32 %v1081, 4294901760
        %1083 = vmatpush1.msra.mxu0 %v1082
        %1084 = vmatprep.subr.mxu0 0.0
        %1085 = vmatpush1.msra.mxu0 0.0
        %1086 = vmatprep.subr.mxu0 0.0
        %1087 = vmatpush1.msra.mxu0 0.0
        %1088 = vmatprep.subr.mxu0 0.0
        %1089 = vmatpush1.msra.mxu0 0.0
        %1090 = vmatprep.subr.mxu0 0.0
        %1091 = vmatpush1.msra.mxu0 0.0
        %1092 = vmatprep.subr.mxu0 0.0
        %1093 = vmatpush1.msra.mxu0 0.0
        %1094 = vmatprep.subr.mxu0 0.0
        %1095 = vmatpush1.msra.mxu0 0.0
        %1096 = vmatprep.subr.mxu0 0.0
        %1097 = vmatpush1.msra.mxu0 0.0
        %1098 = vmatprep.subr.mxu0 0.0
        %1099 = vmatpush1.msra.mxu0 0.0
        %1100 = vmatprep.subr.mxu0 0.0
        %1101 = vmatpush1.msra.mxu0 0.0
        %1102 = vmatprep.subr.mxu0 0.0
        %1103 = vmatpush1.msra.mxu0 0.0
        %1104 = vmatprep.subr.mxu0 0.0
        %1105 = vmatpush1.msra.mxu0 0.0
        %1106 = vmatprep.subr.mxu0 0.0
        %1107 = vmatpush1.msra.mxu0 0.0
        %1108 = vmatprep.subr.mxu0 0.0
        %1109 = vmatpush1.msra.mxu0 0.0
        %1110 = vmatprep.subr.mxu0 0.0
        %1111 = vmatpush1.msra.mxu0 0.0
        %1112 = vmatprep.subr.mxu0 0.0
        %1113 = vmatpush1.msra.mxu0 0.0
        %1114 = vmatprep.subr.mxu0 0.0
        %1115 = vmatpush1.msra.mxu0 0.0
        %1116 = vmatprep.mubr.f32.mxu0 0.0
        %v1117 = vand.u32 %v311, 4294901760
        %1118 = vmatmul.mubr.f32.gmra.mrb[0].mxu0 %v1117
        %v1119 = vpop.f32.mrb[0].mxu0
        %v1120 = vadd.f32 %v969, %v1119
        %v1121 = vpop.f32.mrb[0].mxu0
        %1122 = vdwg.mxu0
        %1123 = vmatprep.subr.mxu0 0.0
        %v1124 = vand.u32 %v322, 4294901760
        %v1125 = vsub.f32 %v322, %v1124
        %1126 = vmatpush1.msra.mxu0 %v1125
        %1127 = vmatprep.subr.mxu0 0.0
        %v1128 = vand.u32 %v323, 4294901760
        %v1129 = vsub.f32 %v323, %v1128
        %1130 = vmatpush1.msra.mxu0 %v1129
        %1131 = vmatprep.subr.mxu0 0.0
        %v1132 = vand.u32 %v324, 4294901760
        %v1133 = vsub.f32 %v324, %v1132
        %1134 = vmatpush1.msra.mxu0 %v1133
        %1135 = vmatprep.subr.mxu0 0.0
        %v1136 = vand.u32 %v325, 4294901760
        %v1137 = vsub.f32 %v325, %v1136
        %1138 = vmatpush1.msra.mxu0 %v1137
        %1139 = vmatprep.subr.mxu0 0.0
        %v1140 = vand.u32 %v326, 4294901760
        %v1141 = vsub.f32 %v326, %v1140
        %1142 = vmatpush1.msra.mxu0 %v1141
        %1143 = vmatprep.subr.mxu0 0.0
        %v1144 = vand.u32 %v327, 4294901760
        %v1145 = vsub.f32 %v327, %v1144
        %1146 = vmatpush1.msra.mxu0 %v1145
        %1147 = vmatprep.subr.mxu0 0.0
        %v1148 = vand.u32 %v328, 4294901760
        %v1149 = vsub.f32 %v328, %v1148
        %1150 = vmatpush1.msra.mxu0 %v1149
        %1151 = vmatprep.subr.mxu0 0.0
        %v1152 = vand.u32 %v329, 4294901760
        %v1153 = vsub.f32 %v329, %v1152
        %1154 = vmatpush1.msra.mxu0 %v1153
        %1155 = vmatprep.subr.mxu0 0.0
        %v1156 = vand.u32 %v330, 4294901760
        %v1157 = vsub.f32 %v330, %v1156
        %1158 = vmatpush1.msra.mxu0 %v1157
        %1159 = vmatprep.subr.mxu0 0.0
        %v1160 = vand.u32 %v331, 4294901760
        %v1161 = vsub.f32 %v331, %v1160
        %1162 = vmatpush1.msra.mxu0 %v1161
        %1163 = vmatprep.subr.mxu0 0.0
        %v1164 = vand.u32 %v332, 4294901760
        %v1165 = vsub.f32 %v332, %v1164
        %1166 = vmatpush1.msra.mxu0 %v1165
        %1167 = vmatprep.subr.mxu0 0.0
        %v1168 = vand.u32 %v333, 4294901760
        %v1169 = vsub.f32 %v333, %v1168
        %1170 = vmatpush1.msra.mxu0 %v1169
        %1171 = vmatprep.subr.mxu0 0.0
        %v1172 = vand.u32 %v334, 4294901760
        %v1173 = vsub.f32 %v334, %v1172
        %1174 = vmatpush1.msra.mxu0 %v1173
        %1175 = vmatprep.subr.mxu0 0.0
        %v1176 = vand.u32 %v335, 4294901760
        %v1177 = vsub.f32 %v335, %v1176
        %1178 = vmatpush1.msra.mxu0 %v1177
        %1179 = vmatprep.subr.mxu0 0.0
        %v1180 = vand.u32 %v336, 4294901760
        %v1181 = vsub.f32 %v336, %v1180
        %1182 = vmatpush1.msra.mxu0 %v1181
        %1183 = vmatprep.subr.mxu0 0.0
        %v1184 = vand.u32 %v337, 4294901760
        %v1185 = vsub.f32 %v337, %v1184
        %1186 = vmatpush1.msra.mxu0 %v1185
        %1187 = vmatprep.subr.mxu0 0.0
        %1188 = vmatpush1.msra.mxu0 0.0
        %1189 = vmatprep.subr.mxu0 0.0
        %1190 = vmatpush1.msra.mxu0 0.0
        %1191 = vmatprep.subr.mxu0 0.0
        %1192 = vmatpush1.msra.mxu0 0.0
        %1193 = vmatprep.subr.mxu0 0.0
        %1194 = vmatpush1.msra.mxu0 0.0
        %1195 = vmatprep.subr.mxu0 0.0
        %1196 = vmatpush1.msra.mxu0 0.0
        %1197 = vmatprep.subr.mxu0 0.0
        %1198 = vmatpush1.msra.mxu0 0.0
        %1199 = vmatprep.subr.mxu0 0.0
        %1200 = vmatpush1.msra.mxu0 0.0
        %1201 = vmatprep.subr.mxu0 0.0
        %1202 = vmatpush1.msra.mxu0 0.0
        %1203 = vmatprep.subr.mxu0 0.0
        %1204 = vmatpush1.msra.mxu0 0.0
        %1205 = vmatprep.subr.mxu0 0.0
        %1206 = vmatpush1.msra.mxu0 0.0
        %1207 = vmatprep.subr.mxu0 0.0
        %1208 = vmatpush1.msra.mxu0 0.0
        %1209 = vmatprep.subr.mxu0 0.0
        %1210 = vmatpush1.msra.mxu0 0.0
        %1211 = vmatprep.subr.mxu0 0.0
        %1212 = vmatpush1.msra.mxu0 0.0
        %1213 = vmatprep.subr.mxu0 0.0
        %1214 = vmatpush1.msra.mxu0 0.0
        %1215 = vmatprep.subr.mxu0 0.0
        %1216 = vmatpush1.msra.mxu0 0.0
        %1217 = vmatprep.subr.mxu0 0.0
        %1218 = vmatpush1.msra.mxu0 0.0
        %1219 = vmatprep.mubr.f32.mxu0 0.0
        %v1220 = vand.u32 %v311, 4294901760
        %v1221 = vsub.f32 %v311, %v1220
        %1222 = vmatmul.mubr.f32.gmra.mrb[0].mxu0 %v1221
        %v1223 = vpop.f32.mrb[0].mxu0
        %v1224 = vadd.f32 %v1120, %v1223
        %v1225 = vpop.f32.mrb[0].mxu0
        %1226 = vdwg.mxu0
        %1227 = vmatprep.subr.mxu0 0.0
        %v1228 = vand.u32 %v322, 4294901760
        %1229 = vmatpush1.msra.mxu0 %v1228
        %1230 = vmatprep.subr.mxu0 0.0
        %v1231 = vand.u32 %v323, 4294901760
        %1232 = vmatpush1.msra.mxu0 %v1231
        %1233 = vmatprep.subr.mxu0 0.0
        %v1234 = vand.u32 %v324, 4294901760
        %1235 = vmatpush1.msra.mxu0 %v1234
        %1236 = vmatprep.subr.mxu0 0.0
        %v1237 = vand.u32 %v325, 4294901760
        %1238 = vmatpush1.msra.mxu0 %v1237
        %1239 = vmatprep.subr.mxu0 0.0
        %v1240 = vand.u32 %v326, 4294901760
        %1241 = vmatpush1.msra.mxu0 %v1240
        %1242 = vmatprep.subr.mxu0 0.0
        %v1243 = vand.u32 %v327, 4294901760
        %1244 = vmatpush1.msra.mxu0 %v1243
        %1245 = vmatprep.subr.mxu0 0.0
        %v1246 = vand.u32 %v328, 4294901760
        %1247 = vmatpush1.msra.mxu0 %v1246
        %1248 = vmatprep.subr.mxu0 0.0
        %v1249 = vand.u32 %v329, 4294901760
        %1250 = vmatpush1.msra.mxu0 %v1249
        %1251 = vmatprep.subr.mxu0 0.0
        %v1252 = vand.u32 %v330, 4294901760
        %1253 = vmatpush1.msra.mxu0 %v1252
        %1254 = vmatprep.subr.mxu0 0.0
        %v1255 = vand.u32 %v331, 4294901760
        %1256 = vmatpush1.msra.mxu0 %v1255
        %1257 = vmatprep.subr.mxu0 0.0
        %v1258 = vand.u32 %v332, 4294901760
        %1259 = vmatpush1.msra.mxu0 %v1258
        %1260 = vmatprep.subr.mxu0 0.0
        %v1261 = vand.u32 %v333, 4294901760
        %1262 = vmatpush1.msra.mxu0 %v1261
        %1263 = vmatprep.subr.mxu0 0.0
        %v1264 = vand.u32 %v334, 4294901760
        %1265 = vmatpush1.msra.mxu0 %v1264
        %1266 = vmatprep.subr.mxu0 0.0
        %v1267 = vand.u32 %v335, 4294901760
        %1268 = vmatpush1.msra.mxu0 %v1267
        %1269 = vmatprep.subr.mxu0 0.0
        %v1270 = vand.u32 %v336, 4294901760
        %1271 = vmatpush1.msra.mxu0 %v1270
        %1272 = vmatprep.subr.mxu0 0.0
        %v1273 = vand.u32 %v337, 4294901760
        %1274 = vmatpush1.msra.mxu0 %v1273
        %1275 = vmatprep.subr.mxu0 0.0
        %1276 = vmatpush1.msra.mxu0 0.0
        %1277 = vmatprep.subr.mxu0 0.0
        %1278 = vmatpush1.msra.mxu0 0.0
        %1279 = vmatprep.subr.mxu0 0.0
        %1280 = vmatpush1.msra.mxu0 0.0
        %1281 = vmatprep.subr.mxu0 0.0
        %1282 = vmatpush1.msra.mxu0 0.0
        %1283 = vmatprep.subr.mxu0 0.0
        %1284 = vmatpush1.msra.mxu0 0.0
        %1285 = vmatprep.subr.mxu0 0.0
        %1286 = vmatpush1.msra.mxu0 0.0
        %1287 = vmatprep.subr.mxu0 0.0
        %1288 = vmatpush1.msra.mxu0 0.0
        %1289 = vmatprep.subr.mxu0 0.0
        %1290 = vmatpush1.msra.mxu0 0.0
        %1291 = vmatprep.subr.mxu0 0.0
        %1292 = vmatpush1.msra.mxu0 0.0
        %1293 = vmatprep.subr.mxu0 0.0
        %1294 = vmatpush1.msra.mxu0 0.0
        %1295 = vmatprep.subr.mxu0 0.0
        %1296 = vmatpush1.msra.mxu0 0.0
        %1297 = vmatprep.subr.mxu0 0.0
        %1298 = vmatpush1.msra.mxu0 0.0
        %1299 = vmatprep.subr.mxu0 0.0
        %1300 = vmatpush1.msra.mxu0 0.0
        %1301 = vmatprep.subr.mxu0 0.0
        %1302 = vmatpush1.msra.mxu0 0.0
        %1303 = vmatprep.subr.mxu0 0.0
        %1304 = vmatpush1.msra.mxu0 0.0
        %1305 = vmatprep.subr.mxu0 0.0
        %1306 = vmatpush1.msra.mxu0 0.0
        %1307 = vmatprep.mubr.f32.mxu0 0.0
        %v1308 = vand.u32 %v311, 4294901760
        %v1309 = vsub.f32 %v311, %v1308
        %v1310 = vand.u32 %v1309, 4294901760
        %1311 = vmatmul.mubr.f32.gmra.mrb[0].mxu0 %v1310
        %v1312 = vpop.f32.mrb[0].mxu0
        %v1313 = vadd.f32 %v1224, %v1312
        %v1314 = vpop.f32.mrb[0].mxu0
        %1315 = vdwg.mxu0
        %1316 = vmatprep.subr.mxu0 0.0
        %v1317 = vand.u32 %v322, 4294901760
        %v1318 = vsub.f32 %v322, %v1317
        %v1319 = vand.u32 %v1318, 4294901760
        %1320 = vmatpush1.msra.mxu0 %v1319
        %1321 = vmatprep.subr.mxu0 0.0
        %v1322 = vand.u32 %v323, 4294901760
        %v1323 = vsub.f32 %v323, %v1322
        %v1324 = vand.u32 %v1323, 4294901760
        %1325 = vmatpush1.msra.mxu0 %v1324
        %1326 = vmatprep.subr.mxu0 0.0
        %v1327 = vand.u32 %v324, 4294901760
        %v1328 = vsub.f32 %v324, %v1327
        %v1329 = vand.u32 %v1328, 4294901760
        %1330 = vmatpush1.msra.mxu0 %v1329
        %1331 = vmatprep.subr.mxu0 0.0
        %v1332 = vand.u32 %v325, 4294901760
        %v1333 = vsub.f32 %v325, %v1332
        %v1334 = vand.u32 %v1333, 4294901760
        %1335 = vmatpush1.msra.mxu0 %v1334
        %1336 = vmatprep.subr.mxu0 0.0
        %v1337 = vand.u32 %v326, 4294901760
        %v1338 = vsub.f32 %v326, %v1337
        %v1339 = vand.u32 %v1338, 4294901760
        %1340 = vmatpush1.msra.mxu0 %v1339
        %1341 = vmatprep.subr.mxu0 0.0
        %v1342 = vand.u32 %v327, 4294901760
        %v1343 = vsub.f32 %v327, %v1342
        %v1344 = vand.u32 %v1343, 4294901760
        %1345 = vmatpush1.msra.mxu0 %v1344
        %1346 = vmatprep.subr.mxu0 0.0
        %v1347 = vand.u32 %v328, 4294901760
        %v1348 = vsub.f32 %v328, %v1347
        %v1349 = vand.u32 %v1348, 4294901760
        %1350 = vmatpush1.msra.mxu0 %v1349
        %1351 = vmatprep.subr.mxu0 0.0
        %v1352 = vand.u32 %v329, 4294901760
        %v1353 = vsub.f32 %v329, %v1352
        %v1354 = vand.u32 %v1353, 4294901760
        %1355 = vmatpush1.msra.mxu0 %v1354
        %1356 = vmatprep.subr.mxu0 0.0
        %v1357 = vand.u32 %v330, 4294901760
        %v1358 = vsub.f32 %v330, %v1357
        %v1359 = vand.u32 %v1358, 4294901760
        %1360 = vmatpush1.msra.mxu0 %v1359
        %1361 = vmatprep.subr.mxu0 0.0
        %v1362 = vand.u32 %v331, 4294901760
        %v1363 = vsub.f32 %v331, %v1362
        %v1364 = vand.u32 %v1363, 4294901760
        %1365 = vmatpush1.msra.mxu0 %v1364
        %1366 = vmatprep.subr.mxu0 0.0
        %v1367 = vand.u32 %v332, 4294901760
        %v1368 = vsub.f32 %v332, %v1367
        %v1369 = vand.u32 %v1368, 4294901760
        %1370 = vmatpush1.msra.mxu0 %v1369
        %1371 = vmatprep.subr.mxu0 0.0
        %v1372 = vand.u32 %v333, 4294901760
        %v1373 = vsub.f32 %v333, %v1372
        %v1374 = vand.u32 %v1373, 4294901760
        %1375 = vmatpush1.msra.mxu0 %v1374
        %1376 = vmatprep.subr.mxu0 0.0
        %v1377 = vand.u32 %v334, 4294901760
        %v1378 = vsub.f32 %v334, %v1377
        %v1379 = vand.u32 %v1378, 4294901760
        %1380 = vmatpush1.msra.mxu0 %v1379
        %1381 = vmatprep.subr.mxu0 0.0
        %v1382 = vand.u32 %v335, 4294901760
        %v1383 = vsub.f32 %v335, %v1382
        %v1384 = vand.u32 %v1383, 4294901760
        %1385 = vmatpush1.msra.mxu0 %v1384
        %1386 = vmatprep.subr.mxu0 0.0
        %v1387 = vand.u32 %v336, 4294901760
        %v1388 = vsub.f32 %v336, %v1387
        %v1389 = vand.u32 %v1388, 4294901760
        %1390 = vmatpush1.msra.mxu0 %v1389
        %1391 = vmatprep.subr.mxu0 0.0
        %v1392 = vand.u32 %v337, 4294901760
        %v1393 = vsub.f32 %v337, %v1392
        %v1394 = vand.u32 %v1393, 4294901760
        %1395 = vmatpush1.msra.mxu0 %v1394
        %1396 = vmatprep.subr.mxu0 0.0
        %1397 = vmatpush1.msra.mxu0 0.0
        %1398 = vmatprep.subr.mxu0 0.0
        %1399 = vmatpush1.msra.mxu0 0.0
        %1400 = vmatprep.subr.mxu0 0.0
        %1401 = vmatpush1.msra.mxu0 0.0
        %1402 = vmatprep.subr.mxu0 0.0
        %1403 = vmatpush1.msra.mxu0 0.0
        %1404 = vmatprep.subr.mxu0 0.0
        %1405 = vmatpush1.msra.mxu0 0.0
        %1406 = vmatprep.subr.mxu0 0.0
        %1407 = vmatpush1.msra.mxu0 0.0
        %1408 = vmatprep.subr.mxu0 0.0
        %1409 = vmatpush1.msra.mxu0 0.0
        %1410 = vmatprep.subr.mxu0 0.0
        %1411 = vmatpush1.msra.mxu0 0.0
        %1412 = vmatprep.subr.mxu0 0.0
        %1413 = vmatpush1.msra.mxu0 0.0
        %1414 = vmatprep.subr.mxu0 0.0
        %1415 = vmatpush1.msra.mxu0 0.0
        %1416 = vmatprep.subr.mxu0 0.0
        %1417 = vmatpush1.msra.mxu0 0.0
        %1418 = vmatprep.subr.mxu0 0.0
        %1419 = vmatpush1.msra.mxu0 0.0
        %1420 = vmatprep.subr.mxu0 0.0
        %1421 = vmatpush1.msra.mxu0 0.0
        %1422 = vmatprep.subr.mxu0 0.0
        %1423 = vmatpush1.msra.mxu0 0.0
        %1424 = vmatprep.subr.mxu0 0.0
        %1425 = vmatpush1.msra.mxu0 0.0
        %1426 = vmatprep.subr.mxu0 0.0
        %1427 = vmatpush1.msra.mxu0 0.0
        %1428 = vmatprep.mubr.f32.mxu0 0.0
        %v1429 = vand.u32 %v311, 4294901760
        %1430 = vmatmul.mubr.f32.gmra.mrb[0].mxu0 %v1429
        %v1431 = vpop.f32.mrb[0].mxu0
        %v1432 = vadd.f32 %v1313, %v1431
        %v1433 = vpop.f32.mrb[0].mxu0
        %1434 = vdwg.mxu0
        %1435 = vmatprep.subr.mxu0 0.0
        %v1436 = vand.u32 %v322, 4294901760
        %1437 = vmatpush1.msra.mxu0 %v1436
        %1438 = vmatprep.subr.mxu0 0.0
        %v1439 = vand.u32 %v323, 4294901760
        %1440 = vmatpush1.msra.mxu0 %v1439
        %1441 = vmatprep.subr.mxu0 0.0
        %v1442 = vand.u32 %v324, 4294901760
        %1443 = vmatpush1.msra.mxu0 %v1442
        %1444 = vmatprep.subr.mxu0 0.0
        %v1445 = vand.u32 %v325, 4294901760
        %1446 = vmatpush1.msra.mxu0 %v1445
        %1447 = vmatprep.subr.mxu0 0.0
        %v1448 = vand.u32 %v326, 4294901760
        %1449 = vmatpush1.msra.mxu0 %v1448
        %1450 = vmatprep.subr.mxu0 0.0
        %v1451 = vand.u32 %v327, 4294901760
        %1452 = vmatpush1.msra.mxu0 %v1451
        %1453 = vmatprep.subr.mxu0 0.0
        %v1454 = vand.u32 %v328, 4294901760
        %1455 = vmatpush1.msra.mxu0 %v1454
        %1456 = vmatprep.subr.mxu0 0.0
        %v1457 = vand.u32 %v329, 4294901760
        %1458 = vmatpush1.msra.mxu0 %v1457
        %1459 = vmatprep.subr.mxu0 0.0
        %v1460 = vand.u32 %v330, 4294901760
        %1461 = vmatpush1.msra.mxu0 %v1460
        %1462 = vmatprep.subr.mxu0 0.0
        %v1463 = vand.u32 %v331, 4294901760
        %1464 = vmatpush1.msra.mxu0 %v1463
        %1465 = vmatprep.subr.mxu0 0.0
        %v1466 = vand.u32 %v332, 4294901760
        %1467 = vmatpush1.msra.mxu0 %v1466
        %1468 = vmatprep.subr.mxu0 0.0
        %v1469 = vand.u32 %v333, 4294901760
        %1470 = vmatpush1.msra.mxu0 %v1469
        %1471 = vmatprep.subr.mxu0 0.0
        %v1472 = vand.u32 %v334, 4294901760
        %1473 = vmatpush1.msra.mxu0 %v1472
        %1474 = vmatprep.subr.mxu0 0.0
        %v1475 = vand.u32 %v335, 4294901760
        %1476 = vmatpush1.msra.mxu0 %v1475
        %1477 = vmatprep.subr.mxu0 0.0
        %v1478 = vand.u32 %v336, 4294901760
        %1479 = vmatpush1.msra.mxu0 %v1478
        %1480 = vmatprep.subr.mxu0 0.0
        %v1481 = vand.u32 %v337, 4294901760
        %1482 = vmatpush1.msra.mxu0 %v1481
        %1483 = vmatprep.subr.mxu0 0.0
        %1484 = vmatpush1.msra.mxu0 0.0
        %1485 = vmatprep.subr.mxu0 0.0
        %1486 = vmatpush1.msra.mxu0 0.0
        %1487 = vmatprep.subr.mxu0 0.0
        %1488 = vmatpush1.msra.mxu0 0.0
        %1489 = vmatprep.subr.mxu0 0.0
        %1490 = vmatpush1.msra.mxu0 0.0
        %1491 = vmatprep.subr.mxu0 0.0
        %1492 = vmatpush1.msra.mxu0 0.0
        %1493 = vmatprep.subr.mxu0 0.0
        %1494 = vmatpush1.msra.mxu0 0.0
        %1495 = vmatprep.subr.mxu0 0.0
        %1496 = vmatpush1.msra.mxu0 0.0
        %1497 = vmatprep.subr.mxu0 0.0
        %1498 = vmatpush1.msra.mxu0 0.0
        %1499 = vmatprep.subr.mxu0 0.0
        %1500 = vmatpush1.msra.mxu0 0.0
        %1501 = vmatprep.subr.mxu0 0.0
        %1502 = vmatpush1.msra.mxu0 0.0
        %1503 = vmatprep.subr.mxu0 0.0
        %1504 = vmatpush1.msra.mxu0 0.0
        %1505 = vmatprep.subr.mxu0 0.0
        %1506 = vmatpush1.msra.mxu0 0.0
        %1507 = vmatprep.subr.mxu0 0.0
        %1508 = vmatpush1.msra.mxu0 0.0
        %1509 = vmatprep.subr.mxu0 0.0
        %1510 = vmatpush1.msra.mxu0 0.0
        %1511 = vmatprep.subr.mxu0 0.0
        %1512 = vmatpush1.msra.mxu0 0.0
        %1513 = vmatprep.subr.mxu0 0.0
        %1514 = vmatpush1.msra.mxu0 0.0
        %1515 = vmatprep.mubr.f32.mxu0 0.0
        %v1516 = vand.u32 %v311, 4294901760
        %1517 = vmatmul.mubr.f32.gmra.mrb[0].mxu0 %v1516
        %v1518 = vpop.f32.mrb[0].mxu0
        %v1519 = vadd.f32 %v1432, %v1518
        %v1520 = vpop.f32.mrb[0].mxu0
        %1521 = vdwg.mxu0
        %v1522 = vstv %s339
        %v1523 = vadd.f32 %v1519, %v1522
        %1524 = vmatprep.subr.mxu0 0.0
        %v1525 = vand.u32 %v322, 4294901760
        %1526 = vmatpush1.msra.mxu0 %v1525
        %1527 = vmatprep.subr.mxu0 0.0
        %v1528 = vand.u32 %v323, 4294901760
        %1529 = vmatpush1.msra.mxu0 %v1528
        %1530 = vmatprep.subr.mxu0 0.0
        %v1531 = vand.u32 %v324, 4294901760
        %1532 = vmatpush1.msra.mxu0 %v1531
        %1533 = vmatprep.subr.mxu0 0.0
        %v1534 = vand.u32 %v325, 4294901760
        %1535 = vmatpush1.msra.mxu0 %v1534
        %1536 = vmatprep.subr.mxu0 0.0
        %v1537 = vand.u32 %v326, 4294901760
        %1538 = vmatpush1.msra.mxu0 %v1537
        %1539 = vmatprep.subr.mxu0 0.0
        %v1540 = vand.u32 %v327, 4294901760
        %1541 = vmatpush1.msra.mxu0 %v1540
        %1542 = vmatprep.subr.mxu0 0.0
        %v1543 = vand.u32 %v328, 4294901760
        %1544 = vmatpush1.msra.mxu0 %v1543
        %1545 = vmatprep.subr.mxu0 0.0
        %v1546 = vand.u32 %v329, 4294901760
        %1547 = vmatpush1.msra.mxu0 %v1546
        %1548 = vmatprep.subr.mxu0 0.0
        %v1549 = vand.u32 %v330, 4294901760
        %1550 = vmatpush1.msra.mxu0 %v1549
        %1551 = vmatprep.subr.mxu0 0.0
        %v1552 = vand.u32 %v331, 4294901760
        %1553 = vmatpush1.msra.mxu0 %v1552
        %1554 = vmatprep.subr.mxu0 0.0
        %v1555 = vand.u32 %v332, 4294901760
        %1556 = vmatpush1.msra.mxu0 %v1555
        %1557 = vmatprep.subr.mxu0 0.0
        %v1558 = vand.u32 %v333, 4294901760
        %1559 = vmatpush1.msra.mxu0 %v1558
        %1560 = vmatprep.subr.mxu0 0.0
        %v1561 = vand.u32 %v334, 4294901760
        %1562 = vmatpush1.msra.mxu0 %v1561
        %1563 = vmatprep.subr.mxu0 0.0
        %v1564 = vand.u32 %v335, 4294901760
        %1565 = vmatpush1.msra.mxu0 %v1564
        %1566 = vmatprep.subr.mxu0 0.0
        %v1567 = vand.u32 %v336, 4294901760
        %1568 = vmatpush1.msra.mxu0 %v1567
        %1569 = vmatprep.subr.mxu0 0.0
        %v1570 = vand.u32 %v337, 4294901760
        %1571 = vmatpush1.msra.mxu0 %v1570
        %1572 = vmatprep.subr.mxu0 0.0
        %1573 = vmatpush1.msra.mxu0 0.0
        %1574 = vmatprep.subr.mxu0 0.0
        %1575 = vmatpush1.msra.mxu0 0.0
        %1576 = vmatprep.subr.mxu0 0.0
        %1577 = vmatpush1.msra.mxu0 0.0
        %1578 = vmatprep.subr.mxu0 0.0
        %1579 = vmatpush1.msra.mxu0 0.0
        %1580 = vmatprep.subr.mxu0 0.0
        %1581 = vmatpush1.msra.mxu0 0.0
        %1582 = vmatprep.subr.mxu0 0.0
        %1583 = vmatpush1.msra.mxu0 0.0
        %1584 = vmatprep.subr.mxu0 0.0
        %1585 = vmatpush1.msra.mxu0 0.0
        %1586 = vmatprep.subr.mxu0 0.0
        %1587 = vmatpush1.msra.mxu0 0.0
        %1588 = vmatprep.subr.mxu0 0.0
        %1589 = vmatpush1.msra.mxu0 0.0
        %1590 = vmatprep.subr.mxu0 0.0
        %1591 = vmatpush1.msra.mxu0 0.0
        %1592 = vmatprep.subr.mxu0 0.0
        %1593 = vmatpush1.msra.mxu0 0.0
        %1594 = vmatprep.subr.mxu0 0.0
        %1595 = vmatpush1.msra.mxu0 0.0
        %1596 = vmatprep.subr.mxu0 0.0
        %1597 = vmatpush1.msra.mxu0 0.0
        %1598 = vmatprep.subr.mxu0 0.0
        %1599 = vmatpush1.msra.mxu0 0.0
        %1600 = vmatprep.subr.mxu0 0.0
        %1601 = vmatpush1.msra.mxu0 0.0
        %1602 = vmatprep.subr.mxu0 0.0
        %1603 = vmatpush1.msra.mxu0 0.0
        %1604 = vmatprep.mubr.f32.mxu0 0.0
        %v1605 = vand.u32 %v312, 4294901760
        %v1606 = vsub.f32 %v312, %v1605
        %v1607 = vand.u32 %v1606, 4294901760
        %v1608 = vsub.f32 %v1606, %v1607
        %v1609 = vand.u32 %v1608, 4294901760
        %1610 = vmatmul.mubr.f32.gmra.mrb[0].mxu0 %v1609
        %v1611 = vpop.f32.mrb[0].mxu0
        %v1612 = vadd.f32 %v878, %v1611
        %v1613 = vpop.f32.mrb[0].mxu0
        %1614 = vdwg.mxu0
        %1615 = vmatprep.subr.mxu0 0.0
        %v1616 = vand.u32 %v322, 4294901760
        %v1617 = vsub.f32 %v322, %v1616
        %v1618 = vand.u32 %v1617, 4294901760
        %v1619 = vsub.f32 %v1617, %v1618
        %v1620 = vand.u32 %v1619, 4294901760
        %1621 = vmatpush1.msra.mxu0 %v1620
        %1622 = vmatprep.subr.mxu0 0.0
        %v1623 = vand.u32 %v323, 4294901760
        %v1624 = vsub.f32 %v323, %v1623
        %v1625 = vand.u32 %v1624, 4294901760
        %v1626 = vsub.f32 %v1624, %v1625
        %v1627 = vand.u32 %v1626, 4294901760
        %1628 = vmatpush1.msra.mxu0 %v1627
        %1629 = vmatprep.subr.mxu0 0.0
        %v1630 = vand.u32 %v324, 4294901760
        %v1631 = vsub.f32 %v324, %v1630
        %v1632 = vand.u32 %v1631, 4294901760
        %v1633 = vsub.f32 %v1631, %v1632
        %v1634 = vand.u32 %v1633, 4294901760
        %1635 = vmatpush1.msra.mxu0 %v1634
        %1636 = vmatprep.subr.mxu0 0.0
        %v1637 = vand.u32 %v325, 4294901760
        %v1638 = vsub.f32 %v325, %v1637
        %v1639 = vand.u32 %v1638, 4294901760
        %v1640 = vsub.f32 %v1638, %v1639
        %v1641 = vand.u32 %v1640, 4294901760
        %1642 = vmatpush1.msra.mxu0 %v1641
        %1643 = vmatprep.subr.mxu0 0.0
        %v1644 = vand.u32 %v326, 4294901760
        %v1645 = vsub.f32 %v326, %v1644
        %v1646 = vand.u32 %v1645, 4294901760
        %v1647 = vsub.f32 %v1645, %v1646
        %v1648 = vand.u32 %v1647, 4294901760
        %1649 = vmatpush1.msra.mxu0 %v1648
        %1650 = vmatprep.subr.mxu0 0.0
        %v1651 = vand.u32 %v327, 4294901760
        %v1652 = vsub.f32 %v327, %v1651
        %v1653 = vand.u32 %v1652, 4294901760
        %v1654 = vsub.f32 %v1652, %v1653
        %v1655 = vand.u32 %v1654, 4294901760
        %1656 = vmatpush1.msra.mxu0 %v1655
        %1657 = vmatprep.subr.mxu0 0.0
        %v1658 = vand.u32 %v328, 4294901760
        %v1659 = vsub.f32 %v328, %v1658
        %v1660 = vand.u32 %v1659, 4294901760
        %v1661 = vsub.f32 %v1659, %v1660
        %v1662 = vand.u32 %v1661, 4294901760
        %1663 = vmatpush1.msra.mxu0 %v1662
        %1664 = vmatprep.subr.mxu0 0.0
        %v1665 = vand.u32 %v329, 4294901760
        %v1666 = vsub.f32 %v329, %v1665
        %v1667 = vand.u32 %v1666, 4294901760
        %v1668 = vsub.f32 %v1666, %v1667
        %v1669 = vand.u32 %v1668, 4294901760
        %1670 = vmatpush1.msra.mxu0 %v1669
        %1671 = vmatprep.subr.mxu0 0.0
        %v1672 = vand.u32 %v330, 4294901760
        %v1673 = vsub.f32 %v330, %v1672
        %v1674 = vand.u32 %v1673, 4294901760
        %v1675 = vsub.f32 %v1673, %v1674
        %v1676 = vand.u32 %v1675, 4294901760
        %1677 = vmatpush1.msra.mxu0 %v1676
        %1678 = vmatprep.subr.mxu0 0.0
        %v1679 = vand.u32 %v331, 4294901760
        %v1680 = vsub.f32 %v331, %v1679
        %v1681 = vand.u32 %v1680, 4294901760
        %v1682 = vsub.f32 %v1680, %v1681
        %v1683 = vand.u32 %v1682, 4294901760
        %1684 = vmatpush1.msra.mxu0 %v1683
        %1685 = vmatprep.subr.mxu0 0.0
        %v1686 = vand.u32 %v332, 4294901760
        %v1687 = vsub.f32 %v332, %v1686
        %v1688 = vand.u32 %v1687, 4294901760
        %v1689 = vsub.f32 %v1687, %v1688
        %v1690 = vand.u32 %v1689, 4294901760
        %1691 = vmatpush1.msra.mxu0 %v1690
        %1692 = vmatprep.subr.mxu0 0.0
        %v1693 = vand.u32 %v333, 4294901760
        %v1694 = vsub.f32 %v333, %v1693
        %v1695 = vand.u32 %v1694, 4294901760
        %v1696 = vsub.f32 %v1694, %v1695
        %v1697 = vand.u32 %v1696, 4294901760
        %1698 = vmatpush1.msra.mxu0 %v1697
        %1699 = vmatprep.subr.mxu0 0.0
        %v1700 = vand.u32 %v334, 4294901760
        %v1701 = vsub.f32 %v334, %v1700
        %v1702 = vand.u32 %v1701, 4294901760
        %v1703 = vsub.f32 %v1701, %v1702
        %v1704 = vand.u32 %v1703, 4294901760
        %1705 = vmatpush1.msra.mxu0 %v1704
        %1706 = vmatprep.subr.mxu0 0.0
        %v1707 = vand.u32 %v335, 4294901760
        %v1708 = vsub.f32 %v335, %v1707
        %v1709 = vand.u32 %v1708, 4294901760
        %v1710 = vsub.f32 %v1708, %v1709
        %v1711 = vand.u32 %v1710, 4294901760
        %1712 = vmatpush1.msra.mxu0 %v1711
        %1713 = vmatprep.subr.mxu0 0.0
        %v1714 = vand.u32 %v336, 4294901760
        %v1715 = vsub.f32 %v336, %v1714
        %v1716 = vand.u32 %v1715, 4294901760
        %v1717 = vsub.f32 %v1715, %v1716
        %v1718 = vand.u32 %v1717, 4294901760
        %1719 = vmatpush1.msra.mxu0 %v1718
        %1720 = vmatprep.subr.mxu0 0.0
        %v1721 = vand.u32 %v337, 4294901760
        %v1722 = vsub.f32 %v337, %v1721
        %v1723 = vand.u32 %v1722, 4294901760
        %v1724 = vsub.f32 %v1722, %v1723
        %v1725 = vand.u32 %v1724, 4294901760
        %1726 = vmatpush1.msra.mxu0 %v1725
        %1727 = vmatprep.subr.mxu0 0.0
        %1728 = vmatpush1.msra.mxu0 0.0
        %1729 = vmatprep.subr.mxu0 0.0
        %1730 = vmatpush1.msra.mxu0 0.0
        %1731 = vmatprep.subr.mxu0 0.0
        %1732 = vmatpush1.msra.mxu0 0.0
        %1733 = vmatprep.subr.mxu0 0.0
        %1734 = vmatpush1.msra.mxu0 0.0
        %1735 = vmatprep.subr.mxu0 0.0
        %1736 = vmatpush1.msra.mxu0 0.0
        %1737 = vmatprep.subr.mxu0 0.0
        %1738 = vmatpush1.msra.mxu0 0.0
        %1739 = vmatprep.subr.mxu0 0.0
        %1740 = vmatpush1.msra.mxu0 0.0
        %1741 = vmatprep.subr.mxu0 0.0
        %1742 = vmatpush1.msra.mxu0 0.0
        %1743 = vmatprep.subr.mxu0 0.0
        %1744 = vmatpush1.msra.mxu0 0.0
        %1745 = vmatprep.subr.mxu0 0.0
        %1746 = vmatpush1.msra.mxu0 0.0
        %1747 = vmatprep.subr.mxu0 0.0
        %1748 = vmatpush1.msra.mxu0 0.0
        %1749 = vmatprep.subr.mxu0 0.0
        %1750 = vmatpush1.msra.mxu0 0.0
        %1751 = vmatprep.subr.mxu0 0.0
        %1752 = vmatpush1.msra.mxu0 0.0
        %1753 = vmatprep.subr.mxu0 0.0
        %1754 = vmatpush1.msra.mxu0 0.0
        %1755 = vmatprep.subr.mxu0 0.0
        %1756 = vmatpush1.msra.mxu0 0.0
        %1757 = vmatprep.subr.mxu0 0.0
        %1758 = vmatpush1.msra.mxu0 0.0
        %1759 = vmatprep.mubr.f32.mxu0 0.0
        %v1760 = vand.u32 %v312, 4294901760
        %1761 = vmatmul.mubr.f32.gmra.mrb[0].mxu0 %v1760
        %v1762 = vpop.f32.mrb[0].mxu0
        %v1763 = vadd.f32 %v1612, %v1762
        %v1764 = vpop.f32.mrb[0].mxu0
        %1765 = vdwg.mxu0
        %1766 = vmatprep.subr.mxu0 0.0
        %v1767 = vand.u32 %v322, 4294901760
        %v1768 = vsub.f32 %v322, %v1767
        %1769 = vmatpush1.msra.mxu0 %v1768
        %1770 = vmatprep.subr.mxu0 0.0
        %v1771 = vand.u32 %v323, 4294901760
        %v1772 = vsub.f32 %v323, %v1771
        %1773 = vmatpush1.msra.mxu0 %v1772
        %1774 = vmatprep.subr.mxu0 0.0
        %v1775 = vand.u32 %v324, 4294901760
        %v1776 = vsub.f32 %v324, %v1775
        %1777 = vmatpush1.msra.mxu0 %v1776
        %1778 = vmatprep.subr.mxu0 0.0
        %v1779 = vand.u32 %v325, 4294901760
        %v1780 = vsub.f32 %v325, %v1779
        %1781 = vmatpush1.msra.mxu0 %v1780
        %1782 = vmatprep.subr.mxu0 0.0
        %v1783 = vand.u32 %v326, 4294901760
        %v1784 = vsub.f32 %v326, %v1783
        %1785 = vmatpush1.msra.mxu0 %v1784
        %1786 = vmatprep.subr.mxu0 0.0
        %v1787 = vand.u32 %v327, 4294901760
        %v1788 = vsub.f32 %v327, %v1787
        %1789 = vmatpush1.msra.mxu0 %v1788
        %1790 = vmatprep.subr.mxu0 0.0
        %v1791 = vand.u32 %v328, 4294901760
        %v1792 = vsub.f32 %v328, %v1791
        %1793 = vmatpush1.msra.mxu0 %v1792
        %1794 = vmatprep.subr.mxu0 0.0
        %v1795 = vand.u32 %v329, 4294901760
        %v1796 = vsub.f32 %v329, %v1795
        %1797 = vmatpush1.msra.mxu0 %v1796
        %1798 = vmatprep.subr.mxu0 0.0
        %v1799 = vand.u32 %v330, 4294901760
        %v1800 = vsub.f32 %v330, %v1799
        %1801 = vmatpush1.msra.mxu0 %v1800
        %1802 = vmatprep.subr.mxu0 0.0
        %v1803 = vand.u32 %v331, 4294901760
        %v1804 = vsub.f32 %v331, %v1803
        %1805 = vmatpush1.msra.mxu0 %v1804
        %1806 = vmatprep.subr.mxu0 0.0
        %v1807 = vand.u32 %v332, 4294901760
        %v1808 = vsub.f32 %v332, %v1807
        %1809 = vmatpush1.msra.mxu0 %v1808
        %1810 = vmatprep.subr.mxu0 0.0
        %v1811 = vand.u32 %v333, 4294901760
        %v1812 = vsub.f32 %v333, %v1811
        %1813 = vmatpush1.msra.mxu0 %v1812
        %1814 = vmatprep.subr.mxu0 0.0
        %v1815 = vand.u32 %v334, 4294901760
        %v1816 = vsub.f32 %v334, %v1815
        %1817 = vmatpush1.msra.mxu0 %v1816
        %1818 = vmatprep.subr.mxu0 0.0
        %v1819 = vand.u32 %v335, 4294901760
        %v1820 = vsub.f32 %v335, %v1819
        %1821 = vmatpush1.msra.mxu0 %v1820
        %1822 = vmatprep.subr.mxu0 0.0
        %v1823 = vand.u32 %v336, 4294901760
        %v1824 = vsub.f32 %v336, %v1823
        %1825 = vmatpush1.msra.mxu0 %v1824
        %1826 = vmatprep.subr.mxu0 0.0
        %v1827 = vand.u32 %v337, 4294901760
        %v1828 = vsub.f32 %v337, %v1827
        %1829 = vmatpush1.msra.mxu0 %v1828
        %1830 = vmatprep.subr.mxu0 0.0
        %1831 = vmatpush1.msra.mxu0 0.0
        %1832 = vmatprep.subr.mxu0 0.0
        %1833 = vmatpush1.msra.mxu0 0.0
        %1834 = vmatprep.subr.mxu0 0.0
        %1835 = vmatpush1.msra.mxu0 0.0
        %1836 = vmatprep.subr.mxu0 0.0
        %1837 = vmatpush1.msra.mxu0 0.0
        %1838 = vmatprep.subr.mxu0 0.0
        %1839 = vmatpush1.msra.mxu0 0.0
        %1840 = vmatprep.subr.mxu0 0.0
        %1841 = vmatpush1.msra.mxu0 0.0
        %1842 = vmatprep.subr.mxu0 0.0
        %1843 = vmatpush1.msra.mxu0 0.0
        %1844 = vmatprep.subr.mxu0 0.0
        %1845 = vmatpush1.msra.mxu0 0.0
        %1846 = vmatprep.subr.mxu0 0.0
        %1847 = vmatpush1.msra.mxu0 0.0
        %1848 = vmatprep.subr.mxu0 0.0
        %1849 = vmatpush1.msra.mxu0 0.0
        %1850 = vmatprep.subr.mxu0 0.0
        %1851 = vmatpush1.msra.mxu0 0.0
        %1852 = vmatprep.subr.mxu0 0.0
        %1853 = vmatpush1.msra.mxu0 0.0
        %1854 = vmatprep.subr.mxu0 0.0
        %1855 = vmatpush1.msra.mxu0 0.0
        %1856 = vmatprep.subr.mxu0 0.0
        %1857 = vmatpush1.msra.mxu0 0.0
        %1858 = vmatprep.subr.mxu0 0.0
        %1859 = vmatpush1.msra.mxu0 0.0
        %1860 = vmatprep.subr.mxu0 0.0
        %1861 = vmatpush1.msra.mxu0 0.0
        %1862 = vmatprep.mubr.f32.mxu0 0.0
        %v1863 = vand.u32 %v312, 4294901760
        %v1864 = vsub.f32 %v312, %v1863
        %1865 = vmatmul.mubr.f32.gmra.mrb[0].mxu0 %v1864
        %v1866 = vpop.f32.mrb[0].mxu0
        %v1867 = vadd.f32 %v1763, %v1866
        %v1868 = vpop.f32.mrb[0].mxu0
        %1869 = vdwg.mxu0
        %1870 = vmatprep.subr.mxu0 0.0
        %v1871 = vand.u32 %v322, 4294901760
        %1872 = vmatpush1.msra.mxu0 %v1871
        %1873 = vmatprep.subr.mxu0 0.0
        %v1874 = vand.u32 %v323, 4294901760
        %1875 = vmatpush1.msra.mxu0 %v1874
        %1876 = vmatprep.subr.mxu0 0.0
        %v1877 = vand.u32 %v324, 4294901760
        %1878 = vmatpush1.msra.mxu0 %v1877
        %1879 = vmatprep.subr.mxu0 0.0
        %v1880 = vand.u32 %v325, 4294901760
        %1881 = vmatpush1.msra.mxu0 %v1880
        %1882 = vmatprep.subr.mxu0 0.0
        %v1883 = vand.u32 %v326, 4294901760
        %1884 = vmatpush1.msra.mxu0 %v1883
        %1885 = vmatprep.subr.mxu0 0.0
        %v1886 = vand.u32 %v327, 4294901760
        %1887 = vmatpush1.msra.mxu0 %v1886
        %1888 = vmatprep.subr.mxu0 0.0
        %v1889 = vand.u32 %v328, 4294901760
        %1890 = vmatpush1.msra.mxu0 %v1889
        %1891 = vmatprep.subr.mxu0 0.0
        %v1892 = vand.u32 %v329, 4294901760
        %1893 = vmatpush1.msra.mxu0 %v1892
        %1894 = vmatprep.subr.mxu0 0.0
        %v1895 = vand.u32 %v330, 4294901760
        %1896 = vmatpush1.msra.mxu0 %v1895
        %1897 = vmatprep.subr.mxu0 0.0
        %v1898 = vand.u32 %v331, 4294901760
        %1899 = vmatpush1.msra.mxu0 %v1898
        %1900 = vmatprep.subr.mxu0 0.0
        %v1901 = vand.u32 %v332, 4294901760
        %1902 = vmatpush1.msra.mxu0 %v1901
        %1903 = vmatprep.subr.mxu0 0.0
        %v1904 = vand.u32 %v333, 4294901760
        %1905 = vmatpush1.msra.mxu0 %v1904
        %1906 = vmatprep.subr.mxu0 0.0
        %v1907 = vand.u32 %v334, 4294901760
        %1908 = vmatpush1.msra.mxu0 %v1907
        %1909 = vmatprep.subr.mxu0 0.0
        %v1910 = vand.u32 %v335, 4294901760
        %1911 = vmatpush1.msra.mxu0 %v1910
        %1912 = vmatprep.subr.mxu0 0.0
        %v1913 = vand.u32 %v336, 4294901760
        %1914 = vmatpush1.msra.mxu0 %v1913
        %1915 = vmatprep.subr.mxu0 0.0
        %v1916 = vand.u32 %v337, 4294901760
        %1917 = vmatpush1.msra.mxu0 %v1916
        %1918 = vmatprep.subr.mxu0 0.0
        %1919 = vmatpush1.msra.mxu0 0.0
        %1920 = vmatprep.subr.mxu0 0.0
        %1921 = vmatpush1.msra.mxu0 0.0
        %1922 = vmatprep.subr.mxu0 0.0
        %1923 = vmatpush1.msra.mxu0 0.0
        %1924 = vmatprep.subr.mxu0 0.0
        %1925 = vmatpush1.msra.mxu0 0.0
        %1926 = vmatprep.subr.mxu0 0.0
        %1927 = vmatpush1.msra.mxu0 0.0
        %1928 = vmatprep.subr.mxu0 0.0
        %1929 = vmatpush1.msra.mxu0 0.0
        %1930 = vmatprep.subr.mxu0 0.0
        %1931 = vmatpush1.msra.mxu0 0.0
        %1932 = vmatprep.subr.mxu0 0.0
        %1933 = vmatpush1.msra.mxu0 0.0
        %1934 = vmatprep.subr.mxu0 0.0
        %1935 = vmatpush1.msra.mxu0 0.0
        %1936 = vmatprep.subr.mxu0 0.0
        %1937 = vmatpush1.msra.mxu0 0.0
        %1938 = vmatprep.subr.mxu0 0.0
        %1939 = vmatpush1.msra.mxu0 0.0
        %1940 = vmatprep.subr.mxu0 0.0
        %1941 = vmatpush1.msra.mxu0 0.0
        %1942 = vmatprep.subr.mxu0 0.0
        %1943 = vmatpush1.msra.mxu0 0.0
        %1944 = vmatprep.subr.mxu0 0.0
        %1945 = vmatpush1.msra.mxu0 0.0
        %1946 = vmatprep.subr.mxu0 0.0
        %1947 = vmatpush1.msra.mxu0 0.0
        %1948 = vmatprep.subr.mxu0 0.0
        %1949 = vmatpush1.msra.mxu0 0.0
        %1950 = vmatprep.mubr.f32.mxu0 0.0
        %v1951 = vand.u32 %v312, 4294901760
        %v1952 = vsub.f32 %v312, %v1951
        %v1953 = vand.u32 %v1952, 4294901760
        %1954 = vmatmul.mubr.f32.gmra.mrb[0].mxu0 %v1953
        %v1955 = vpop.f32.mrb[0].mxu0
        %v1956 = vadd.f32 %v1867, %v1955
        %v1957 = vpop.f32.mrb[0].mxu0
        %1958 = vdwg.mxu0
        %1959 = vmatprep.subr.mxu0 0.0
        %v1960 = vand.u32 %v322, 4294901760
        %v1961 = vsub.f32 %v322, %v1960
        %v1962 = vand.u32 %v1961, 4294901760
        %1963 = vmatpush1.msra.mxu0 %v1962
        %1964 = vmatprep.subr.mxu0 0.0
        %v1965 = vand.u32 %v323, 4294901760
        %v1966 = vsub.f32 %v323, %v1965
        %v1967 = vand.u32 %v1966, 4294901760
        %1968 = vmatpush1.msra.mxu0 %v1967
        %1969 = vmatprep.subr.mxu0 0.0
        %v1970 = vand.u32 %v324, 4294901760
        %v1971 = vsub.f32 %v324, %v1970
        %v1972 = vand.u32 %v1971, 4294901760
        %1973 = vmatpush1.msra.mxu0 %v1972
        %1974 = vmatprep.subr.mxu0 0.0
        %v1975 = vand.u32 %v325, 4294901760
        %v1976 = vsub.f32 %v325, %v1975
        %v1977 = vand.u32 %v1976, 4294901760
        %1978 = vmatpush1.msra.mxu0 %v1977
        %1979 = vmatprep.subr.mxu0 0.0
        %v1980 = vand.u32 %v326, 4294901760
        %v1981 = vsub.f32 %v326, %v1980
        %v1982 = vand.u32 %v1981, 4294901760
        %1983 = vmatpush1.msra.mxu0 %v1982
        %1984 = vmatprep.subr.mxu0 0.0
        %v1985 = vand.u32 %v327, 4294901760
        %v1986 = vsub.f32 %v327, %v1985
        %v1987 = vand.u32 %v1986, 4294901760
        %1988 = vmatpush1.msra.mxu0 %v1987
        %1989 = vmatprep.subr.mxu0 0.0
        %v1990 = vand.u32 %v328, 4294901760
        %v1991 = vsub.f32 %v328, %v1990
        %v1992 = vand.u32 %v1991, 4294901760
        %1993 = vmatpush1.msra.mxu0 %v1992
        %1994 = vmatprep.subr.mxu0 0.0
        %v1995 = vand.u32 %v329, 4294901760
        %v1996 = vsub.f32 %v329, %v1995
        %v1997 = vand.u32 %v1996, 4294901760
        %1998 = vmatpush1.msra.mxu0 %v1997
        %1999 = vmatprep.subr.mxu0 0.0
        %v2000 = vand.u32 %v330, 4294901760
        %v2001 = vsub.f32 %v330, %v2000
        %v2002 = vand.u32 %v2001, 4294901760
        %2003 = vmatpush1.msra.mxu0 %v2002
        %2004 = vmatprep.subr.mxu0 0.0
        %v2005 = vand.u32 %v331, 4294901760
        %v2006 = vsub.f32 %v331, %v2005
        %v2007 = vand.u32 %v2006, 4294901760
        %2008 = vmatpush1.msra.mxu0 %v2007
        %2009 = vmatprep.subr.mxu0 0.0
        %v2010 = vand.u32 %v332, 4294901760
        %v2011 = vsub.f32 %v332, %v2010
        %v2012 = vand.u32 %v2011, 4294901760
        %2013 = vmatpush1.msra.mxu0 %v2012
        %2014 = vmatprep.subr.mxu0 0.0
        %v2015 = vand.u32 %v333, 4294901760
        %v2016 = vsub.f32 %v333, %v2015
        %v2017 = vand.u32 %v2016, 4294901760
        %2018 = vmatpush1.msra.mxu0 %v2017
        %2019 = vmatprep.subr.mxu0 0.0
        %v2020 = vand.u32 %v334, 4294901760
        %v2021 = vsub.f32 %v334, %v2020
        %v2022 = vand.u32 %v2021, 4294901760
        %2023 = vmatpush1.msra.mxu0 %v2022
        %2024 = vmatprep.subr.mxu0 0.0
        %v2025 = vand.u32 %v335, 4294901760
        %v2026 = vsub.f32 %v335, %v2025
        %v2027 = vand.u32 %v2026, 4294901760
        %2028 = vmatpush1.msra.mxu0 %v2027
        %2029 = vmatprep.subr.mxu0 0.0
        %v2030 = vand.u32 %v336, 4294901760
        %v2031 = vsub.f32 %v336, %v2030
        %v2032 = vand.u32 %v2031, 4294901760
        %2033 = vmatpush1.msra.mxu0 %v2032
        %2034 = vmatprep.subr.mxu0 0.0
        %v2035 = vand.u32 %v337, 4294901760
        %v2036 = vsub.f32 %v337, %v2035
        %v2037 = vand.u32 %v2036, 4294901760
        %2038 = vmatpush1.msra.mxu0 %v2037
        %2039 = vmatprep.subr.mxu0 0.0
        %2040 = vmatpush1.msra.mxu0 0.0
        %2041 = vmatprep.subr.mxu0 0.0
        %2042 = vmatpush1.msra.mxu0 0.0
        %2043 = vmatprep.subr.mxu0 0.0
        %2044 = vmatpush1.msra.mxu0 0.0
        %2045 = vmatprep.subr.mxu0 0.0
        %2046 = vmatpush1.msra.mxu0 0.0
        %2047 = vmatprep.subr.mxu0 0.0
        %2048 = vmatpush1.msra.mxu0 0.0
        %2049 = vmatprep.subr.mxu0 0.0
        %2050 = vmatpush1.msra.mxu0 0.0
        %2051 = vmatprep.subr.mxu0 0.0
        %2052 = vmatpush1.msra.mxu0 0.0
        %2053 = vmatprep.subr.mxu0 0.0
        %2054 = vmatpush1.msra.mxu0 0.0
        %2055 = vmatprep.subr.mxu0 0.0
        %2056 = vmatpush1.msra.mxu0 0.0
        %2057 = vmatprep.subr.mxu0 0.0
        %2058 = vmatpush1.msra.mxu0 0.0
        %2059 = vmatprep.subr.mxu0 0.0
        %2060 = vmatpush1.msra.mxu0 0.0
        %2061 = vmatprep.subr.mxu0 0.0
        %2062 = vmatpush1.msra.mxu0 0.0
        %2063 = vmatprep.subr.mxu0 0.0
        %2064 = vmatpush1.msra.mxu0 0.0
        %2065 = vmatprep.subr.mxu0 0.0
        %2066 = vmatpush1.msra.mxu0 0.0
        %2067 = vmatprep.subr.mxu0 0.0
        %2068 = vmatpush1.msra.mxu0 0.0
        %2069 = vmatprep.subr.mxu0 0.0
        %2070 = vmatpush1.msra.mxu0 0.0
        %2071 = vmatprep.mubr.f32.mxu0 0.0
        %v2072 = vand.u32 %v312, 4294901760
        %2073 = vmatmul.mubr.f32.gmra.mrb[0].mxu0 %v2072
        %v2074 = vpop.f32.mrb[0].mxu0
        %v2075 = vadd.f32 %v1956, %v2074
        %v2076 = vpop.f32.mrb[0].mxu0
        %2077 = vdwg.mxu0
        %2078 = vmatprep.subr.mxu0 0.0
        %v2079 = vand.u32 %v322, 4294901760
        %2080 = vmatpush1.msra.mxu0 %v2079
        %2081 = vmatprep.subr.mxu0 0.0
        %v2082 = vand.u32 %v323, 4294901760
        %2083 = vmatpush1.msra.mxu0 %v2082
        %2084 = vmatprep.subr.mxu0 0.0
        %v2085 = vand.u32 %v324, 4294901760
        %2086 = vmatpush1.msra.mxu0 %v2085
        %2087 = vmatprep.subr.mxu0 0.0
        %v2088 = vand.u32 %v325, 4294901760
        %2089 = vmatpush1.msra.mxu0 %v2088
        %2090 = vmatprep.subr.mxu0 0.0
        %v2091 = vand.u32 %v326, 4294901760
        %2092 = vmatpush1.msra.mxu0 %v2091
        %2093 = vmatprep.subr.mxu0 0.0
        %v2094 = vand.u32 %v327, 4294901760
        %2095 = vmatpush1.msra.mxu0 %v2094
        %2096 = vmatprep.subr.mxu0 0.0
        %v2097 = vand.u32 %v328, 4294901760
        %2098 = vmatpush1.msra.mxu0 %v2097
        %2099 = vmatprep.subr.mxu0 0.0
        %v2100 = vand.u32 %v329, 4294901760
        %2101 = vmatpush1.msra.mxu0 %v2100
        %2102 = vmatprep.subr.mxu0 0.0
        %v2103 = vand.u32 %v330, 4294901760
        %2104 = vmatpush1.msra.mxu0 %v2103
        %2105 = vmatprep.subr.mxu0 0.0
        %v2106 = vand.u32 %v331, 4294901760
        %2107 = vmatpush1.msra.mxu0 %v2106
        %2108 = vmatprep.subr.mxu0 0.0
        %v2109 = vand.u32 %v332, 4294901760
        %2110 = vmatpush1.msra.mxu0 %v2109
        %2111 = vmatprep.subr.mxu0 0.0
        %v2112 = vand.u32 %v333, 4294901760
        %2113 = vmatpush1.msra.mxu0 %v2112
        %2114 = vmatprep.subr.mxu0 0.0
        %v2115 = vand.u32 %v334, 4294901760
        %2116 = vmatpush1.msra.mxu0 %v2115
        %2117 = vmatprep.subr.mxu0 0.0
        %v2118 = vand.u32 %v335, 4294901760
        %2119 = vmatpush1.msra.mxu0 %v2118
        %2120 = vmatprep.subr.mxu0 0.0
        %v2121 = vand.u32 %v336, 4294901760
        %2122 = vmatpush1.msra.mxu0 %v2121
        %2123 = vmatprep.subr.mxu0 0.0
        %v2124 = vand.u32 %v337, 4294901760
        %2125 = vmatpush1.msra.mxu0 %v2124
        %2126 = vmatprep.subr.mxu0 0.0
        %2127 = vmatpush1.msra.mxu0 0.0
        %2128 = vmatprep.subr.mxu0 0.0
        %2129 = vmatpush1.msra.mxu0 0.0
        %2130 = vmatprep.subr.mxu0 0.0
        %2131 = vmatpush1.msra.mxu0 0.0
        %2132 = vmatprep.subr.mxu0 0.0
        %2133 = vmatpush1.msra.mxu0 0.0
        %2134 = vmatprep.subr.mxu0 0.0
        %2135 = vmatpush1.msra.mxu0 0.0
        %2136 = vmatprep.subr.mxu0 0.0
        %2137 = vmatpush1.msra.mxu0 0.0
        %2138 = vmatprep.subr.mxu0 0.0
        %2139 = vmatpush1.msra.mxu0 0.0
        %2140 = vmatprep.subr.mxu0 0.0
        %2141 = vmatpush1.msra.mxu0 0.0
        %2142 = vmatprep.subr.mxu0 0.0
        %2143 = vmatpush1.msra.mxu0 0.0
        %2144 = vmatprep.subr.mxu0 0.0
        %2145 = vmatpush1.msra.mxu0 0.0
        %2146 = vmatprep.subr.mxu0 0.0
        %2147 = vmatpush1.msra.mxu0 0.0
        %2148 = vmatprep.subr.mxu0 0.0
        %2149 = vmatpush1.msra.mxu0 0.0
        %2150 = vmatprep.subr.mxu0 0.0
        %2151 = vmatpush1.msra.mxu0 0.0
        %2152 = vmatprep.subr.mxu0 0.0
        %2153 = vmatpush1.msra.mxu0 0.0
        %2154 = vmatprep.subr.mxu0 0.0
        %2155 = vmatpush1.msra.mxu0 0.0
        %2156 = vmatprep.subr.mxu0 0.0
        %2157 = vmatpush1.msra.mxu0 0.0
        %2158 = vmatprep.mubr.f32.mxu0 0.0
        %v2159 = vand.u32 %v312, 4294901760
        %2160 = vmatmul.mubr.f32.gmra.mrb[0].mxu0 %v2159
        %v2161 = vpop.f32.mrb[0].mxu0
        %v2162 = vadd.f32 %v2075, %v2161
        %v2163 = vpop.f32.mrb[0].mxu0
        %2164 = vdwg.mxu0
        %v2165 = vadd.f32 %v2162, %v1522
        %2166 = vmatprep.subr.mxu0 0.0
        %v2167 = vand.u32 %v322, 4294901760
        %2168 = vmatpush1.msra.mxu0 %v2167
        %2169 = vmatprep.subr.mxu0 0.0
        %v2170 = vand.u32 %v323, 4294901760
        %2171 = vmatpush1.msra.mxu0 %v2170
        %2172 = vmatprep.subr.mxu0 0.0
        %v2173 = vand.u32 %v324, 4294901760
        %2174 = vmatpush1.msra.mxu0 %v2173
        %2175 = vmatprep.subr.mxu0 0.0
        %v2176 = vand.u32 %v325, 4294901760
        %2177 = vmatpush1.msra.mxu0 %v2176
        %2178 = vmatprep.subr.mxu0 0.0
        %v2179 = vand.u32 %v326, 4294901760
        %2180 = vmatpush1.msra.mxu0 %v2179
        %2181 = vmatprep.subr.mxu0 0.0
        %v2182 = vand.u32 %v327, 4294901760
        %2183 = vmatpush1.msra.mxu0 %v2182
        %2184 = vmatprep.subr.mxu0 0.0
        %v2185 = vand.u32 %v328, 4294901760
        %2186 = vmatpush1.msra.mxu0 %v2185
        %2187 = vmatprep.subr.mxu0 0.0
        %v2188 = vand.u32 %v329, 4294901760
        %2189 = vmatpush1.msra.mxu0 %v2188
        %2190 = vmatprep.subr.mxu0 0.0
        %v2191 = vand.u32 %v330, 4294901760
        %2192 = vmatpush1.msra.mxu0 %v2191
        %2193 = vmatprep.subr.mxu0 0.0
        %v2194 = vand.u32 %v331, 4294901760
        %2195 = vmatpush1.msra.mxu0 %v2194
        %2196 = vmatprep.subr.mxu0 0.0
        %v2197 = vand.u32 %v332, 4294901760
        %2198 = vmatpush1.msra.mxu0 %v2197
        %2199 = vmatprep.subr.mxu0 0.0
        %v2200 = vand.u32 %v333, 4294901760
        %2201 = vmatpush1.msra.mxu0 %v2200
        %2202 = vmatprep.subr.mxu0 0.0
        %v2203 = vand.u32 %v334, 4294901760
        %2204 = vmatpush1.msra.mxu0 %v2203
        %2205 = vmatprep.subr.mxu0 0.0
        %v2206 = vand.u32 %v335, 4294901760
        %2207 = vmatpush1.msra.mxu0 %v2206
        %2208 = vmatprep.subr.mxu0 0.0
        %v2209 = vand.u32 %v336, 4294901760
        %2210 = vmatpush1.msra.mxu0 %v2209
        %2211 = vmatprep.subr.mxu0 0.0
        %v2212 = vand.u32 %v337, 4294901760
        %2213 = vmatpush1.msra.mxu0 %v2212
        %2214 = vmatprep.subr.mxu0 0.0
        %2215 = vmatpush1.msra.mxu0 0.0
        %2216 = vmatprep.subr.mxu0 0.0
        %2217 = vmatpush1.msra.mxu0 0.0
        %2218 = vmatprep.subr.mxu0 0.0
        %2219 = vmatpush1.msra.mxu0 0.0
        %2220 = vmatprep.subr.mxu0 0.0
        %2221 = vmatpush1.msra.mxu0 0.0
        %2222 = vmatprep.subr.mxu0 0.0
        %2223 = vmatpush1.msra.mxu0 0.0
        %2224 = vmatprep.subr.mxu0 0.0
        %2225 = vmatpush1.msra.mxu0 0.0
        %2226 = vmatprep.subr.mxu0 0.0
        %2227 = vmatpush1.msra.mxu0 0.0
        %2228 = vmatprep.subr.mxu0 0.0
        %2229 = vmatpush1.msra.mxu0 0.0
        %2230 = vmatprep.subr.mxu0 0.0
        %2231 = vmatpush1.msra.mxu0 0.0
        %2232 = vmatprep.subr.mxu0 0.0
        %2233 = vmatpush1.msra.mxu0 0.0
        %2234 = vmatprep.subr.mxu0 0.0
        %2235 = vmatpush1.msra.mxu0 0.0
        %2236 = vmatprep.subr.mxu0 0.0
        %2237 = vmatpush1.msra.mxu0 0.0
        %2238 = vmatprep.subr.mxu0 0.0
        %2239 = vmatpush1.msra.mxu0 0.0
        %2240 = vmatprep.subr.mxu0 0.0
        %2241 = vmatpush1.msra.mxu0 0.0
        %2242 = vmatprep.subr.mxu0 0.0
        %2243 = vmatpush1.msra.mxu0 0.0
        %2244 = vmatprep.subr.mxu0 0.0
        %2245 = vmatpush1.msra.mxu0 0.0
        %2246 = vmatprep.mubr.f32.mxu0 0.0
        %v2247 = vand.u32 %v313, 4294901760
        %v2248 = vsub.f32 %v313, %v2247
        %v2249 = vand.u32 %v2248, 4294901760
        %v2250 = vsub.f32 %v2248, %v2249
        %v2251 = vand.u32 %v2250, 4294901760
        %2252 = vmatmul.mubr.f32.gmra.mrb[0].mxu0 %v2251
        %v2253 = vpop.f32.mrb[0].mxu0
        %v2254 = vadd.f32 %v878, %v2253
        %v2255 = vpop.f32.mrb[0].mxu0
        %2256 = vdwg.mxu0
        %2257 = vmatprep.subr.mxu0 0.0
        %v2258 = vand.u32 %v322, 4294901760
        %v2259 = vsub.f32 %v322, %v2258
        %v2260 = vand.u32 %v2259, 4294901760
        %v2261 = vsub.f32 %v2259, %v2260
        %v2262 = vand.u32 %v2261, 4294901760
        %2263 = vmatpush1.msra.mxu0 %v2262
        %2264 = vmatprep.subr.mxu0 0.0
        %v2265 = vand.u32 %v323, 4294901760
        %v2266 = vsub.f32 %v323, %v2265
        %v2267 = vand.u32 %v2266, 4294901760
        %v2268 = vsub.f32 %v2266, %v2267
        %v2269 = vand.u32 %v2268, 4294901760
        %2270 = vmatpush1.msra.mxu0 %v2269
        %2271 = vmatprep.subr.mxu0 0.0
        %v2272 = vand.u32 %v324, 4294901760
        %v2273 = vsub.f32 %v324, %v2272
        %v2274 = vand.u32 %v2273, 4294901760
        %v2275 = vsub.f32 %v2273, %v2274
        %v2276 = vand.u32 %v2275, 4294901760
        %2277 = vmatpush1.msra.mxu0 %v2276
        %2278 = vmatprep.subr.mxu0 0.0
        %v2279 = vand.u32 %v325, 4294901760
        %v2280 = vsub.f32 %v325, %v2279
        %v2281 = vand.u32 %v2280, 4294901760
        %v2282 = vsub.f32 %v2280, %v2281
        %v2283 = vand.u32 %v2282, 4294901760
        %2284 = vmatpush1.msra.mxu0 %v2283
        %2285 = vmatprep.subr.mxu0 0.0
        %v2286 = vand.u32 %v326, 4294901760
        %v2287 = vsub.f32 %v326, %v2286
        %v2288 = vand.u32 %v2287, 4294901760
        %v2289 = vsub.f32 %v2287, %v2288
        %v2290 = vand.u32 %v2289, 4294901760
        %2291 = vmatpush1.msra.mxu0 %v2290
        %2292 = vmatprep.subr.mxu0 0.0
        %v2293 = vand.u32 %v327, 4294901760
        %v2294 = vsub.f32 %v327, %v2293
        %v2295 = vand.u32 %v2294, 4294901760
        %v2296 = vsub.f32 %v2294, %v2295
        %v2297 = vand.u32 %v2296, 4294901760
        %2298 = vmatpush1.msra.mxu0 %v2297
        %2299 = vmatprep.subr.mxu0 0.0
        %v2300 = vand.u32 %v328, 4294901760
        %v2301 = vsub.f32 %v328, %v2300
        %v2302 = vand.u32 %v2301, 4294901760
        %v2303 = vsub.f32 %v2301, %v2302
        %v2304 = vand.u32 %v2303, 4294901760
        %2305 = vmatpush1.msra.mxu0 %v2304
        %2306 = vmatprep.subr.mxu0 0.0
        %v2307 = vand.u32 %v329, 4294901760
        %v2308 = vsub.f32 %v329, %v2307
        %v2309 = vand.u32 %v2308, 4294901760
        %v2310 = vsub.f32 %v2308, %v2309
        %v2311 = vand.u32 %v2310, 4294901760
        %2312 = vmatpush1.msra.mxu0 %v2311
        %2313 = vmatprep.subr.mxu0 0.0
        %v2314 = vand.u32 %v330, 4294901760
        %v2315 = vsub.f32 %v330, %v2314
        %v2316 = vand.u32 %v2315, 4294901760
        %v2317 = vsub.f32 %v2315, %v2316
        %v2318 = vand.u32 %v2317, 4294901760
        %2319 = vmatpush1.msra.mxu0 %v2318
        %2320 = vmatprep.subr.mxu0 0.0
        %v2321 = vand.u32 %v331, 4294901760
        %v2322 = vsub.f32 %v331, %v2321
        %v2323 = vand.u32 %v2322, 4294901760
        %v2324 = vsub.f32 %v2322, %v2323
        %v2325 = vand.u32 %v2324, 4294901760
        %2326 = vmatpush1.msra.mxu0 %v2325
        %2327 = vmatprep.subr.mxu0 0.0
        %v2328 = vand.u32 %v332, 4294901760
        %v2329 = vsub.f32 %v332, %v2328
        %v2330 = vand.u32 %v2329, 4294901760
        %v2331 = vsub.f32 %v2329, %v2330
        %v2332 = vand.u32 %v2331, 4294901760
        %2333 = vmatpush1.msra.mxu0 %v2332
        %2334 = vmatprep.subr.mxu0 0.0
        %v2335 = vand.u32 %v333, 4294901760
        %v2336 = vsub.f32 %v333, %v2335
        %v2337 = vand.u32 %v2336, 4294901760
        %v2338 = vsub.f32 %v2336, %v2337
        %v2339 = vand.u32 %v2338, 4294901760
        %2340 = vmatpush1.msra.mxu0 %v2339
        %2341 = vmatprep.subr.mxu0 0.0
        %v2342 = vand.u32 %v334, 4294901760
        %v2343 = vsub.f32 %v334, %v2342
        %v2344 = vand.u32 %v2343, 4294901760
        %v2345 = vsub.f32 %v2343, %v2344
        %v2346 = vand.u32 %v2345, 4294901760
        %2347 = vmatpush1.msra.mxu0 %v2346
        %2348 = vmatprep.subr.mxu0 0.0
        %v2349 = vand.u32 %v335, 4294901760
        %v2350 = vsub.f32 %v335, %v2349
        %v2351 = vand.u32 %v2350, 4294901760
        %v2352 = vsub.f32 %v2350, %v2351
        %v2353 = vand.u32 %v2352, 4294901760
        %2354 = vmatpush1.msra.mxu0 %v2353
        %2355 = vmatprep.subr.mxu0 0.0
        %v2356 = vand.u32 %v336, 4294901760
        %v2357 = vsub.f32 %v336, %v2356
        %v2358 = vand.u32 %v2357, 4294901760
        %v2359 = vsub.f32 %v2357, %v2358
        %v2360 = vand.u32 %v2359, 4294901760
        %2361 = vmatpush1.msra.mxu0 %v2360
        %2362 = vmatprep.subr.mxu0 0.0
        %v2363 = vand.u32 %v337, 4294901760
        %v2364 = vsub.f32 %v337, %v2363
        %v2365 = vand.u32 %v2364, 4294901760
        %v2366 = vsub.f32 %v2364, %v2365
        %v2367 = vand.u32 %v2366, 4294901760
        %2368 = vmatpush1.msra.mxu0 %v2367
        %2369 = vmatprep.subr.mxu0 0.0
        %2370 = vmatpush1.msra.mxu0 0.0
        %2371 = vmatprep.subr.mxu0 0.0
        %2372 = vmatpush1.msra.mxu0 0.0
        %2373 = vmatprep.subr.mxu0 0.0
        %2374 = vmatpush1.msra.mxu0 0.0
        %2375 = vmatprep.subr.mxu0 0.0
        %2376 = vmatpush1.msra.mxu0 0.0
        %2377 = vmatprep.subr.mxu0 0.0
        %2378 = vmatpush1.msra.mxu0 0.0
        %2379 = vmatprep.subr.mxu0 0.0
        %2380 = vmatpush1.msra.mxu0 0.0
        %2381 = vmatprep.subr.mxu0 0.0
        %2382 = vmatpush1.msra.mxu0 0.0
        %2383 = vmatprep.subr.mxu0 0.0
        %2384 = vmatpush1.msra.mxu0 0.0
        %2385 = vmatprep.subr.mxu0 0.0
        %2386 = vmatpush1.msra.mxu0 0.0
        %2387 = vmatprep.subr.mxu0 0.0
        %2388 = vmatpush1.msra.mxu0 0.0
        %2389 = vmatprep.subr.mxu0 0.0
        %2390 = vmatpush1.msra.mxu0 0.0
        %2391 = vmatprep.subr.mxu0 0.0
        %2392 = vmatpush1.msra.mxu0 0.0
        %2393 = vmatprep.subr.mxu0 0.0
        %2394 = vmatpush1.msra.mxu0 0.0
        %2395 = vmatprep.subr.mxu0 0.0
        %2396 = vmatpush1.msra.mxu0 0.0
        %2397 = vmatprep.subr.mxu0 0.0
        %2398 = vmatpush1.msra.mxu0 0.0
        %2399 = vmatprep.subr.mxu0 0.0
        %2400 = vmatpush1.msra.mxu0 0.0
        %2401 = vmatprep.mubr.f32.mxu0 0.0
        %v2402 = vand.u32 %v313, 4294901760
        %2403 = vmatmul.mubr.f32.gmra.mrb[0].mxu0 %v2402
        %v2404 = vpop.f32.mrb[0].mxu0
        %v2405 = vadd.f32 %v2254, %v2404
        %v2406 = vpop.f32.mrb[0].mxu0
        %2407 = vdwg.mxu0
        %2408 = vmatprep.subr.mxu0 0.0
        %v2409 = vand.u32 %v322, 4294901760
        %v2410 = vsub.f32 %v322, %v2409
        %2411 = vmatpush1.msra.mxu0 %v2410
        %2412 = vmatprep.subr.mxu0 0.0
        %v2413 = vand.u32 %v323, 4294901760
        %v2414 = vsub.f32 %v323, %v2413
        %2415 = vmatpush1.msra.mxu0 %v2414
        %2416 = vmatprep.subr.mxu0 0.0
        %v2417 = vand.u32 %v324, 4294901760
        %v2418 = vsub.f32 %v324, %v2417
        %2419 = vmatpush1.msra.mxu0 %v2418
        %2420 = vmatprep.subr.mxu0 0.0
        %v2421 = vand.u32 %v325, 4294901760
        %v2422 = vsub.f32 %v325, %v2421
        %2423 = vmatpush1.msra.mxu0 %v2422
        %2424 = vmatprep.subr.mxu0 0.0
        %v2425 = vand.u32 %v326, 4294901760
        %v2426 = vsub.f32 %v326, %v2425
        %2427 = vmatpush1.msra.mxu0 %v2426
        %2428 = vmatprep.subr.mxu0 0.0
        %v2429 = vand.u32 %v327, 4294901760
        %v2430 = vsub.f32 %v327, %v2429
        %2431 = vmatpush1.msra.mxu0 %v2430
        %2432 = vmatprep.subr.mxu0 0.0
        %v2433 = vand.u32 %v328, 4294901760
        %v2434 = vsub.f32 %v328, %v2433
        %2435 = vmatpush1.msra.mxu0 %v2434
        %2436 = vmatprep.subr.mxu0 0.0
        %v2437 = vand.u32 %v329, 4294901760
        %v2438 = vsub.f32 %v329, %v2437
        %2439 = vmatpush1.msra.mxu0 %v2438
        %2440 = vmatprep.subr.mxu0 0.0
        %v2441 = vand.u32 %v330, 4294901760
        %v2442 = vsub.f32 %v330, %v2441
        %2443 = vmatpush1.msra.mxu0 %v2442
        %2444 = vmatprep.subr.mxu0 0.0
        %v2445 = vand.u32 %v331, 4294901760
        %v2446 = vsub.f32 %v331, %v2445
        %2447 = vmatpush1.msra.mxu0 %v2446
        %2448 = vmatprep.subr.mxu0 0.0
        %v2449 = vand.u32 %v332, 4294901760
        %v2450 = vsub.f32 %v332, %v2449
        %2451 = vmatpush1.msra.mxu0 %v2450
        %2452 = vmatprep.subr.mxu0 0.0
        %v2453 = vand.u32 %v333, 4294901760
        %v2454 = vsub.f32 %v333, %v2453
        %2455 = vmatpush1.msra.mxu0 %v2454
        %2456 = vmatprep.subr.mxu0 0.0
        %v2457 = vand.u32 %v334, 4294901760
        %v2458 = vsub.f32 %v334, %v2457
        %2459 = vmatpush1.msra.mxu0 %v2458
        %2460 = vmatprep.subr.mxu0 0.0
        %v2461 = vand.u32 %v335, 4294901760
        %v2462 = vsub.f32 %v335, %v2461
        %2463 = vmatpush1.msra.mxu0 %v2462
        %2464 = vmatprep.subr.mxu0 0.0
        %v2465 = vand.u32 %v336, 4294901760
        %v2466 = vsub.f32 %v336, %v2465
        %2467 = vmatpush1.msra.mxu0 %v2466
        %2468 = vmatprep.subr.mxu0 0.0
        %v2469 = vand.u32 %v337, 4294901760
        %v2470 = vsub.f32 %v337, %v2469
        %2471 = vmatpush1.msra.mxu0 %v2470
        %2472 = vmatprep.subr.mxu0 0.0
        %2473 = vmatpush1.msra.mxu0 0.0
        %2474 = vmatprep.subr.mxu0 0.0
        %2475 = vmatpush1.msra.mxu0 0.0
        %2476 = vmatprep.subr.mxu0 0.0
        %2477 = vmatpush1.msra.mxu0 0.0
        %2478 = vmatprep.subr.mxu0 0.0
        %2479 = vmatpush1.msra.mxu0 0.0
        %2480 = vmatprep.subr.mxu0 0.0
        %2481 = vmatpush1.msra.mxu0 0.0
        %2482 = vmatprep.subr.mxu0 0.0
        %2483 = vmatpush1.msra.mxu0 0.0
        %2484 = vmatprep.subr.mxu0 0.0
        %2485 = vmatpush1.msra.mxu0 0.0
        %2486 = vmatprep.subr.mxu0 0.0
        %2487 = vmatpush1.msra.mxu0 0.0
        %2488 = vmatprep.subr.mxu0 0.0
        %2489 = vmatpush1.msra.mxu0 0.0
        %2490 = vmatprep.subr.mxu0 0.0
        %2491 = vmatpush1.msra.mxu0 0.0
        %2492 = vmatprep.subr.mxu0 0.0
        %2493 = vmatpush1.msra.mxu0 0.0
        %2494 = vmatprep.subr.mxu0 0.0
        %2495 = vmatpush1.msra.mxu0 0.0
        %2496 = vmatprep.subr.mxu0 0.0
        %2497 = vmatpush1.msra.mxu0 0.0
        %2498 = vmatprep.subr.mxu0 0.0
        %2499 = vmatpush1.msra.mxu0 0.0
        %2500 = vmatprep.subr.mxu0 0.0
        %2501 = vmatpush1.msra.mxu0 0.0
        %2502 = vmatprep.subr.mxu0 0.0
        %2503 = vmatpush1.msra.mxu0 0.0
        %2504 = vmatprep.mubr.f32.mxu0 0.0
        %v2505 = vand.u32 %v313, 4294901760
        %v2506 = vsub.f32 %v313, %v2505
        %2507 = vmatmul.mubr.f32.gmra.mrb[0].mxu0 %v2506
        %v2508 = vpop.f32.mrb[0].mxu0
        %v2509 = vadd.f32 %v2405, %v2508
        %v2510 = vpop.f32.mrb[0].mxu0
        %2511 = vdwg.mxu0
        %2512 = vmatprep.subr.mxu0 0.0
        %v2513 = vand.u32 %v322, 4294901760
        %2514 = vmatpush1.msra.mxu0 %v2513
        %2515 = vmatprep.subr.mxu0 0.0
        %v2516 = vand.u32 %v323, 4294901760
        %2517 = vmatpush1.msra.mxu0 %v2516
        %2518 = vmatprep.subr.mxu0 0.0
        %v2519 = vand.u32 %v324, 4294901760
        %2520 = vmatpush1.msra.mxu0 %v2519
        %2521 = vmatprep.subr.mxu0 0.0
        %v2522 = vand.u32 %v325, 4294901760
        %2523 = vmatpush1.msra.mxu0 %v2522
        %2524 = vmatprep.subr.mxu0 0.0
        %v2525 = vand.u32 %v326, 4294901760
        %2526 = vmatpush1.msra.mxu0 %v2525
        %2527 = vmatprep.subr.mxu0 0.0
        %v2528 = vand.u32 %v327, 4294901760
        %2529 = vmatpush1.msra.mxu0 %v2528
        %2530 = vmatprep.subr.mxu0 0.0
        %v2531 = vand.u32 %v328, 4294901760
        %2532 = vmatpush1.msra.mxu0 %v2531
        %2533 = vmatprep.subr.mxu0 0.0
        %v2534 = vand.u32 %v329, 4294901760
        %2535 = vmatpush1.msra.mxu0 %v2534
        %2536 = vmatprep.subr.mxu0 0.0
        %v2537 = vand.u32 %v330, 4294901760
        %2538 = vmatpush1.msra.mxu0 %v2537
        %2539 = vmatprep.subr.mxu0 0.0
        %v2540 = vand.u32 %v331, 4294901760
        %2541 = vmatpush1.msra.mxu0 %v2540
        %2542 = vmatprep.subr.mxu0 0.0
        %v2543 = vand.u32 %v332, 4294901760
        %2544 = vmatpush1.msra.mxu0 %v2543
        %2545 = vmatprep.subr.mxu0 0.0
        %v2546 = vand.u32 %v333, 4294901760
        %2547 = vmatpush1.msra.mxu0 %v2546
        %2548 = vmatprep.subr.mxu0 0.0
        %v2549 = vand.u32 %v334, 4294901760
        %2550 = vmatpush1.msra.mxu0 %v2549
        %2551 = vmatprep.subr.mxu0 0.0
        %v2552 = vand.u32 %v335, 4294901760
        %2553 = vmatpush1.msra.mxu0 %v2552
        %2554 = vmatprep.subr.mxu0 0.0
        %v2555 = vand.u32 %v336, 4294901760
        %2556 = vmatpush1.msra.mxu0 %v2555
        %2557 = vmatprep.subr.mxu0 0.0
        %v2558 = vand.u32 %v337, 4294901760
        %2559 = vmatpush1.msra.mxu0 %v2558
        %2560 = vmatprep.subr.mxu0 0.0
        %2561 = vmatpush1.msra.mxu0 0.0
        %2562 = vmatprep.subr.mxu0 0.0
        %2563 = vmatpush1.msra.mxu0 0.0
        %2564 = vmatprep.subr.mxu0 0.0
        %2565 = vmatpush1.msra.mxu0 0.0
        %2566 = vmatprep.subr.mxu0 0.0
        %2567 = vmatpush1.msra.mxu0 0.0
        %2568 = vmatprep.subr.mxu0 0.0
        %2569 = vmatpush1.msra.mxu0 0.0
        %2570 = vmatprep.subr.mxu0 0.0
        %2571 = vmatpush1.msra.mxu0 0.0
        %2572 = vmatprep.subr.mxu0 0.0
        %2573 = vmatpush1.msra.mxu0 0.0
        %2574 = vmatprep.subr.mxu0 0.0
        %2575 = vmatpush1.msra.mxu0 0.0
        %2576 = vmatprep.subr.mxu0 0.0
        %2577 = vmatpush1.msra.mxu0 0.0
        %2578 = vmatprep.subr.mxu0 0.0
        %2579 = vmatpush1.msra.mxu0 0.0
        %2580 = vmatprep.subr.mxu0 0.0
        %2581 = vmatpush1.msra.mxu0 0.0
        %2582 = vmatprep.subr.mxu0 0.0
        %2583 = vmatpush1.msra.mxu0 0.0
        %2584 = vmatprep.subr.mxu0 0.0
        %2585 = vmatpush1.msra.mxu0 0.0
        %2586 = vmatprep.subr.mxu0 0.0
        %2587 = vmatpush1.msra.mxu0 0.0
        %2588 = vmatprep.subr.mxu0 0.0
        %2589 = vmatpush1.msra.mxu0 0.0
        %2590 = vmatprep.subr.mxu0 0.0
        %2591 = vmatpush1.msra.mxu0 0.0
        %2592 = vmatprep.mubr.f32.mxu0 0.0
        %v2593 = vand.u32 %v313, 4294901760
        %v2594 = vsub.f32 %v313, %v2593
        %v2595 = vand.u32 %v2594, 4294901760
        %2596 = vmatmul.mubr.f32.gmra.mrb[0].mxu0 %v2595
        %v2597 = vpop.f32.mrb[0].mxu0
        %v2598 = vadd.f32 %v2509, %v2597
        %v2599 = vpop.f32.mrb[0].mxu0
        %2600 = vdwg.mxu0
        %2601 = vmatprep.subr.mxu0 0.0
        %v2602 = vand.u32 %v322, 4294901760
        %v2603 = vsub.f32 %v322, %v2602
        %v2604 = vand.u32 %v2603, 4294901760
        %2605 = vmatpush1.msra.mxu0 %v2604
        %2606 = vmatprep.subr.mxu0 0.0
        %v2607 = vand.u32 %v323, 4294901760
        %v2608 = vsub.f32 %v323, %v2607
        %v2609 = vand.u32 %v2608, 4294901760
        %2610 = vmatpush1.msra.mxu0 %v2609
        %2611 = vmatprep.subr.mxu0 0.0
        %v2612 = vand.u32 %v324, 4294901760
        %v2613 = vsub.f32 %v324, %v2612
        %v2614 = vand.u32 %v2613, 4294901760
        %2615 = vmatpush1.msra.mxu0 %v2614
        %2616 = vmatprep.subr.mxu0 0.0
        %v2617 = vand.u32 %v325, 4294901760
        %v2618 = vsub.f32 %v325, %v2617
        %v2619 = vand.u32 %v2618, 4294901760
        %2620 = vmatpush1.msra.mxu0 %v2619
        %2621 = vmatprep.subr.mxu0 0.0
        %v2622 = vand.u32 %v326, 4294901760
        %v2623 = vsub.f32 %v326, %v2622
        %v2624 = vand.u32 %v2623, 4294901760
        %2625 = vmatpush1.msra.mxu0 %v2624
        %2626 = vmatprep.subr.mxu0 0.0
        %v2627 = vand.u32 %v327, 4294901760
        %v2628 = vsub.f32 %v327, %v2627
        %v2629 = vand.u32 %v2628, 4294901760
        %2630 = vmatpush1.msra.mxu0 %v2629
        %2631 = vmatprep.subr.mxu0 0.0
        %v2632 = vand.u32 %v328, 4294901760
        %v2633 = vsub.f32 %v328, %v2632
        %v2634 = vand.u32 %v2633, 4294901760
        %2635 = vmatpush1.msra.mxu0 %v2634
        %2636 = vmatprep.subr.mxu0 0.0
        %v2637 = vand.u32 %v329, 4294901760
        %v2638 = vsub.f32 %v329, %v2637
        %v2639 = vand.u32 %v2638, 4294901760
        %2640 = vmatpush1.msra.mxu0 %v2639
        %2641 = vmatprep.subr.mxu0 0.0
        %v2642 = vand.u32 %v330, 4294901760
        %v2643 = vsub.f32 %v330, %v2642
        %v2644 = vand.u32 %v2643, 4294901760
        %2645 = vmatpush1.msra.mxu0 %v2644
        %2646 = vmatprep.subr.mxu0 0.0
        %v2647 = vand.u32 %v331, 4294901760
        %v2648 = vsub.f32 %v331, %v2647
        %v2649 = vand.u32 %v2648, 4294901760
        %2650 = vmatpush1.msra.mxu0 %v2649
        %2651 = vmatprep.subr.mxu0 0.0
        %v2652 = vand.u32 %v332, 4294901760
        %v2653 = vsub.f32 %v332, %v2652
        %v2654 = vand.u32 %v2653, 4294901760
        %2655 = vmatpush1.msra.mxu0 %v2654
        %2656 = vmatprep.subr.mxu0 0.0
        %v2657 = vand.u32 %v333, 4294901760
        %v2658 = vsub.f32 %v333, %v2657
        %v2659 = vand.u32 %v2658, 4294901760
        %2660 = vmatpush1.msra.mxu0 %v2659
        %2661 = vmatprep.subr.mxu0 0.0
        %v2662 = vand.u32 %v334, 4294901760
        %v2663 = vsub.f32 %v334, %v2662
        %v2664 = vand.u32 %v2663, 4294901760
        %2665 = vmatpush1.msra.mxu0 %v2664
        %2666 = vmatprep.subr.mxu0 0.0
        %v2667 = vand.u32 %v335, 4294901760
        %v2668 = vsub.f32 %v335, %v2667
        %v2669 = vand.u32 %v2668, 4294901760
        %2670 = vmatpush1.msra.mxu0 %v2669
        %2671 = vmatprep.subr.mxu0 0.0
        %v2672 = vand.u32 %v336, 4294901760
        %v2673 = vsub.f32 %v336, %v2672
        %v2674 = vand.u32 %v2673, 4294901760
        %2675 = vmatpush1.msra.mxu0 %v2674
        %2676 = vmatprep.subr.mxu0 0.0
        %v2677 = vand.u32 %v337, 4294901760
        %v2678 = vsub.f32 %v337, %v2677
        %v2679 = vand.u32 %v2678, 4294901760
        %2680 = vmatpush1.msra.mxu0 %v2679
        %2681 = vmatprep.subr.mxu0 0.0
        %2682 = vmatpush1.msra.mxu0 0.0
        %2683 = vmatprep.subr.mxu0 0.0
        %2684 = vmatpush1.msra.mxu0 0.0
        %2685 = vmatprep.subr.mxu0 0.0
        %2686 = vmatpush1.msra.mxu0 0.0
        %2687 = vmatprep.subr.mxu0 0.0
        %2688 = vmatpush1.msra.mxu0 0.0
        %2689 = vmatprep.subr.mxu0 0.0
        %2690 = vmatpush1.msra.mxu0 0.0
        %2691 = vmatprep.subr.mxu0 0.0
        %2692 = vmatpush1.msra.mxu0 0.0
        %2693 = vmatprep.subr.mxu0 0.0
        %2694 = vmatpush1.msra.mxu0 0.0
        %2695 = vmatprep.subr.mxu0 0.0
        %2696 = vmatpush1.msra.mxu0 0.0
        %2697 = vmatprep.subr.mxu0 0.0
        %2698 = vmatpush1.msra.mxu0 0.0
        %2699 = vmatprep.subr.mxu0 0.0
        %2700 = vmatpush1.msra.mxu0 0.0
        %2701 = vmatprep.subr.mxu0 0.0
        %2702 = vmatpush1.msra.mxu0 0.0
        %2703 = vmatprep.subr.mxu0 0.0
        %2704 = vmatpush1.msra.mxu0 0.0
        %2705 = vmatprep.subr.mxu0 0.0
        %2706 = vmatpush1.msra.mxu0 0.0
        %2707 = vmatprep.subr.mxu0 0.0
        %2708 = vmatpush1.msra.mxu0 0.0
        %2709 = vmatprep.subr.mxu0 0.0
        %2710 = vmatpush1.msra.mxu0 0.0
        %2711 = vmatprep.subr.mxu0 0.0
        %2712 = vmatpush1.msra.mxu0 0.0
        %2713 = vmatprep.mubr.f32.mxu0 0.0
        %v2714 = vand.u32 %v313, 4294901760
        %2715 = vmatmul.mubr.f32.gmra.mrb[0].mxu0 %v2714
        %v2716 = vpop.f32.mrb[0].mxu0
        %v2717 = vadd.f32 %v2598, %v2716
        %v2718 = vpop.f32.mrb[0].mxu0
        %2719 = vdwg.mxu0
        %2720 = vmatprep.subr.mxu0 0.0
        %v2721 = vand.u32 %v322, 4294901760
        %2722 = vmatpush1.msra.mxu0 %v2721
        %2723 = vmatprep.subr.mxu0 0.0
        %v2724 = vand.u32 %v323, 4294901760
        %2725 = vmatpush1.msra.mxu0 %v2724
        %2726 = vmatprep.subr.mxu0 0.0
        %v2727 = vand.u32 %v324, 4294901760
        %2728 = vmatpush1.msra.mxu0 %v2727
        %2729 = vmatprep.subr.mxu0 0.0
        %v2730 = vand.u32 %v325, 4294901760
        %2731 = vmatpush1.msra.mxu0 %v2730
        %2732 = vmatprep.subr.mxu0 0.0
        %v2733 = vand.u32 %v326, 4294901760
        %2734 = vmatpush1.msra.mxu0 %v2733
        %2735 = vmatprep.subr.mxu0 0.0
        %v2736 = vand.u32 %v327, 4294901760
        %2737 = vmatpush1.msra.mxu0 %v2736
        %2738 = vmatprep.subr.mxu0 0.0
        %v2739 = vand.u32 %v328, 4294901760
        %2740 = vmatpush1.msra.mxu0 %v2739
        %2741 = vmatprep.subr.mxu0 0.0
        %v2742 = vand.u32 %v329, 4294901760
        %2743 = vmatpush1.msra.mxu0 %v2742
        %2744 = vmatprep.subr.mxu0 0.0
        %v2745 = vand.u32 %v330, 4294901760
        %2746 = vmatpush1.msra.mxu0 %v2745
        %2747 = vmatprep.subr.mxu0 0.0
        %v2748 = vand.u32 %v331, 4294901760
        %2749 = vmatpush1.msra.mxu0 %v2748
        %2750 = vmatprep.subr.mxu0 0.0
        %v2751 = vand.u32 %v332, 4294901760
        %2752 = vmatpush1.msra.mxu0 %v2751
        %2753 = vmatprep.subr.mxu0 0.0
        %v2754 = vand.u32 %v333, 4294901760
        %2755 = vmatpush1.msra.mxu0 %v2754
        %2756 = vmatprep.subr.mxu0 0.0
        %v2757 = vand.u32 %v334, 4294901760
        %2758 = vmatpush1.msra.mxu0 %v2757
        %2759 = vmatprep.subr.mxu0 0.0
        %v2760 = vand.u32 %v335, 4294901760
        %2761 = vmatpush1.msra.mxu0 %v2760
        %2762 = vmatprep.subr.mxu0 0.0
        %v2763 = vand.u32 %v336, 4294901760
        %2764 = vmatpush1.msra.mxu0 %v2763
        %2765 = vmatprep.subr.mxu0 0.0
        %v2766 = vand.u32 %v337, 4294901760
        %2767 = vmatpush1.msra.mxu0 %v2766
        %2768 = vmatprep.subr.mxu0 0.0
        %2769 = vmatpush1.msra.mxu0 0.0
        %2770 = vmatprep.subr.mxu0 0.0
        %2771 = vmatpush1.msra.mxu0 0.0
        %2772 = vmatprep.subr.mxu0 0.0
        %2773 = vmatpush1.msra.mxu0 0.0
        %2774 = vmatprep.subr.mxu0 0.0
        %2775 = vmatpush1.msra.mxu0 0.0
        %2776 = vmatprep.subr.mxu0 0.0
        %2777 = vmatpush1.msra.mxu0 0.0
        %2778 = vmatprep.subr.mxu0 0.0
        %2779 = vmatpush1.msra.mxu0 0.0
        %2780 = vmatprep.subr.mxu0 0.0
        %2781 = vmatpush1.msra.mxu0 0.0
        %2782 = vmatprep.subr.mxu0 0.0
        %2783 = vmatpush1.msra.mxu0 0.0
        %2784 = vmatprep.subr.mxu0 0.0
        %2785 = vmatpush1.msra.mxu0 0.0
        %2786 = vmatprep.subr.mxu0 0.0
        %2787 = vmatpush1.msra.mxu0 0.0
        %2788 = vmatprep.subr.mxu0 0.0
        %2789 = vmatpush1.msra.mxu0 0.0
        %2790 = vmatprep.subr.mxu0 0.0
        %2791 = vmatpush1.msra.mxu0 0.0
        %2792 = vmatprep.subr.mxu0 0.0
        %2793 = vmatpush1.msra.mxu0 0.0
        %2794 = vmatprep.subr.mxu0 0.0
        %2795 = vmatpush1.msra.mxu0 0.0
        %2796 = vmatprep.subr.mxu0 0.0
        %2797 = vmatpush1.msra.mxu0 0.0
        %2798 = vmatprep.subr.mxu0 0.0
        %2799 = vmatpush1.msra.mxu0 0.0
        %2800 = vmatprep.mubr.f32.mxu0 0.0
        %v2801 = vand.u32 %v313, 4294901760
        %2802 = vmatmul.mubr.f32.gmra.mrb[0].mxu0 %v2801
        %v2803 = vpop.f32.mrb[0].mxu0
        %v2804 = vadd.f32 %v2717, %v2803
        %v2805 = vpop.f32.mrb[0].mxu0
        %2806 = vdwg.mxu0
        %v2807 = vadd.f32 %v2804, %v1522
        %v2808 = vmax.f32 %v1523, %v2165
        %v2809 = vmax.f32 %v2808, %v2807
        %v2810 = vsub.f32 %v1523, %v2809
        %v2811 = vmul.f32 %v2810, 1.442695
        %v2812 = vpow.pop %v2811
        %v2813 = vsub.f32 %v2165, %v2809
        %v2814 = vmul.f32 %v2813, 1.442695
        %v2815 = vpow.pop %v2814
        %v2816 = vsub.f32 %v2807, %v2809
        %v2817 = vmul.f32 %v2816, 1.442695
        %v2818 = vpow.pop %v2817
        %v2819 = vadd.f32 %v2812, %v2815
        %v2820 = vadd.f32 %v2819, %v2818
        %v2821 = vrcp.pop %v2820
        %v2822 = vmul.f32 1.0, %v2821
        %v2823 = vmul.f32 %v2812, %v2822
        %vm2824 = vcmask 31744
        %v2826 = vsel %vm2824, %v2823, 0
        %vm2828 = vcmask 1043456
        %v2830 = vsel %vm2828, %v338, 0
        %2832 = vmatprep.subr.mxu0 0.0
        %v2833 = vand.u32 %v2830, 4294901760
        %2834 = vmatpush1.msra.mxu0 %v2833
        %2835 = vmatprep.subr.mxu0 0.0
        %2836 = vmatpush1.msra.mxu0 0.0
        %2837 = vmatprep.subr.mxu0 0.0
        %2838 = vmatpush1.msra.mxu0 0.0
        %2839 = vmatprep.subr.mxu0 0.0
        %2840 = vmatpush1.msra.mxu0 0.0
        %2841 = vmatprep.subr.mxu0 0.0
        %2842 = vmatpush1.msra.mxu0 0.0
        %2843 = vmatprep.subr.mxu0 0.0
        %2844 = vmatpush1.msra.mxu0 0.0
        %2845 = vmatprep.subr.mxu0 0.0
        %2846 = vmatpush1.msra.mxu0 0.0
        %2847 = vmatprep.subr.mxu0 0.0
        %2848 = vmatpush1.msra.mxu0 0.0
        %2849 = vmatprep.subr.mxu0 0.0
        %2850 = vmatpush1.msra.mxu0 0.0
        %2851 = vmatprep.subr.mxu0 0.0
        %2852 = vmatpush1.msra.mxu0 0.0
        %2853 = vmatprep.subr.mxu0 0.0
        %2854 = vmatpush1.msra.mxu0 0.0
        %2855 = vmatprep.subr.mxu0 0.0
        %2856 = vmatpush1.msra.mxu0 0.0
        %2857 = vmatprep.subr.mxu0 0.0
        %2858 = vmatpush1.msra.mxu0 0.0
        %2859 = vmatprep.subr.mxu0 0.0
        %2860 = vmatpush1.msra.mxu0 0.0
        %2861 = vmatprep.subr.mxu0 0.0
        %2862 = vmatpush1.msra.mxu0 0.0
        %2863 = vmatprep.subr.mxu0 0.0
        %2864 = vmatpush1.msra.mxu0 0.0
        %2865 = vmatprep.subr.mxu0 0.0
        %2866 = vmatpush1.msra.mxu0 0.0
        %2867 = vmatprep.subr.mxu0 0.0
        %2868 = vmatpush1.msra.mxu0 0.0
        %2869 = vmatprep.subr.mxu0 0.0
        %2870 = vmatpush1.msra.mxu0 0.0
        %2871 = vmatprep.subr.mxu0 0.0
        %2872 = vmatpush1.msra.mxu0 0.0
        %2873 = vmatprep.subr.mxu0 0.0
        %2874 = vmatpush1.msra.mxu0 0.0
        %2875 = vmatprep.subr.mxu0 0.0
        %2876 = vmatpush1.msra.mxu0 0.0
        %2877 = vmatprep.subr.mxu0 0.0
        %2878 = vmatpush1.msra.mxu0 0.0
        %2879 = vmatprep.subr.mxu0 0.0
        %2880 = vmatpush1.msra.mxu0 0.0
        %2881 = vmatprep.subr.mxu0 0.0
        %2882 = vmatpush1.msra.mxu0 0.0
        %2883 = vmatprep.subr.mxu0 0.0
        %2884 = vmatpush1.msra.mxu0 0.0
        %2885 = vmatprep.subr.mxu0 0.0
        %2886 = vmatpush1.msra.mxu0 0.0
        %2887 = vmatprep.subr.mxu0 0.0
        %2888 = vmatpush1.msra.mxu0 0.0
        %2889 = vmatprep.subr.mxu0 0.0
        %2890 = vmatpush1.msra.mxu0 0.0
        %2891 = vmatprep.subr.mxu0 0.0
        %2892 = vmatpush1.msra.mxu0 0.0
        %2893 = vmatprep.subr.mxu0 0.0
        %2894 = vmatpush1.msra.mxu0 0.0
        %2895 = vmatprep.subr.mxu0 0.0
        %2896 = vmatpush1.msra.mxu0 0.0
        %2897 = vmatprep.mubr.f32.mxu0 0.0
        %v2898 = vand.u32 %v2826, 4294901760
        %v2899 = vsub.f32 %v2826, %v2898
        %v2900 = vand.u32 %v2899, 4294901760
        %v2901 = vsub.f32 %v2899, %v2900
        %v2902 = vand.u32 %v2901, 4294901760
        %2903 = vmatmul.mubr.f32.gmra.mrb[0].mxu0 %v2902
        %v2904 = vpop.f32.mrb[0].mxu0
        %v2905 = vadd.f32 0.0, %v2904
        %v2906 = vpop.f32.mrb[0].mxu0
        %2907 = vdwg.mxu0
        %2908 = vmatprep.subr.mxu0 0.0
        %v2909 = vand.u32 %v2830, 4294901760
        %v2910 = vsub.f32 %v2830, %v2909
        %v2911 = vand.u32 %v2910, 4294901760
        %v2912 = vsub.f32 %v2910, %v2911
        %v2913 = vand.u32 %v2912, 4294901760
        %2914 = vmatpush1.msra.mxu0 %v2913
        %2915 = vmatprep.subr.mxu0 0.0
        %2916 = vmatpush1.msra.mxu0 0.0
        %2917 = vmatprep.subr.mxu0 0.0
        %2918 = vmatpush1.msra.mxu0 0.0
        %2919 = vmatprep.subr.mxu0 0.0
        %2920 = vmatpush1.msra.mxu0 0.0
        %2921 = vmatprep.subr.mxu0 0.0
        %2922 = vmatpush1.msra.mxu0 0.0
        %2923 = vmatprep.subr.mxu0 0.0
        %2924 = vmatpush1.msra.mxu0 0.0
        %2925 = vmatprep.subr.mxu0 0.0
        %2926 = vmatpush1.msra.mxu0 0.0
        %2927 = vmatprep.subr.mxu0 0.0
        %2928 = vmatpush1.msra.mxu0 0.0
        %2929 = vmatprep.subr.mxu0 0.0
        %2930 = vmatpush1.msra.mxu0 0.0
        %2931 = vmatprep.subr.mxu0 0.0
        %2932 = vmatpush1.msra.mxu0 0.0
        %2933 = vmatprep.subr.mxu0 0.0
        %2934 = vmatpush1.msra.mxu0 0.0
        %2935 = vmatprep.subr.mxu0 0.0
        %2936 = vmatpush1.msra.mxu0 0.0
        %2937 = vmatprep.subr.mxu0 0.0
        %2938 = vmatpush1.msra.mxu0 0.0
        %2939 = vmatprep.subr.mxu0 0.0
        %2940 = vmatpush1.msra.mxu0 0.0
        %2941 = vmatprep.subr.mxu0 0.0
        %2942 = vmatpush1.msra.mxu0 0.0
        %2943 = vmatprep.subr.mxu0 0.0
        %2944 = vmatpush1.msra.mxu0 0.0
        %2945 = vmatprep.subr.mxu0 0.0
        %2946 = vmatpush1.msra.mxu0 0.0
        %2947 = vmatprep.subr.mxu0 0.0
        %2948 = vmatpush1.msra.mxu0 0.0
        %2949 = vmatprep.subr.mxu0 0.0
        %2950 = vmatpush1.msra.mxu0 0.0
        %2951 = vmatprep.subr.mxu0 0.0
        %2952 = vmatpush1.msra.mxu0 0.0
        %2953 = vmatprep.subr.mxu0 0.0
        %2954 = vmatpush1.msra.mxu0 0.0
        %2955 = vmatprep.subr.mxu0 0.0
        %2956 = vmatpush1.msra.mxu0 0.0
        %2957 = vmatprep.subr.mxu0 0.0
        %2958 = vmatpush1.msra.mxu0 0.0
        %2959 = vmatprep.subr.mxu0 0.0
        %2960 = vmatpush1.msra.mxu0 0.0
        %2961 = vmatprep.subr.mxu0 0.0
        %2962 = vmatpush1.msra.mxu0 0.0
        %2963 = vmatprep.subr.mxu0 0.0
        %2964 = vmatpush1.msra.mxu0 0.0
        %2965 = vmatprep.subr.mxu0 0.0
        %2966 = vmatpush1.msra.mxu0 0.0
        %2967 = vmatprep.subr.mxu0 0.0
        %2968 = vmatpush1.msra.mxu0 0.0
        %2969 = vmatprep.subr.mxu0 0.0
        %2970 = vmatpush1.msra.mxu0 0.0
        %2971 = vmatprep.subr.mxu0 0.0
        %2972 = vmatpush1.msra.mxu0 0.0
        %2973 = vmatprep.subr.mxu0 0.0
        %2974 = vmatpush1.msra.mxu0 0.0
        %2975 = vmatprep.subr.mxu0 0.0
        %2976 = vmatpush1.msra.mxu0 0.0
        %2977 = vmatprep.mubr.f32.mxu0 0.0
        %v2978 = vand.u32 %v2826, 4294901760
        %2979 = vmatmul.mubr.f32.gmra.mrb[0].mxu0 %v2978
        %v2980 = vpop.f32.mrb[0].mxu0
        %v2981 = vadd.f32 %v2905, %v2980
        %v2982 = vpop.f32.mrb[0].mxu0
        %2983 = vdwg.mxu0
        %2984 = vmatprep.subr.mxu0 0.0
        %v2985 = vand.u32 %v2830, 4294901760
        %v2986 = vsub.f32 %v2830, %v2985
        %2987 = vmatpush1.msra.mxu0 %v2986
        %2988 = vmatprep.subr.mxu0 0.0
        %2989 = vmatpush1.msra.mxu0 0.0
        %2990 = vmatprep.subr.mxu0 0.0
        %2991 = vmatpush1.msra.mxu0 0.0
        %2992 = vmatprep.subr.mxu0 0.0
        %2993 = vmatpush1.msra.mxu0 0.0
        %2994 = vmatprep.subr.mxu0 0.0
        %2995 = vmatpush1.msra.mxu0 0.0
        %2996 = vmatprep.subr.mxu0 0.0
        %2997 = vmatpush1.msra.mxu0 0.0
        %2998 = vmatprep.subr.mxu0 0.0
        %2999 = vmatpush1.msra.mxu0 0.0
        %3000 = vmatprep.subr.mxu0 0.0
        %3001 = vmatpush1.msra.mxu0 0.0
        %3002 = vmatprep.subr.mxu0 0.0
        %3003 = vmatpush1.msra.mxu0 0.0
        %3004 = vmatprep.subr.mxu0 0.0
        %3005 = vmatpush1.msra.mxu0 0.0
        %3006 = vmatprep.subr.mxu0 0.0
        %3007 = vmatpush1.msra.mxu0 0.0
        %3008 = vmatprep.subr.mxu0 0.0
        %3009 = vmatpush1.msra.mxu0 0.0
        %3010 = vmatprep.subr.mxu0 0.0
        %3011 = vmatpush1.msra.mxu0 0.0
        %3012 = vmatprep.subr.mxu0 0.0
        %3013 = vmatpush1.msra.mxu0 0.0
        %3014 = vmatprep.subr.mxu0 0.0
        %3015 = vmatpush1.msra.mxu0 0.0
        %3016 = vmatprep.subr.mxu0 0.0
        %3017 = vmatpush1.msra.mxu0 0.0
        %3018 = vmatprep.subr.mxu0 0.0
        %3019 = vmatpush1.msra.mxu0 0.0
        %3020 = vmatprep.subr.mxu0 0.0
        %3021 = vmatpush1.msra.mxu0 0.0
        %3022 = vmatprep.subr.mxu0 0.0
        %3023 = vmatpush1.msra.mxu0 0.0
        %3024 = vmatprep.subr.mxu0 0.0
        %3025 = vmatpush1.msra.mxu0 0.0
        %3026 = vmatprep.subr.mxu0 0.0
        %3027 = vmatpush1.msra.mxu0 0.0
        %3028 = vmatprep.subr.mxu0 0.0
        %3029 = vmatpush1.msra.mxu0 0.0
        %3030 = vmatprep.subr.mxu0 0.0
        %3031 = vmatpush1.msra.mxu0 0.0
        %3032 = vmatprep.subr.mxu0 0.0
        %3033 = vmatpush1.msra.mxu0 0.0
        %3034 = vmatprep.subr.mxu0 0.0
        %3035 = vmatpush1.msra.mxu0 0.0
        %3036 = vmatprep.subr.mxu0 0.0
        %3037 = vmatpush1.msra.mxu0 0.0
        %3038 = vmatprep.subr.mxu0 0.0
        %3039 = vmatpush1.msra.mxu0 0.0
        %3040 = vmatprep.subr.mxu0 0.0
        %3041 = vmatpush1.msra.mxu0 0.0
        %3042 = vmatprep.subr.mxu0 0.0
        %3043 = vmatpush1.msra.mxu0 0.0
        %3044 = vmatprep.subr.mxu0 0.0
        %3045 = vmatpush1.msra.mxu0 0.0
        %3046 = vmatprep.subr.mxu0 0.0
        %3047 = vmatpush1.msra.mxu0 0.0
        %3048 = vmatprep.subr.mxu0 0.0
        %3049 = vmatpush1.msra.mxu0 0.0
        %3050 = vmatprep.mubr.f32.mxu0 0.0
        %v3051 = vand.u32 %v2826, 4294901760
        %v3052 = vsub.f32 %v2826, %v3051
        %3053 = vmatmul.mubr.f32.gmra.mrb[0].mxu0 %v3052
        %v3054 = vpop.f32.mrb[0].mxu0
        %v3055 = vadd.f32 %v2981, %v3054
        %v3056 = vpop.f32.mrb[0].mxu0
        %3057 = vdwg.mxu0
        %3058 = vmatprep.subr.mxu0 0.0
        %v3059 = vand.u32 %v2830, 4294901760
        %3060 = vmatpush1.msra.mxu0 %v3059
        %3061 = vmatprep.subr.mxu0 0.0
        %3062 = vmatpush1.msra.mxu0 0.0
        %3063 = vmatprep.subr.mxu0 0.0
        %3064 = vmatpush1.msra.mxu0 0.0
        %3065 = vmatprep.subr.mxu0 0.0
        %3066 = vmatpush1.msra.mxu0 0.0
        %3067 = vmatprep.subr.mxu0 0.0
        %3068 = vmatpush1.msra.mxu0 0.0
        %3069 = vmatprep.subr.mxu0 0.0
        %3070 = vmatpush1.msra.mxu0 0.0
        %3071 = vmatprep.subr.mxu0 0.0
        %3072 = vmatpush1.msra.mxu0 0.0
        %3073 = vmatprep.subr.mxu0 0.0
        %3074 = vmatpush1.msra.mxu0 0.0
        %3075 = vmatprep.subr.mxu0 0.0
        %3076 = vmatpush1.msra.mxu0 0.0
        %3077 = vmatprep.subr.mxu0 0.0
        %3078 = vmatpush1.msra.mxu0 0.0
        %3079 = vmatprep.subr.mxu0 0.0
        %3080 = vmatpush1.msra.mxu0 0.0
        %3081 = vmatprep.subr.mxu0 0.0
        %3082 = vmatpush1.msra.mxu0 0.0
        %3083 = vmatprep.subr.mxu0 0.0
        %3084 = vmatpush1.msra.mxu0 0.0
        %3085 = vmatprep.subr.mxu0 0.0
        %3086 = vmatpush1.msra.mxu0 0.0
        %3087 = vmatprep.subr.mxu0 0.0
        %3088 = vmatpush1.msra.mxu0 0.0
        %3089 = vmatprep.subr.mxu0 0.0
        %3090 = vmatpush1.msra.mxu0 0.0
        %3091 = vmatprep.subr.mxu0 0.0
        %3092 = vmatpush1.msra.mxu0 0.0
        %3093 = vmatprep.subr.mxu0 0.0
        %3094 = vmatpush1.msra.mxu0 0.0
        %3095 = vmatprep.subr.mxu0 0.0
        %3096 = vmatpush1.msra.mxu0 0.0
        %3097 = vmatprep.subr.mxu0 0.0
        %3098 = vmatpush1.msra.mxu0 0.0
        %3099 = vmatprep.subr.mxu0 0.0
        %3100 = vmatpush1.msra.mxu0 0.0
        %3101 = vmatprep.subr.mxu0 0.0
        %3102 = vmatpush1.msra.mxu0 0.0
        %3103 = vmatprep.subr.mxu0 0.0
        %3104 = vmatpush1.msra.mxu0 0.0
        %3105 = vmatprep.subr.mxu0 0.0
        %3106 = vmatpush1.msra.mxu0 0.0
        %3107 = vmatprep.subr.mxu0 0.0
        %3108 = vmatpush1.msra.mxu0 0.0
        %3109 = vmatprep.subr.mxu0 0.0
        %3110 = vmatpush1.msra.mxu0 0.0
        %3111 = vmatprep.subr.mxu0 0.0
        %3112 = vmatpush1.msra.mxu0 0.0
        %3113 = vmatprep.subr.mxu0 0.0
        %3114 = vmatpush1.msra.mxu0 0.0
        %3115 = vmatprep.subr.mxu0 0.0
        %3116 = vmatpush1.msra.mxu0 0.0
        %3117 = vmatprep.subr.mxu0 0.0
        %3118 = vmatpush1.msra.mxu0 0.0
        %3119 = vmatprep.subr.mxu0 0.0
        %3120 = vmatpush1.msra.mxu0 0.0
        %3121 = vmatprep.subr.mxu0 0.0
        %3122 = vmatpush1.msra.mxu0 0.0
        %3123 = vmatprep.mubr.f32.mxu0 0.0
        %v3124 = vand.u32 %v2826, 4294901760
        %v3125 = vsub.f32 %v2826, %v3124
        %v3126 = vand.u32 %v3125, 4294901760
        %3127 = vmatmul.mubr.f32.gmra.mrb[0].mxu0 %v3126
        %v3128 = vpop.f32.mrb[0].mxu0
        %v3129 = vadd.f32 %v3055, %v3128
        %v3130 = vpop.f32.mrb[0].mxu0
        %3131 = vdwg.mxu0
        %3132 = vmatprep.subr.mxu0 0.0
        %v3133 = vand.u32 %v2830, 4294901760
        %v3134 = vsub.f32 %v2830, %v3133
        %v3135 = vand.u32 %v3134, 4294901760
        %3136 = vmatpush1.msra.mxu0 %v3135
        %3137 = vmatprep.subr.mxu0 0.0
        %3138 = vmatpush1.msra.mxu0 0.0
        %3139 = vmatprep.subr.mxu0 0.0
        %3140 = vmatpush1.msra.mxu0 0.0
        %3141 = vmatprep.subr.mxu0 0.0
        %3142 = vmatpush1.msra.mxu0 0.0
        %3143 = vmatprep.subr.mxu0 0.0
        %3144 = vmatpush1.msra.mxu0 0.0
        %3145 = vmatprep.subr.mxu0 0.0
        %3146 = vmatpush1.msra.mxu0 0.0
        %3147 = vmatprep.subr.mxu0 0.0
        %3148 = vmatpush1.msra.mxu0 0.0
        %3149 = vmatprep.subr.mxu0 0.0
        %3150 = vmatpush1.msra.mxu0 0.0
        %3151 = vmatprep.subr.mxu0 0.0
        %3152 = vmatpush1.msra.mxu0 0.0
        %3153 = vmatprep.subr.mxu0 0.0
        %3154 = vmatpush1.msra.mxu0 0.0
        %3155 = vmatprep.subr.mxu0 0.0
        %3156 = vmatpush1.msra.mxu0 0.0
        %3157 = vmatprep.subr.mxu0 0.0
        %3158 = vmatpush1.msra.mxu0 0.0
        %3159 = vmatprep.subr.mxu0 0.0
        %3160 = vmatpush1.msra.mxu0 0.0
        %3161 = vmatprep.subr.mxu0 0.0
        %3162 = vmatpush1.msra.mxu0 0.0
        %3163 = vmatprep.subr.mxu0 0.0
        %3164 = vmatpush1.msra.mxu0 0.0
        %3165 = vmatprep.subr.mxu0 0.0
        %3166 = vmatpush1.msra.mxu0 0.0
        %3167 = vmatprep.subr.mxu0 0.0
        %3168 = vmatpush1.msra.mxu0 0.0
        %3169 = vmatprep.subr.mxu0 0.0
        %3170 = vmatpush1.msra.mxu0 0.0
        %3171 = vmatprep.subr.mxu0 0.0
        %3172 = vmatpush1.msra.mxu0 0.0
        %3173 = vmatprep.subr.mxu0 0.0
        %3174 = vmatpush1.msra.mxu0 0.0
        %3175 = vmatprep.subr.mxu0 0.0
        %3176 = vmatpush1.msra.mxu0 0.0
        %3177 = vmatprep.subr.mxu0 0.0
        %3178 = vmatpush1.msra.mxu0 0.0
        %3179 = vmatprep.subr.mxu0 0.0
        %3180 = vmatpush1.msra.mxu0 0.0
        %3181 = vmatprep.subr.mxu0 0.0
        %3182 = vmatpush1.msra.mxu0 0.0
        %3183 = vmatprep.subr.mxu0 0.0
        %3184 = vmatpush1.msra.mxu0 0.0
        %3185 = vmatprep.subr.mxu0 0.0
        %3186 = vmatpush1.msra.mxu0 0.0
        %3187 = vmatprep.subr.mxu0 0.0
        %3188 = vmatpush1.msra.mxu0 0.0
        %3189 = vmatprep.subr.mxu0 0.0
        %3190 = vmatpush1.msra.mxu0 0.0
        %3191 = vmatprep.subr.mxu0 0.0
        %3192 = vmatpush1.msra.mxu0 0.0
        %3193 = vmatprep.subr.mxu0 0.0
        %3194 = vmatpush1.msra.mxu0 0.0
        %3195 = vmatprep.subr.mxu0 0.0
        %3196 = vmatpush1.msra.mxu0 0.0
        %3197 = vmatprep.subr.mxu0 0.0
        %3198 = vmatpush1.msra.mxu0 0.0
        %3199 = vmatprep.mubr.f32.mxu0 0.0
        %v3200 = vand.u32 %v2826, 4294901760
        %3201 = vmatmul.mubr.f32.gmra.mrb[0].mxu0 %v3200
        %v3202 = vpop.f32.mrb[0].mxu0
        %v3203 = vadd.f32 %v3129, %v3202
        %v3204 = vpop.f32.mrb[0].mxu0
        %3205 = vdwg.mxu0
        %3206 = vmatprep.subr.mxu0 0.0
        %v3207 = vand.u32 %v2830, 4294901760
        %3208 = vmatpush1.msra.mxu0 %v3207
        %3209 = vmatprep.subr.mxu0 0.0
        %3210 = vmatpush1.msra.mxu0 0.0
        %3211 = vmatprep.subr.mxu0 0.0
        %3212 = vmatpush1.msra.mxu0 0.0
        %3213 = vmatprep.subr.mxu0 0.0
        %3214 = vmatpush1.msra.mxu0 0.0
        %3215 = vmatprep.subr.mxu0 0.0
        %3216 = vmatpush1.msra.mxu0 0.0
        %3217 = vmatprep.subr.mxu0 0.0
        %3218 = vmatpush1.msra.mxu0 0.0
        %3219 = vmatprep.subr.mxu0 0.0
        %3220 = vmatpush1.msra.mxu0 0.0
        %3221 = vmatprep.subr.mxu0 0.0
        %3222 = vmatpush1.msra.mxu0 0.0
        %3223 = vmatprep.subr.mxu0 0.0
        %3224 = vmatpush1.msra.mxu0 0.0
        %3225 = vmatprep.subr.mxu0 0.0
        %3226 = vmatpush1.msra.mxu0 0.0
        %3227 = vmatprep.subr.mxu0 0.0
        %3228 = vmatpush1.msra.mxu0 0.0
        %3229 = vmatprep.subr.mxu0 0.0
        %3230 = vmatpush1.msra.mxu0 0.0
        %3231 = vmatprep.subr.mxu0 0.0
        %3232 = vmatpush1.msra.mxu0 0.0
        %3233 = vmatprep.subr.mxu0 0.0
        %3234 = vmatpush1.msra.mxu0 0.0
        %3235 = vmatprep.subr.mxu0 0.0
        %3236 = vmatpush1.msra.mxu0 0.0
        %3237 = vmatprep.subr.mxu0 0.0
        %3238 = vmatpush1.msra.mxu0 0.0
        %3239 = vmatprep.subr.mxu0 0.0
        %3240 = vmatpush1.msra.mxu0 0.0
        %3241 = vmatprep.subr.mxu0 0.0
        %3242 = vmatpush1.msra.mxu0 0.0
        %3243 = vmatprep.subr.mxu0 0.0
        %3244 = vmatpush1.msra.mxu0 0.0
        %3245 = vmatprep.subr.mxu0 0.0
        %3246 = vmatpush1.msra.mxu0 0.0
        %3247 = vmatprep.subr.mxu0 0.0
        %3248 = vmatpush1.msra.mxu0 0.0
        %3249 = vmatprep.subr.mxu0 0.0
        %3250 = vmatpush1.msra.mxu0 0.0
        %3251 = vmatprep.subr.mxu0 0.0
        %3252 = vmatpush1.msra.mxu0 0.0
        %3253 = vmatprep.subr.mxu0 0.0
        %3254 = vmatpush1.msra.mxu0 0.0
        %3255 = vmatprep.subr.mxu0 0.0
        %3256 = vmatpush1.msra.mxu0 0.0
        %3257 = vmatprep.subr.mxu0 0.0
        %3258 = vmatpush1.msra.mxu0 0.0
        %3259 = vmatprep.subr.mxu0 0.0
        %3260 = vmatpush1.msra.mxu0 0.0
        %3261 = vmatprep.subr.mxu0 0.0
        %3262 = vmatpush1.msra.mxu0 0.0
        %3263 = vmatprep.subr.mxu0 0.0
        %3264 = vmatpush1.msra.mxu0 0.0
        %3265 = vmatprep.subr.mxu0 0.0
        %3266 = vmatpush1.msra.mxu0 0.0
        %3267 = vmatprep.subr.mxu0 0.0
        %3268 = vmatpush1.msra.mxu0 0.0
        %3269 = vmatprep.subr.mxu0 0.0
        %3270 = vmatpush1.msra.mxu0 0.0
        %3271 = vmatprep.mubr.f32.mxu0 0.0
        %v3272 = vand.u32 %v2826, 4294901760
        %3273 = vmatmul.mubr.f32.gmra.mrb[0].mxu0 %v3272
        %v3274 = vpop.f32.mrb[0].mxu0
        %v3275 = vadd.f32 %v3203, %v3274
        %v3276 = vpop.f32.mrb[0].mxu0
        %3277 = vdwg.mxu0
        %v3278 = vmul.f32 %v3275, %v311
        %v3279 = vadd.f32 %v3278, 0.0
        %v3280 = vmul.f32 %v2815, %v2822
        %v3282 = vsel %vm2824, %v3280, 0
        %3284 = vmatprep.subr.mxu0 0.0
        %v3285 = vand.u32 %v2830, 4294901760
        %3286 = vmatpush1.msra.mxu0 %v3285
        %3287 = vmatprep.subr.mxu0 0.0
        %3288 = vmatpush1.msra.mxu0 0.0
        %3289 = vmatprep.subr.mxu0 0.0
        %3290 = vmatpush1.msra.mxu0 0.0
        %3291 = vmatprep.subr.mxu0 0.0
        %3292 = vmatpush1.msra.mxu0 0.0
        %3293 = vmatprep.subr.mxu0 0.0
        %3294 = vmatpush1.msra.mxu0 0.0
        %3295 = vmatprep.subr.mxu0 0.0
        %3296 = vmatpush1.msra.mxu0 0.0
        %3297 = vmatprep.subr.mxu0 0.0
        %3298 = vmatpush1.msra.mxu0 0.0
        %3299 = vmatprep.subr.mxu0 0.0
        %3300 = vmatpush1.msra.mxu0 0.0
        %3301 = vmatprep.subr.mxu0 0.0
        %3302 = vmatpush1.msra.mxu0 0.0
        %3303 = vmatprep.subr.mxu0 0.0
        %3304 = vmatpush1.msra.mxu0 0.0
        %3305 = vmatprep.subr.mxu0 0.0
        %3306 = vmatpush1.msra.mxu0 0.0
        %3307 = vmatprep.subr.mxu0 0.0
        %3308 = vmatpush1.msra.mxu0 0.0
        %3309 = vmatprep.subr.mxu0 0.0
        %3310 = vmatpush1.msra.mxu0 0.0
        %3311 = vmatprep.subr.mxu0 0.0
        %3312 = vmatpush1.msra.mxu0 0.0
        %3313 = vmatprep.subr.mxu0 0.0
        %3314 = vmatpush1.msra.mxu0 0.0
        %3315 = vmatprep.subr.mxu0 0.0
        %3316 = vmatpush1.msra.mxu0 0.0
        %3317 = vmatprep.subr.mxu0 0.0
        %3318 = vmatpush1.msra.mxu0 0.0
        %3319 = vmatprep.subr.mxu0 0.0
        %3320 = vmatpush1.msra.mxu0 0.0
        %3321 = vmatprep.subr.mxu0 0.0
        %3322 = vmatpush1.msra.mxu0 0.0
        %3323 = vmatprep.subr.mxu0 0.0
        %3324 = vmatpush1.msra.mxu0 0.0
        %3325 = vmatprep.subr.mxu0 0.0
        %3326 = vmatpush1.msra.mxu0 0.0
        %3327 = vmatprep.subr.mxu0 0.0
        %3328 = vmatpush1.msra.mxu0 0.0
        %3329 = vmatprep.subr.mxu0 0.0
        %3330 = vmatpush1.msra.mxu0 0.0
        %3331 = vmatprep.subr.mxu0 0.0
        %3332 = vmatpush1.msra.mxu0 0.0
        %3333 = vmatprep.subr.mxu0 0.0
        %3334 = vmatpush1.msra.mxu0 0.0
        %3335 = vmatprep.subr.mxu0 0.0
        %3336 = vmatpush1.msra.mxu0 0.0
        %3337 = vmatprep.subr.mxu0 0.0
        %3338 = vmatpush1.msra.mxu0 0.0
        %3339 = vmatprep.subr.mxu0 0.0
        %3340 = vmatpush1.msra.mxu0 0.0
        %3341 = vmatprep.subr.mxu0 0.0
        %3342 = vmatpush1.msra.mxu0 0.0
        %3343 = vmatprep.subr.mxu0 0.0
        %3344 = vmatpush1.msra.mxu0 0.0
        %3345 = vmatprep.subr.mxu0 0.0
        %3346 = vmatpush1.msra.mxu0 0.0
        %3347 = vmatprep.subr.mxu0 0.0
        %3348 = vmatpush1.msra.mxu0 0.0
        %3349 = vmatprep.mubr.f32.mxu0 0.0
        %v3350 = vand.u32 %v3282, 4294901760
        %v3351 = vsub.f32 %v3282, %v3350
        %v3352 = vand.u32 %v3351, 4294901760
        %v3353 = vsub.f32 %v3351, %v3352
        %v3354 = vand.u32 %v3353, 4294901760
        %3355 = vmatmul.mubr.f32.gmra.mrb[0].mxu0 %v3354
        %v3356 = vpop.f32.mrb[0].mxu0
        %v3357 = vadd.f32 0.0, %v3356
        %v3358 = vpop.f32.mrb[0].mxu0
        %3359 = vdwg.mxu0
        %3360 = vmatprep.subr.mxu0 0.0
        %v3361 = vand.u32 %v2830, 4294901760
        %v3362 = vsub.f32 %v2830, %v3361
        %v3363 = vand.u32 %v3362, 4294901760
        %v3364 = vsub.f32 %v3362, %v3363
        %v3365 = vand.u32 %v3364, 4294901760
        %3366 = vmatpush1.msra.mxu0 %v3365
        %3367 = vmatprep.subr.mxu0 0.0
        %3368 = vmatpush1.msra.mxu0 0.0
        %3369 = vmatprep.subr.mxu0 0.0
        %3370 = vmatpush1.msra.mxu0 0.0
        %3371 = vmatprep.subr.mxu0 0.0
        %3372 = vmatpush1.msra.mxu0 0.0
        %3373 = vmatprep.subr.mxu0 0.0
        %3374 = vmatpush1.msra.mxu0 0.0
        %3375 = vmatprep.subr.mxu0 0.0
        %3376 = vmatpush1.msra.mxu0 0.0
        %3377 = vmatprep.subr.mxu0 0.0
        %3378 = vmatpush1.msra.mxu0 0.0
        %3379 = vmatprep.subr.mxu0 0.0
        %3380 = vmatpush1.msra.mxu0 0.0
        %3381 = vmatprep.subr.mxu0 0.0
        %3382 = vmatpush1.msra.mxu0 0.0
        %3383 = vmatprep.subr.mxu0 0.0
        %3384 = vmatpush1.msra.mxu0 0.0
        %3385 = vmatprep.subr.mxu0 0.0
        %3386 = vmatpush1.msra.mxu0 0.0
        %3387 = vmatprep.subr.mxu0 0.0
        %3388 = vmatpush1.msra.mxu0 0.0
        %3389 = vmatprep.subr.mxu0 0.0
        %3390 = vmatpush1.msra.mxu0 0.0
        %3391 = vmatprep.subr.mxu0 0.0
        %3392 = vmatpush1.msra.mxu0 0.0
        %3393 = vmatprep.subr.mxu0 0.0
        %3394 = vmatpush1.msra.mxu0 0.0
        %3395 = vmatprep.subr.mxu0 0.0
        %3396 = vmatpush1.msra.mxu0 0.0
        %3397 = vmatprep.subr.mxu0 0.0
        %3398 = vmatpush1.msra.mxu0 0.0
        %3399 = vmatprep.subr.mxu0 0.0
        %3400 = vmatpush1.msra.mxu0 0.0
        %3401 = vmatprep.subr.mxu0 0.0
        %3402 = vmatpush1.msra.mxu0 0.0
        %3403 = vmatprep.subr.mxu0 0.0
        %3404 = vmatpush1.msra.mxu0 0.0
        %3405 = vmatprep.subr.mxu0 0.0
        %3406 = vmatpush1.msra.mxu0 0.0
        %3407 = vmatprep.subr.mxu0 0.0
        %3408 = vmatpush1.msra.mxu0 0.0
        %3409 = vmatprep.subr.mxu0 0.0
        %3410 = vmatpush1.msra.mxu0 0.0
        %3411 = vmatprep.subr.mxu0 0.0
        %3412 = vmatpush1.msra.mxu0 0.0
        %3413 = vmatprep.subr.mxu0 0.0
        %3414 = vmatpush1.msra.mxu0 0.0
        %3415 = vmatprep.subr.mxu0 0.0
        %3416 = vmatpush1.msra.mxu0 0.0
        %3417 = vmatprep.subr.mxu0 0.0
        %3418 = vmatpush1.msra.mxu0 0.0
        %3419 = vmatprep.subr.mxu0 0.0
        %3420 = vmatpush1.msra.mxu0 0.0
        %3421 = vmatprep.subr.mxu0 0.0
        %3422 = vmatpush1.msra.mxu0 0.0
        %3423 = vmatprep.subr.mxu0 0.0
        %3424 = vmatpush1.msra.mxu0 0.0
        %3425 = vmatprep.subr.mxu0 0.0
        %3426 = vmatpush1.msra.mxu0 0.0
        %3427 = vmatprep.subr.mxu0 0.0
        %3428 = vmatpush1.msra.mxu0 0.0
        %3429 = vmatprep.mubr.f32.mxu0 0.0
        %v3430 = vand.u32 %v3282, 4294901760
        %3431 = vmatmul.mubr.f32.gmra.mrb[0].mxu0 %v3430
        %v3432 = vpop.f32.mrb[0].mxu0
        %v3433 = vadd.f32 %v3357, %v3432
        %v3434 = vpop.f32.mrb[0].mxu0
        %3435 = vdwg.mxu0
        %3436 = vmatprep.subr.mxu0 0.0
        %v3437 = vand.u32 %v2830, 4294901760
        %v3438 = vsub.f32 %v2830, %v3437
        %3439 = vmatpush1.msra.mxu0 %v3438
        %3440 = vmatprep.subr.mxu0 0.0
        %3441 = vmatpush1.msra.mxu0 0.0
        %3442 = vmatprep.subr.mxu0 0.0
        %3443 = vmatpush1.msra.mxu0 0.0
        %3444 = vmatprep.subr.mxu0 0.0
        %3445 = vmatpush1.msra.mxu0 0.0
        %3446 = vmatprep.subr.mxu0 0.0
        %3447 = vmatpush1.msra.mxu0 0.0
        %3448 = vmatprep.subr.mxu0 0.0
        %3449 = vmatpush1.msra.mxu0 0.0
        %3450 = vmatprep.subr.mxu0 0.0
        %3451 = vmatpush1.msra.mxu0 0.0
        %3452 = vmatprep.subr.mxu0 0.0
        %3453 = vmatpush1.msra.mxu0 0.0
        %3454 = vmatprep.subr.mxu0 0.0
        %3455 = vmatpush1.msra.mxu0 0.0
        %3456 = vmatprep.subr.mxu0 0.0
        %3457 = vmatpush1.msra.mxu0 0.0
        %3458 = vmatprep.subr.mxu0 0.0
        %3459 = vmatpush1.msra.mxu0 0.0
        %3460 = vmatprep.subr.mxu0 0.0
        %3461 = vmatpush1.msra.mxu0 0.0
        %3462 = vmatprep.subr.mxu0 0.0
        %3463 = vmatpush1.msra.mxu0 0.0
        %3464 = vmatprep.subr.mxu0 0.0
        %3465 = vmatpush1.msra.mxu0 0.0
        %3466 = vmatprep.subr.mxu0 0.0
        %3467 = vmatpush1.msra.mxu0 0.0
        %3468 = vmatprep.subr.mxu0 0.0
        %3469 = vmatpush1.msra.mxu0 0.0
        %3470 = vmatprep.subr.mxu0 0.0
        %3471 = vmatpush1.msra.mxu0 0.0
        %3472 = vmatprep.subr.mxu0 0.0
        %3473 = vmatpush1.msra.mxu0 0.0
        %3474 = vmatprep.subr.mxu0 0.0
        %3475 = vmatpush1.msra.mxu0 0.0
        %3476 = vmatprep.subr.mxu0 0.0
        %3477 = vmatpush1.msra.mxu0 0.0
        %3478 = vmatprep.subr.mxu0 0.0
        %3479 = vmatpush1.msra.mxu0 0.0
        %3480 = vmatprep.subr.mxu0 0.0
        %3481 = vmatpush1.msra.mxu0 0.0
        %3482 = vmatprep.subr.mxu0 0.0
        %3483 = vmatpush1.msra.mxu0 0.0
        %3484 = vmatprep.subr.mxu0 0.0
        %3485 = vmatpush1.msra.mxu0 0.0
        %3486 = vmatprep.subr.mxu0 0.0
        %3487 = vmatpush1.msra.mxu0 0.0
        %3488 = vmatprep.subr.mxu0 0.0
        %3489 = vmatpush1.msra.mxu0 0.0
        %3490 = vmatprep.subr.mxu0 0.0
        %3491 = vmatpush1.msra.mxu0 0.0
        %3492 = vmatprep.subr.mxu0 0.0
        %3493 = vmatpush1.msra.mxu0 0.0
        %3494 = vmatprep.subr.mxu0 0.0
        %3495 = vmatpush1.msra.mxu0 0.0
        %3496 = vmatprep.subr.mxu0 0.0
        %3497 = vmatpush1.msra.mxu0 0.0
        %3498 = vmatprep.subr.mxu0 0.0
        %3499 = vmatpush1.msra.mxu0 0.0
        %3500 = vmatprep.subr.mxu0 0.0
        %3501 = vmatpush1.msra.mxu0 0.0
        %3502 = vmatprep.mubr.f32.mxu0 0.0
        %v3503 = vand.u32 %v3282, 4294901760
        %v3504 = vsub.f32 %v3282, %v3503
        %3505 = vmatmul.mubr.f32.gmra.mrb[0].mxu0 %v3504
        %v3506 = vpop.f32.mrb[0].mxu0
        %v3507 = vadd.f32 %v3433, %v3506
        %v3508 = vpop.f32.mrb[0].mxu0
        %3509 = vdwg.mxu0
        %3510 = vmatprep.subr.mxu0 0.0
        %v3511 = vand.u32 %v2830, 4294901760
        %3512 = vmatpush1.msra.mxu0 %v3511
        %3513 = vmatprep.subr.mxu0 0.0
        %3514 = vmatpush1.msra.mxu0 0.0
        %3515 = vmatprep.subr.mxu0 0.0
        %3516 = vmatpush1.msra.mxu0 0.0
        %3517 = vmatprep.subr.mxu0 0.0
        %3518 = vmatpush1.msra.mxu0 0.0
        %3519 = vmatprep.subr.mxu0 0.0
        %3520 = vmatpush1.msra.mxu0 0.0
        %3521 = vmatprep.subr.mxu0 0.0
        %3522 = vmatpush1.msra.mxu0 0.0
        %3523 = vmatprep.subr.mxu0 0.0
        %3524 = vmatpush1.msra.mxu0 0.0
        %3525 = vmatprep.subr.mxu0 0.0
        %3526 = vmatpush1.msra.mxu0 0.0
        %3527 = vmatprep.subr.mxu0 0.0
        %3528 = vmatpush1.msra.mxu0 0.0
        %3529 = vmatprep.subr.mxu0 0.0
        %3530 = vmatpush1.msra.mxu0 0.0
        %3531 = vmatprep.subr.mxu0 0.0
        %3532 = vmatpush1.msra.mxu0 0.0
        %3533 = vmatprep.subr.mxu0 0.0
        %3534 = vmatpush1.msra.mxu0 0.0
        %3535 = vmatprep.subr.mxu0 0.0
        %3536 = vmatpush1.msra.mxu0 0.0
        %3537 = vmatprep.subr.mxu0 0.0
        %3538 = vmatpush1.msra.mxu0 0.0
        %3539 = vmatprep.subr.mxu0 0.0
        %3540 = vmatpush1.msra.mxu0 0.0
        %3541 = vmatprep.subr.mxu0 0.0
        %3542 = vmatpush1.msra.mxu0 0.0
        %3543 = vmatprep.subr.mxu0 0.0
        %3544 = vmatpush1.msra.mxu0 0.0
        %3545 = vmatprep.subr.mxu0 0.0
        %3546 = vmatpush1.msra.mxu0 0.0
        %3547 = vmatprep.subr.mxu0 0.0
        %3548 = vmatpush1.msra.mxu0 0.0
        %3549 = vmatprep.subr.mxu0 0.0
        %3550 = vmatpush1.msra.mxu0 0.0
        %3551 = vmatprep.subr.mxu0 0.0
        %3552 = vmatpush1.msra.mxu0 0.0
        %3553 = vmatprep.subr.mxu0 0.0
        %3554 = vmatpush1.msra.mxu0 0.0
        %3555 = vmatprep.subr.mxu0 0.0
        %3556 = vmatpush1.msra.mxu0 0.0
        %3557 = vmatprep.subr.mxu0 0.0
        %3558 = vmatpush1.msra.mxu0 0.0
        %3559 = vmatprep.subr.mxu0 0.0
        %3560 = vmatpush1.msra.mxu0 0.0
        %3561 = vmatprep.subr.mxu0 0.0
        %3562 = vmatpush1.msra.mxu0 0.0
        %3563 = vmatprep.subr.mxu0 0.0
        %3564 = vmatpush1.msra.mxu0 0.0
        %3565 = vmatprep.subr.mxu0 0.0
        %3566 = vmatpush1.msra.mxu0 0.0
        %3567 = vmatprep.subr.mxu0 0.0
        %3568 = vmatpush1.msra.mxu0 0.0
        %3569 = vmatprep.subr.mxu0 0.0
        %3570 = vmatpush1.msra.mxu0 0.0
        %3571 = vmatprep.subr.mxu0 0.0
        %3572 = vmatpush1.msra.mxu0 0.0
        %3573 = vmatprep.subr.mxu0 0.0
        %3574 = vmatpush1.msra.mxu0 0.0
        %3575 = vmatprep.mubr.f32.mxu0 0.0
        %v3576 = vand.u32 %v3282, 4294901760
        %v3577 = vsub.f32 %v3282, %v3576
        %v3578 = vand.u32 %v3577, 4294901760
        %3579 = vmatmul.mubr.f32.gmra.mrb[0].mxu0 %v3578
        %v3580 = vpop.f32.mrb[0].mxu0
        %v3581 = vadd.f32 %v3507, %v3580
        %v3582 = vpop.f32.mrb[0].mxu0
        %3583 = vdwg.mxu0
        %3584 = vmatprep.subr.mxu0 0.0
        %v3585 = vand.u32 %v2830, 4294901760
        %v3586 = vsub.f32 %v2830, %v3585
        %v3587 = vand.u32 %v3586, 4294901760
        %3588 = vmatpush1.msra.mxu0 %v3587
        %3589 = vmatprep.subr.mxu0 0.0
        %3590 = vmatpush1.msra.mxu0 0.0
        %3591 = vmatprep.subr.mxu0 0.0
        %3592 = vmatpush1.msra.mxu0 0.0
        %3593 = vmatprep.subr.mxu0 0.0
        %3594 = vmatpush1.msra.mxu0 0.0
        %3595 = vmatprep.subr.mxu0 0.0
        %3596 = vmatpush1.msra.mxu0 0.0
        %3597 = vmatprep.subr.mxu0 0.0
        %3598 = vmatpush1.msra.mxu0 0.0
        %3599 = vmatprep.subr.mxu0 0.0
        %3600 = vmatpush1.msra.mxu0 0.0
        %3601 = vmatprep.subr.mxu0 0.0
        %3602 = vmatpush1.msra.mxu0 0.0
        %3603 = vmatprep.subr.mxu0 0.0
        %3604 = vmatpush1.msra.mxu0 0.0
        %3605 = vmatprep.subr.mxu0 0.0
        %3606 = vmatpush1.msra.mxu0 0.0
        %3607 = vmatprep.subr.mxu0 0.0
        %3608 = vmatpush1.msra.mxu0 0.0
        %3609 = vmatprep.subr.mxu0 0.0
        %3610 = vmatpush1.msra.mxu0 0.0
        %3611 = vmatprep.subr.mxu0 0.0
        %3612 = vmatpush1.msra.mxu0 0.0
        %3613 = vmatprep.subr.mxu0 0.0
        %3614 = vmatpush1.msra.mxu0 0.0
        %3615 = vmatprep.subr.mxu0 0.0
        %3616 = vmatpush1.msra.mxu0 0.0
        %3617 = vmatprep.subr.mxu0 0.0
        %3618 = vmatpush1.msra.mxu0 0.0
        %3619 = vmatprep.subr.mxu0 0.0
        %3620 = vmatpush1.msra.mxu0 0.0
        %3621 = vmatprep.subr.mxu0 0.0
        %3622 = vmatpush1.msra.mxu0 0.0
        %3623 = vmatprep.subr.mxu0 0.0
        %3624 = vmatpush1.msra.mxu0 0.0
        %3625 = vmatprep.subr.mxu0 0.0
        %3626 = vmatpush1.msra.mxu0 0.0
        %3627 = vmatprep.subr.mxu0 0.0
        %3628 = vmatpush1.msra.mxu0 0.0
        %3629 = vmatprep.subr.mxu0 0.0
        %3630 = vmatpush1.msra.mxu0 0.0
        %3631 = vmatprep.subr.mxu0 0.0
        %3632 = vmatpush1.msra.mxu0 0.0
        %3633 = vmatprep.subr.mxu0 0.0
        %3634 = vmatpush1.msra.mxu0 0.0
        %3635 = vmatprep.subr.mxu0 0.0
        %3636 = vmatpush1.msra.mxu0 0.0
        %3637 = vmatprep.subr.mxu0 0.0
        %3638 = vmatpush1.msra.mxu0 0.0
        %3639 = vmatprep.subr.mxu0 0.0
        %3640 = vmatpush1.msra.mxu0 0.0
        %3641 = vmatprep.subr.mxu0 0.0
        %3642 = vmatpush1.msra.mxu0 0.0
        %3643 = vmatprep.subr.mxu0 0.0
        %3644 = vmatpush1.msra.mxu0 0.0
        %3645 = vmatprep.subr.mxu0 0.0
        %3646 = vmatpush1.msra.mxu0 0.0
        %3647 = vmatprep.subr.mxu0 0.0
        %3648 = vmatpush1.msra.mxu0 0.0
        %3649 = vmatprep.subr.mxu0 0.0
        %3650 = vmatpush1.msra.mxu0 0.0
        %3651 = vmatprep.mubr.f32.mxu0 0.0
        %v3652 = vand.u32 %v3282, 4294901760
        %3653 = vmatmul.mubr.f32.gmra.mrb[0].mxu0 %v3652
        %v3654 = vpop.f32.mrb[0].mxu0
        %v3655 = vadd.f32 %v3581, %v3654
        %v3656 = vpop.f32.mrb[0].mxu0
        %3657 = vdwg.mxu0
        %3658 = vmatprep.subr.mxu0 0.0
        %v3659 = vand.u32 %v2830, 4294901760
        %3660 = vmatpush1.msra.mxu0 %v3659
        %3661 = vmatprep.subr.mxu0 0.0
        %3662 = vmatpush1.msra.mxu0 0.0
        %3663 = vmatprep.subr.mxu0 0.0
        %3664 = vmatpush1.msra.mxu0 0.0
        %3665 = vmatprep.subr.mxu0 0.0
        %3666 = vmatpush1.msra.mxu0 0.0
        %3667 = vmatprep.subr.mxu0 0.0
        %3668 = vmatpush1.msra.mxu0 0.0
        %3669 = vmatprep.subr.mxu0 0.0
        %3670 = vmatpush1.msra.mxu0 0.0
        %3671 = vmatprep.subr.mxu0 0.0
        %3672 = vmatpush1.msra.mxu0 0.0
        %3673 = vmatprep.subr.mxu0 0.0
        %3674 = vmatpush1.msra.mxu0 0.0
        %3675 = vmatprep.subr.mxu0 0.0
        %3676 = vmatpush1.msra.mxu0 0.0
        %3677 = vmatprep.subr.mxu0 0.0
        %3678 = vmatpush1.msra.mxu0 0.0
        %3679 = vmatprep.subr.mxu0 0.0
        %3680 = vmatpush1.msra.mxu0 0.0
        %3681 = vmatprep.subr.mxu0 0.0
        %3682 = vmatpush1.msra.mxu0 0.0
        %3683 = vmatprep.subr.mxu0 0.0
        %3684 = vmatpush1.msra.mxu0 0.0
        %3685 = vmatprep.subr.mxu0 0.0
        %3686 = vmatpush1.msra.mxu0 0.0
        %3687 = vmatprep.subr.mxu0 0.0
        %3688 = vmatpush1.msra.mxu0 0.0
        %3689 = vmatprep.subr.mxu0 0.0
        %3690 = vmatpush1.msra.mxu0 0.0
        %3691 = vmatprep.subr.mxu0 0.0
        %3692 = vmatpush1.msra.mxu0 0.0
        %3693 = vmatprep.subr.mxu0 0.0
        %3694 = vmatpush1.msra.mxu0 0.0
        %3695 = vmatprep.subr.mxu0 0.0
        %3696 = vmatpush1.msra.mxu0 0.0
        %3697 = vmatprep.subr.mxu0 0.0
        %3698 = vmatpush1.msra.mxu0 0.0
        %3699 = vmatprep.subr.mxu0 0.0
        %3700 = vmatpush1.msra.mxu0 0.0
        %3701 = vmatprep.subr.mxu0 0.0
        %3702 = vmatpush1.msra.mxu0 0.0
        %3703 = vmatprep.subr.mxu0 0.0
        %3704 = vmatpush1.msra.mxu0 0.0
        %3705 = vmatprep.subr.mxu0 0.0
        %3706 = vmatpush1.msra.mxu0 0.0
        %3707 = vmatprep.subr.mxu0 0.0
        %3708 = vmatpush1.msra.mxu0 0.0
        %3709 = vmatprep.subr.mxu0 0.0
        %3710 = vmatpush1.msra.mxu0 0.0
        %3711 = vmatprep.subr.mxu0 0.0
        %3712 = vmatpush1.msra.mxu0 0.0
        %3713 = vmatprep.subr.mxu0 0.0
        %3714 = vmatpush1.msra.mxu0 0.0
        %3715 = vmatprep.subr.mxu0 0.0
        %3716 = vmatpush1.msra.mxu0 0.0
        %3717 = vmatprep.subr.mxu0 0.0
        %3718 = vmatpush1.msra.mxu0 0.0
        %3719 = vmatprep.subr.mxu0 0.0
        %3720 = vmatpush1.msra.mxu0 0.0
        %3721 = vmatprep.subr.mxu0 0.0
        %3722 = vmatpush1.msra.mxu0 0.0
        %3723 = vmatprep.mubr.f32.mxu0 0.0
        %v3724 = vand.u32 %v3282, 4294901760
        %3725 = vmatmul.mubr.f32.gmra.mrb[0].mxu0 %v3724
        %v3726 = vpop.f32.mrb[0].mxu0
        %v3727 = vadd.f32 %v3655, %v3726
        %v3728 = vpop.f32.mrb[0].mxu0
        %3729 = vdwg.mxu0
        %v3730 = vmul.f32 %v3727, %v312
        %v3731 = vadd.f32 %v3279, %v3730
        %v3732 = vmul.f32 %v2818, %v2822
        %v3734 = vsel %vm2824, %v3732, 0
        %3736 = vmatprep.subr.mxu0 0.0
        %v3737 = vand.u32 %v2830, 4294901760
        %3738 = vmatpush1.msra.mxu0 %v3737
        %3739 = vmatprep.subr.mxu0 0.0
        %3740 = vmatpush1.msra.mxu0 0.0
        %3741 = vmatprep.subr.mxu0 0.0
        %3742 = vmatpush1.msra.mxu0 0.0
        %3743 = vmatprep.subr.mxu0 0.0
        %3744 = vmatpush1.msra.mxu0 0.0
        %3745 = vmatprep.subr.mxu0 0.0
        %3746 = vmatpush1.msra.mxu0 0.0
        %3747 = vmatprep.subr.mxu0 0.0
        %3748 = vmatpush1.msra.mxu0 0.0
        %3749 = vmatprep.subr.mxu0 0.0
        %3750 = vmatpush1.msra.mxu0 0.0
        %3751 = vmatprep.subr.mxu0 0.0
        %3752 = vmatpush1.msra.mxu0 0.0
        %3753 = vmatprep.subr.mxu0 0.0
        %3754 = vmatpush1.msra.mxu0 0.0
        %3755 = vmatprep.subr.mxu0 0.0
        %3756 = vmatpush1.msra.mxu0 0.0
        %3757 = vmatprep.subr.mxu0 0.0
        %3758 = vmatpush1.msra.mxu0 0.0
        %3759 = vmatprep.subr.mxu0 0.0
        %3760 = vmatpush1.msra.mxu0 0.0
        %3761 = vmatprep.subr.mxu0 0.0
        %3762 = vmatpush1.msra.mxu0 0.0
        %3763 = vmatprep.subr.mxu0 0.0
        %3764 = vmatpush1.msra.mxu0 0.0
        %3765 = vmatprep.subr.mxu0 0.0
        %3766 = vmatpush1.msra.mxu0 0.0
        %3767 = vmatprep.subr.mxu0 0.0
        %3768 = vmatpush1.msra.mxu0 0.0
        %3769 = vmatprep.subr.mxu0 0.0
        %3770 = vmatpush1.msra.mxu0 0.0
        %3771 = vmatprep.subr.mxu0 0.0
        %3772 = vmatpush1.msra.mxu0 0.0
        %3773 = vmatprep.subr.mxu0 0.0
        %3774 = vmatpush1.msra.mxu0 0.0
        %3775 = vmatprep.subr.mxu0 0.0
        %3776 = vmatpush1.msra.mxu0 0.0
        %3777 = vmatprep.subr.mxu0 0.0
        %3778 = vmatpush1.msra.mxu0 0.0
        %3779 = vmatprep.subr.mxu0 0.0
        %3780 = vmatpush1.msra.mxu0 0.0
        %3781 = vmatprep.subr.mxu0 0.0
        %3782 = vmatpush1.msra.mxu0 0.0
        %3783 = vmatprep.subr.mxu0 0.0
        %3784 = vmatpush1.msra.mxu0 0.0
        %3785 = vmatprep.subr.mxu0 0.0
        %3786 = vmatpush1.msra.mxu0 0.0
        %3787 = vmatprep.subr.mxu0 0.0
        %3788 = vmatpush1.msra.mxu0 0.0
        %3789 = vmatprep.subr.mxu0 0.0
        %3790 = vmatpush1.msra.mxu0 0.0
        %3791 = vmatprep.subr.mxu0 0.0
        %3792 = vmatpush1.msra.mxu0 0.0
        %3793 = vmatprep.subr.mxu0 0.0
        %3794 = vmatpush1.msra.mxu0 0.0
        %3795 = vmatprep.subr.mxu0 0.0
        %3796 = vmatpush1.msra.mxu0 0.0
        %3797 = vmatprep.subr.mxu0 0.0
        %3798 = vmatpush1.msra.mxu0 0.0
        %3799 = vmatprep.subr.mxu0 0.0
        %3800 = vmatpush1.msra.mxu0 0.0
        %3801 = vmatprep.mubr.f32.mxu0 0.0
        %v3802 = vand.u32 %v3734, 4294901760
        %v3803 = vsub.f32 %v3734, %v3802
        %v3804 = vand.u32 %v3803, 4294901760
        %v3805 = vsub.f32 %v3803, %v3804
        %v3806 = vand.u32 %v3805, 4294901760
        %3807 = vmatmul.mubr.f32.gmra.mrb[0].mxu0 %v3806
        %v3808 = vpop.f32.mrb[0].mxu0
        %v3809 = vadd.f32 0.0, %v3808
        %v3810 = vpop.f32.mrb[0].mxu0
        %3811 = vdwg.mxu0
        %3812 = vmatprep.subr.mxu0 0.0
        %v3813 = vand.u32 %v2830, 4294901760
        %v3814 = vsub.f32 %v2830, %v3813
        %v3815 = vand.u32 %v3814, 4294901760
        %v3816 = vsub.f32 %v3814, %v3815
        %v3817 = vand.u32 %v3816, 4294901760
        %3818 = vmatpush1.msra.mxu0 %v3817
        %3819 = vmatprep.subr.mxu0 0.0
        %3820 = vmatpush1.msra.mxu0 0.0
        %3821 = vmatprep.subr.mxu0 0.0
        %3822 = vmatpush1.msra.mxu0 0.0
        %3823 = vmatprep.subr.mxu0 0.0
        %3824 = vmatpush1.msra.mxu0 0.0
        %3825 = vmatprep.subr.mxu0 0.0
        %3826 = vmatpush1.msra.mxu0 0.0
        %3827 = vmatprep.subr.mxu0 0.0
        %3828 = vmatpush1.msra.mxu0 0.0
        %3829 = vmatprep.subr.mxu0 0.0
        %3830 = vmatpush1.msra.mxu0 0.0
        %3831 = vmatprep.subr.mxu0 0.0
        %3832 = vmatpush1.msra.mxu0 0.0
        %3833 = vmatprep.subr.mxu0 0.0
        %3834 = vmatpush1.msra.mxu0 0.0
        %3835 = vmatprep.subr.mxu0 0.0
        %3836 = vmatpush1.msra.mxu0 0.0
        %3837 = vmatprep.subr.mxu0 0.0
        %3838 = vmatpush1.msra.mxu0 0.0
        %3839 = vmatprep.subr.mxu0 0.0
        %3840 = vmatpush1.msra.mxu0 0.0
        %3841 = vmatprep.subr.mxu0 0.0
        %3842 = vmatpush1.msra.mxu0 0.0
        %3843 = vmatprep.subr.mxu0 0.0
        %3844 = vmatpush1.msra.mxu0 0.0
        %3845 = vmatprep.subr.mxu0 0.0
        %3846 = vmatpush1.msra.mxu0 0.0
        %3847 = vmatprep.subr.mxu0 0.0
        %3848 = vmatpush1.msra.mxu0 0.0
        %3849 = vmatprep.subr.mxu0 0.0
        %3850 = vmatpush1.msra.mxu0 0.0
        %3851 = vmatprep.subr.mxu0 0.0
        %3852 = vmatpush1.msra.mxu0 0.0
        %3853 = vmatprep.subr.mxu0 0.0
        %3854 = vmatpush1.msra.mxu0 0.0
        %3855 = vmatprep.subr.mxu0 0.0
        %3856 = vmatpush1.msra.mxu0 0.0
        %3857 = vmatprep.subr.mxu0 0.0
        %3858 = vmatpush1.msra.mxu0 0.0
        %3859 = vmatprep.subr.mxu0 0.0
        %3860 = vmatpush1.msra.mxu0 0.0
        %3861 = vmatprep.subr.mxu0 0.0
        %3862 = vmatpush1.msra.mxu0 0.0
        %3863 = vmatprep.subr.mxu0 0.0
        %3864 = vmatpush1.msra.mxu0 0.0
        %3865 = vmatprep.subr.mxu0 0.0
        %3866 = vmatpush1.msra.mxu0 0.0
        %3867 = vmatprep.subr.mxu0 0.0
        %3868 = vmatpush1.msra.mxu0 0.0
        %3869 = vmatprep.subr.mxu0 0.0
        %3870 = vmatpush1.msra.mxu0 0.0
        %3871 = vmatprep.subr.mxu0 0.0
        %3872 = vmatpush1.msra.mxu0 0.0
        %3873 = vmatprep.subr.mxu0 0.0
        %3874 = vmatpush1.msra.mxu0 0.0
        %3875 = vmatprep.subr.mxu0 0.0
        %3876 = vmatpush1.msra.mxu0 0.0
        %3877 = vmatprep.subr.mxu0 0.0
        %3878 = vmatpush1.msra.mxu0 0.0
        %3879 = vmatprep.subr.mxu0 0.0
        %3880 = vmatpush1.msra.mxu0 0.0
        %3881 = vmatprep.mubr.f32.mxu0 0.0
        %v3882 = vand.u32 %v3734, 4294901760
        %3883 = vmatmul.mubr.f32.gmra.mrb[0].mxu0 %v3882
        %v3884 = vpop.f32.mrb[0].mxu0
        %v3885 = vadd.f32 %v3809, %v3884
        %v3886 = vpop.f32.mrb[0].mxu0
        %3887 = vdwg.mxu0
        %3888 = vmatprep.subr.mxu0 0.0
        %v3889 = vand.u32 %v2830, 4294901760
        %v3890 = vsub.f32 %v2830, %v3889
        %3891 = vmatpush1.msra.mxu0 %v3890
        %3892 = vmatprep.subr.mxu0 0.0
        %3893 = vmatpush1.msra.mxu0 0.0
        %3894 = vmatprep.subr.mxu0 0.0
        %3895 = vmatpush1.msra.mxu0 0.0
        %3896 = vmatprep.subr.mxu0 0.0
        %3897 = vmatpush1.msra.mxu0 0.0
        %3898 = vmatprep.subr.mxu0 0.0
        %3899 = vmatpush1.msra.mxu0 0.0
        %3900 = vmatprep.subr.mxu0 0.0
        %3901 = vmatpush1.msra.mxu0 0.0
        %3902 = vmatprep.subr.mxu0 0.0
        %3903 = vmatpush1.msra.mxu0 0.0
        %3904 = vmatprep.subr.mxu0 0.0
        %3905 = vmatpush1.msra.mxu0 0.0
        %3906 = vmatprep.subr.mxu0 0.0
        %3907 = vmatpush1.msra.mxu0 0.0
        %3908 = vmatprep.subr.mxu0 0.0
        %3909 = vmatpush1.msra.mxu0 0.0
        %3910 = vmatprep.subr.mxu0 0.0
        %3911 = vmatpush1.msra.mxu0 0.0
        %3912 = vmatprep.subr.mxu0 0.0
        %3913 = vmatpush1.msra.mxu0 0.0
        %3914 = vmatprep.subr.mxu0 0.0
        %3915 = vmatpush1.msra.mxu0 0.0
        %3916 = vmatprep.subr.mxu0 0.0
        %3917 = vmatpush1.msra.mxu0 0.0
        %3918 = vmatprep.subr.mxu0 0.0
        %3919 = vmatpush1.msra.mxu0 0.0
        %3920 = vmatprep.subr.mxu0 0.0
        %3921 = vmatpush1.msra.mxu0 0.0
        %3922 = vmatprep.subr.mxu0 0.0
        %3923 = vmatpush1.msra.mxu0 0.0
        %3924 = vmatprep.subr.mxu0 0.0
        %3925 = vmatpush1.msra.mxu0 0.0
        %3926 = vmatprep.subr.mxu0 0.0
        %3927 = vmatpush1.msra.mxu0 0.0
        %3928 = vmatprep.subr.mxu0 0.0
        %3929 = vmatpush1.msra.mxu0 0.0
        %3930 = vmatprep.subr.mxu0 0.0
        %3931 = vmatpush1.msra.mxu0 0.0
        %3932 = vmatprep.subr.mxu0 0.0
        %3933 = vmatpush1.msra.mxu0 0.0
        %3934 = vmatprep.subr.mxu0 0.0
        %3935 = vmatpush1.msra.mxu0 0.0
        %3936 = vmatprep.subr.mxu0 0.0
        %3937 = vmatpush1.msra.mxu0 0.0
        %3938 = vmatprep.subr.mxu0 0.0
        %3939 = vmatpush1.msra.mxu0 0.0
        %3940 = vmatprep.subr.mxu0 0.0
        %3941 = vmatpush1.msra.mxu0 0.0
        %3942 = vmatprep.subr.mxu0 0.0
        %3943 = vmatpush1.msra.mxu0 0.0
        %3944 = vmatprep.subr.mxu0 0.0
        %3945 = vmatpush1.msra.mxu0 0.0
        %3946 = vmatprep.subr.mxu0 0.0
        %3947 = vmatpush1.msra.mxu0 0.0
        %3948 = vmatprep.subr.mxu0 0.0
        %3949 = vmatpush1.msra.mxu0 0.0
        %3950 = vmatprep.subr.mxu0 0.0
        %3951 = vmatpush1.msra.mxu0 0.0
        %3952 = vmatprep.subr.mxu0 0.0
        %3953 = vmatpush1.msra.mxu0 0.0
        %3954 = vmatprep.mubr.f32.mxu0 0.0
        %v3955 = vand.u32 %v3734, 4294901760
        %v3956 = vsub.f32 %v3734, %v3955
        %3957 = vmatmul.mubr.f32.gmra.mrb[0].mxu0 %v3956
        %v3958 = vpop.f32.mrb[0].mxu0
        %v3959 = vadd.f32 %v3885, %v3958
        %v3960 = vpop.f32.mrb[0].mxu0
        %3961 = vdwg.mxu0
        %3962 = vmatprep.subr.mxu0 0.0
        %v3963 = vand.u32 %v2830, 4294901760
        %3964 = vmatpush1.msra.mxu0 %v3963
        %3965 = vmatprep.subr.mxu0 0.0
        %3966 = vmatpush1.msra.mxu0 0.0
        %3967 = vmatprep.subr.mxu0 0.0
        %3968 = vmatpush1.msra.mxu0 0.0
        %3969 = vmatprep.subr.mxu0 0.0
        %3970 = vmatpush1.msra.mxu0 0.0
        %3971 = vmatprep.subr.mxu0 0.0
        %3972 = vmatpush1.msra.mxu0 0.0
        %3973 = vmatprep.subr.mxu0 0.0
        %3974 = vmatpush1.msra.mxu0 0.0
        %3975 = vmatprep.subr.mxu0 0.0
        %3976 = vmatpush1.msra.mxu0 0.0
        %3977 = vmatprep.subr.mxu0 0.0
        %3978 = vmatpush1.msra.mxu0 0.0
        %3979 = vmatprep.subr.mxu0 0.0
        %3980 = vmatpush1.msra.mxu0 0.0
        %3981 = vmatprep.subr.mxu0 0.0
        %3982 = vmatpush1.msra.mxu0 0.0
        %3983 = vmatprep.subr.mxu0 0.0
        %3984 = vmatpush1.msra.mxu0 0.0
        %3985 = vmatprep.subr.mxu0 0.0
        %3986 = vmatpush1.msra.mxu0 0.0
        %3987 = vmatprep.subr.mxu0 0.0
        %3988 = vmatpush1.msra.mxu0 0.0
        %3989 = vmatprep.subr.mxu0 0.0
        %3990 = vmatpush1.msra.mxu0 0.0
        %3991 = vmatprep.subr.mxu0 0.0
        %3992 = vmatpush1.msra.mxu0 0.0
        %3993 = vmatprep.subr.mxu0 0.0
        %3994 = vmatpush1.msra.mxu0 0.0
        %3995 = vmatprep.subr.mxu0 0.0
        %3996 = vmatpush1.msra.mxu0 0.0
        %3997 = vmatprep.subr.mxu0 0.0
        %3998 = vmatpush1.msra.mxu0 0.0
        %3999 = vmatprep.subr.mxu0 0.0
        %4000 = vmatpush1.msra.mxu0 0.0
        %4001 = vmatprep.subr.mxu0 0.0
        %4002 = vmatpush1.msra.mxu0 0.0
        %4003 = vmatprep.subr.mxu0 0.0
        %4004 = vmatpush1.msra.mxu0 0.0
        %4005 = vmatprep.subr.mxu0 0.0
        %4006 = vmatpush1.msra.mxu0 0.0
        %4007 = vmatprep.subr.mxu0 0.0
        %4008 = vmatpush1.msra.mxu0 0.0
        %4009 = vmatprep.subr.mxu0 0.0
        %4010 = vmatpush1.msra.mxu0 0.0
        %4011 = vmatprep.subr.mxu0 0.0
        %4012 = vmatpush1.msra.mxu0 0.0
        %4013 = vmatprep.subr.mxu0 0.0
        %4014 = vmatpush1.msra.mxu0 0.0
        %4015 = vmatprep.subr.mxu0 0.0
        %4016 = vmatpush1.msra.mxu0 0.0
        %4017 = vmatprep.subr.mxu0 0.0
        %4018 = vmatpush1.msra.mxu0 0.0
        %4019 = vmatprep.subr.mxu0 0.0
        %4020 = vmatpush1.msra.mxu0 0.0
        %4021 = vmatprep.subr.mxu0 0.0
        %4022 = vmatpush1.msra.mxu0 0.0
        %4023 = vmatprep.subr.mxu0 0.0
        %4024 = vmatpush1.msra.mxu0 0.0
        %4025 = vmatprep.subr.mxu0 0.0
        %4026 = vmatpush1.msra.mxu0 0.0
        %4027 = vmatprep.mubr.f32.mxu0 0.0
        %v4028 = vand.u32 %v3734, 4294901760
        %v4029 = vsub.f32 %v3734, %v4028
        %v4030 = vand.u32 %v4029, 4294901760
        %4031 = vmatmul.mubr.f32.gmra.mrb[0].mxu0 %v4030
        %v4032 = vpop.f32.mrb[0].mxu0
        %v4033 = vadd.f32 %v3959, %v4032
        %v4034 = vpop.f32.mrb[0].mxu0
        %4035 = vdwg.mxu0
        %4036 = vmatprep.subr.mxu0 0.0
        %v4037 = vand.u32 %v2830, 4294901760
        %v4038 = vsub.f32 %v2830, %v4037
        %v4039 = vand.u32 %v4038, 4294901760
        %4040 = vmatpush1.msra.mxu0 %v4039
        %4041 = vmatprep.subr.mxu0 0.0
        %4042 = vmatpush1.msra.mxu0 0.0
        %4043 = vmatprep.subr.mxu0 0.0
        %4044 = vmatpush1.msra.mxu0 0.0
        %4045 = vmatprep.subr.mxu0 0.0
        %4046 = vmatpush1.msra.mxu0 0.0
        %4047 = vmatprep.subr.mxu0 0.0
        %4048 = vmatpush1.msra.mxu0 0.0
        %4049 = vmatprep.subr.mxu0 0.0
        %4050 = vmatpush1.msra.mxu0 0.0
        %4051 = vmatprep.subr.mxu0 0.0
        %4052 = vmatpush1.msra.mxu0 0.0
        %4053 = vmatprep.subr.mxu0 0.0
        %4054 = vmatpush1.msra.mxu0 0.0
        %4055 = vmatprep.subr.mxu0 0.0
        %4056 = vmatpush1.msra.mxu0 0.0
        %4057 = vmatprep.subr.mxu0 0.0
        %4058 = vmatpush1.msra.mxu0 0.0
        %4059 = vmatprep.subr.mxu0 0.0
        %4060 = vmatpush1.msra.mxu0 0.0
        %4061 = vmatprep.subr.mxu0 0.0
        %4062 = vmatpush1.msra.mxu0 0.0
        %4063 = vmatprep.subr.mxu0 0.0
        %4064 = vmatpush1.msra.mxu0 0.0
        %4065 = vmatprep.subr.mxu0 0.0
        %4066 = vmatpush1.msra.mxu0 0.0
        %4067 = vmatprep.subr.mxu0 0.0
        %4068 = vmatpush1.msra.mxu0 0.0
        %4069 = vmatprep.subr.mxu0 0.0
        %4070 = vmatpush1.msra.mxu0 0.0
        %4071 = vmatprep.subr.mxu0 0.0
        %4072 = vmatpush1.msra.mxu0 0.0
        %4073 = vmatprep.subr.mxu0 0.0
        %4074 = vmatpush1.msra.mxu0 0.0
        %4075 = vmatprep.subr.mxu0 0.0
        %4076 = vmatpush1.msra.mxu0 0.0
        %4077 = vmatprep.subr.mxu0 0.0
        %4078 = vmatpush1.msra.mxu0 0.0
        %4079 = vmatprep.subr.mxu0 0.0
        %4080 = vmatpush1.msra.mxu0 0.0
        %4081 = vmatprep.subr.mxu0 0.0
        %4082 = vmatpush1.msra.mxu0 0.0
        %4083 = vmatprep.subr.mxu0 0.0
        %4084 = vmatpush1.msra.mxu0 0.0
        %4085 = vmatprep.subr.mxu0 0.0
        %4086 = vmatpush1.msra.mxu0 0.0
        %4087 = vmatprep.subr.mxu0 0.0
        %4088 = vmatpush1.msra.mxu0 0.0
        %4089 = vmatprep.subr.mxu0 0.0
        %4090 = vmatpush1.msra.mxu0 0.0
        %4091 = vmatprep.subr.mxu0 0.0
        %4092 = vmatpush1.msra.mxu0 0.0
        %4093 = vmatprep.subr.mxu0 0.0
        %4094 = vmatpush1.msra.mxu0 0.0
        %4095 = vmatprep.subr.mxu0 0.0
        %4096 = vmatpush1.msra.mxu0 0.0
        %4097 = vmatprep.subr.mxu0 0.0
        %4098 = vmatpush1.msra.mxu0 0.0
        %4099 = vmatprep.subr.mxu0 0.0
        %4100 = vmatpush1.msra.mxu0 0.0
        %4101 = vmatprep.subr.mxu0 0.0
        %4102 = vmatpush1.msra.mxu0 0.0
        %4103 = vmatprep.mubr.f32.mxu0 0.0
        %v4104 = vand.u32 %v3734, 4294901760
        %4105 = vmatmul.mubr.f32.gmra.mrb[0].mxu0 %v4104
        %v4106 = vpop.f32.mrb[0].mxu0
        %v4107 = vadd.f32 %v4033, %v4106
        %v4108 = vpop.f32.mrb[0].mxu0
        %4109 = vdwg.mxu0
        %4110 = vmatprep.subr.mxu0 0.0
        %v4111 = vand.u32 %v2830, 4294901760
        %4112 = vmatpush1.msra.mxu0 %v4111
        %4113 = vmatprep.subr.mxu0 0.0
        %4114 = vmatpush1.msra.mxu0 0.0
        %4115 = vmatprep.subr.mxu0 0.0
        %4116 = vmatpush1.msra.mxu0 0.0
        %4117 = vmatprep.subr.mxu0 0.0
        %4118 = vmatpush1.msra.mxu0 0.0
        %4119 = vmatprep.subr.mxu0 0.0
        %4120 = vmatpush1.msra.mxu0 0.0
        %4121 = vmatprep.subr.mxu0 0.0
        %4122 = vmatpush1.msra.mxu0 0.0
        %4123 = vmatprep.subr.mxu0 0.0
        %4124 = vmatpush1.msra.mxu0 0.0
        %4125 = vmatprep.subr.mxu0 0.0
        %4126 = vmatpush1.msra.mxu0 0.0
        %4127 = vmatprep.subr.mxu0 0.0
        %4128 = vmatpush1.msra.mxu0 0.0
        %4129 = vmatprep.subr.mxu0 0.0
        %4130 = vmatpush1.msra.mxu0 0.0
        %4131 = vmatprep.subr.mxu0 0.0
        %4132 = vmatpush1.msra.mxu0 0.0
        %4133 = vmatprep.subr.mxu0 0.0
        %4134 = vmatpush1.msra.mxu0 0.0
        %4135 = vmatprep.subr.mxu0 0.0
        %4136 = vmatpush1.msra.mxu0 0.0
        %4137 = vmatprep.subr.mxu0 0.0
        %4138 = vmatpush1.msra.mxu0 0.0
        %4139 = vmatprep.subr.mxu0 0.0
        %4140 = vmatpush1.msra.mxu0 0.0
        %4141 = vmatprep.subr.mxu0 0.0
        %4142 = vmatpush1.msra.mxu0 0.0
        %4143 = vmatprep.subr.mxu0 0.0
        %4144 = vmatpush1.msra.mxu0 0.0
        %4145 = vmatprep.subr.mxu0 0.0
        %4146 = vmatpush1.msra.mxu0 0.0
        %4147 = vmatprep.subr.mxu0 0.0
        %4148 = vmatpush1.msra.mxu0 0.0
        %4149 = vmatprep.subr.mxu0 0.0
        %4150 = vmatpush1.msra.mxu0 0.0
        %4151 = vmatprep.subr.mxu0 0.0
        %4152 = vmatpush1.msra.mxu0 0.0
        %4153 = vmatprep.subr.mxu0 0.0
        %4154 = vmatpush1.msra.mxu0 0.0
        %4155 = vmatprep.subr.mxu0 0.0
        %4156 = vmatpush1.msra.mxu0 0.0
        %4157 = vmatprep.subr.mxu0 0.0
        %4158 = vmatpush1.msra.mxu0 0.0
        %4159 = vmatprep.subr.mxu0 0.0
        %4160 = vmatpush1.msra.mxu0 0.0
        %4161 = vmatprep.subr.mxu0 0.0
        %4162 = vmatpush1.msra.mxu0 0.0
        %4163 = vmatprep.subr.mxu0 0.0
        %4164 = vmatpush1.msra.mxu0 0.0
        %4165 = vmatprep.subr.mxu0 0.0
        %4166 = vmatpush1.msra.mxu0 0.0
        %4167 = vmatprep.subr.mxu0 0.0
        %4168 = vmatpush1.msra.mxu0 0.0
        %4169 = vmatprep.subr.mxu0 0.0
        %4170 = vmatpush1.msra.mxu0 0.0
        %4171 = vmatprep.subr.mxu0 0.0
        %4172 = vmatpush1.msra.mxu0 0.0
        %4173 = vmatprep.subr.mxu0 0.0
        %4174 = vmatpush1.msra.mxu0 0.0
        %4175 = vmatprep.mubr.f32.mxu0 0.0
        %v4176 = vand.u32 %v3734, 4294901760
        %4177 = vmatmul.mubr.f32.gmra.mrb[0].mxu0 %v4176
        %v4178 = vpop.f32.mrb[0].mxu0
        %v4179 = vadd.f32 %v4107, %v4178
        %v4180 = vpop.f32.mrb[0].mxu0
        %4181 = vdwg.mxu0
        %v4182 = vmul.f32 %v4179, %v313
        %v4183 = vadd.f32 %v3731, %v4182
        %4184 = vst [vmem:[%s305] sm:$0xff] %v4183
        %s4185 = sand.u32 %s165, 1
        %s4186 = scalar_lea.sflag [#allocation5], %s4185
        %s4187 = sand.u32 %s165, 1
        %s4188 = smul.addr %s4187, 8
        %s4189 = scalar_lea.vmem [#allocation4], %s4188
        // Predicated region
        $region83: #{tpu_custom_call.1} parent=77 // pred_check
          %p4190 = pneg %p175
        $region84: #{tpu_custom_call.1} parent=77 // pred_check_branch
          %4192 = sbr.rel (%p4190) target = $region86
        $region85: #{tpu_custom_call.1} parent=77 // pred_region
          %s4194 = ssub.s32 128, 128
          %4195 = vsyncadd %s4186, %s4194
          %s4196 = smul.addr %s21, 128
          %s4197 = scalar_lea.hbm %s6, %s4196
          %s4199 = sshll.u32 %s4189, 4
          %s4200 = int_to_ptr.vmem [resolvable:$true] %s4199
          %4202 = dma.vmem_to_hbm [thread:$0]  %s4200, 128, %s4197, %s4186
        $region86: #{tpu_custom_call.1} parent=77 // pred_fallthru
          _
      $region78: #{tpu_custom_call.1} parent=5 // pred_fallthru
        _
      %p4203 = scmp.le.s32.totalorder 2, %s16
      // Predicated region
      $region87: #{tpu_custom_call.1} parent=5 // pred_check
        %p4204 = pneg %p4203
      $region88: #{tpu_custom_call.1} parent=5 // pred_check_branch
        %4206 = sbr.rel (%p4204) target = $region90
      $region89: #{tpu_custom_call.1} parent=5 // pred_region
        %s4207 = ssub.s32 %s16, 2
        // Predicated region
        $region91: #{tpu_custom_call.1} parent=89 // pred_check
          %p4208 = pneg %p181
        $region92: #{tpu_custom_call.1} parent=89 // pred_check_branch
          %4210 = sbr.rel (%p4208) target = $region94
        $region93: #{tpu_custom_call.1} parent=89 // pred_region
          %s4211 = sand.u32 %s166, 1
          %s4212 = scalar_lea.sflag [#allocation5], %s4211
          %s4213 = sand.u32 %s166, 1
          %s4214 = smul.addr %s4213, 8
          %s4215 = scalar_lea.vmem [#allocation4], %s4214
          %4216 = dma.done %s4212, 128
        $region94: #{tpu_custom_call.1} parent=89 // pred_fallthru
          _
      $region90: #{tpu_custom_call.1} parent=5 // pred_fallthru
        _
    $region6: #{tpu_custom_call.1} parent=1 // loop_footer
      %s20 = sadd.s32 1, %s16
    $region7: #{tpu_custom_call.1} parent=1 // loop_footer_branch
      %15 = sbr.rel target = $region3
    $region8: #{tpu_custom_call.1} parent=1 // loop_exit
      _
    %4217 = vsyncpa [#allocation5], 1
    %s4218 = scalar_lea.sflag [#allocation5], 1
    %4219 = vsyncpa %s4218, 1

</llo_original>
